<compile_context>
chip_gen: v5e
topology: v5e:2x2
jax: 0.10.0
libtpu: 0.0.40
codegen_flags: <defaults>
</compile_context>

<pallas_src>
import functools

import jax
import jax.numpy as jnp
from jax import lax
from jax.experimental import pallas as pl
from jax.experimental.pallas import tpu as pltpu


# ----------------------------------------------------------------------------
# Parameter helpers (plain JAX, run once per call outside the kernel)
# ----------------------------------------------------------------------------

def _bilinear_matrix(in_size: int, scale: int) -> jnp.ndarray:
    """(out, in) interpolation matrix reproducing nn.Upsample(mode='bilinear',
    align_corners=False) for integer scale factors."""
    out_size = in_size * scale
    src = (jnp.arange(out_size, dtype=jnp.float32) + 0.5) / scale - 0.5
    src = jnp.maximum(src, 0.0)                      # PyTorch clamps src to >= 0
    i0 = jnp.floor(src).astype(jnp.int32)
    i1 = jnp.minimum(i0 + 1, in_size - 1)
    lam = src - i0.astype(jnp.float32)
    rows = jnp.arange(out_size)
    u = jnp.zeros((out_size, in_size), jnp.float32)
    u = u.at[rows, i0].add(1.0 - lam)
    u = u.at[rows, i1].add(lam)
    return u


# ----------------------------------------------------------------------------
# Fused kernel: upsample x2 + conv3x3(pad=1, no bias) + folded BN + ReLU
# ----------------------------------------------------------------------------

def _upper_block_kernel(x_ref, kt_ref, w_ref, b_ref, o_ref, *, wp, conv_n):
    # x_ref : (Cin, H*W)      one image, spatial flattened (NCHW row-major)
    # kt_ref: (H*W, WB)       fused "bilinear x2 upsample + zero pad" operator
    # w_ref : (9, Cout, Cin)  conv taps with BN scale folded in, tap = dy*3 + dx
    # b_ref : (Cout, 1)       folded BN shift (bias)
    # o_ref : (Cout, conv_n)  flat output, row stride wp = 2W + 2 (lane-dense)

    # Upsample + zero-pad: one MXU matmul; result stays in VMEM, already laid out
    # flat on lanes so the 3x3 taps below are contiguous slices.
    up = jnp.dot(x_ref[...], kt_ref[...],
                 preferred_element_type=jnp.float32)          # (Cin, WB)
    up = up.astype(w_ref.dtype)                               # bf16 on v6e/v7x path

    cout = o_ref.shape[0]
    acc = jnp.zeros((cout, conv_n), jnp.float32)
    # 9 whole-plane shifted matmuls (Cout, Cin) @ (Cin, conv_n), f32 accumulate.
    for dy in range(3):
        for dx in range(3):
            off = dy * wp + dx
            tap = up[:, off:off + conv_n]                     # shifted padded plane
            acc = acc + jnp.dot(w_ref[dy * 3 + dx], tap,
                                preferred_element_type=jnp.float32)

    # Folded BN shift + ReLU, one lane-dense store.
    o_ref[...] = jnp.maximum(acc + b_ref[...], 0.0).astype(o_ref.dtype)


def upper_block_forward(x_nchw, params, *, compute_dtype=jnp.float32, eps=1e-5):
    """UpperBlock forward. x: (N, Cin, H, W) -> (N, Cout, 2H, 2W), NCHW."""
    N, Cin, H, W = x_nchw.shape
    Cout = params["conv_w"].shape[0]
    H2, W2 = 2 * H, 2 * W
    Wp = W2 + 2                                   # padded row width
    pad_len = (H2 + 2) * Wp                       # padded plane, flattened
    conv_n = H2 * Wp                              # output length in Wp-strided layout
    max_off = 2 * Wp + 2                          # largest 3x3 tap offset
    WB = ((conv_n + max_off + 127) // 128) * 128  # lane-aligned operator width

    # Fused upsample + zero-pad operator: kron of the 1-px-padded 1-D interp matrices.
    uhp = jnp.pad(_bilinear_matrix(H, 2), ((1, 1), (0, 0)))   # (H2+2, H)
    uwp = jnp.pad(_bilinear_matrix(W, 2), ((1, 1), (0, 0)))   # (W2+2, W)
    kt = jnp.kron(uhp, uwp).T                                 # (H*W, pad_len)
    kt = jnp.pad(kt, ((0, 0), (0, WB - pad_len)))             # (H*W, WB)

    # Fold inference BatchNorm into the conv: scale -> weights, shift -> bias.
    scale = params["bn_gamma"] / jnp.sqrt(params["bn_var"] + eps)
    shift = params["bn_beta"] - params["bn_mean"] * scale
    w = params["conv_w"].astype(jnp.float32) * scale[:, None, None, None]
    w9 = jnp.transpose(w, (2, 3, 0, 1)).reshape(9, Cout, Cin)  # tap-major (dy, dx)
    bias = shift.reshape(Cout, 1).astype(jnp.float32)

    x_flat = x_nchw.reshape(N, Cin, H * W).astype(compute_dtype)   # free reshape
    kt = kt.astype(compute_dtype)
    w9 = w9.astype(compute_dtype)

    kernel = functools.partial(_upper_block_kernel, wp=Wp, conv_n=conv_n)
    out_flat = pl.pallas_call(
        kernel,
        out_shape=jax.ShapeDtypeStruct((N, Cout, conv_n), jnp.float32),
        grid=(N,),
        in_specs=[
            pl.BlockSpec((None, Cin, H * W), lambda n: (n, 0, 0)),
            pl.BlockSpec((H * W, WB), lambda n: (0, 0)),        # constant: fetched once
            pl.BlockSpec((9, Cout, Cin), lambda n: (0, 0, 0)),  # constant: fetched once
            pl.BlockSpec((Cout, 1), lambda n: (0, 0)),          # constant: fetched once
        ],
        out_specs=pl.BlockSpec((None, Cout, conv_n), lambda n: (n, 0, 0)),
        compiler_params=pltpu.CompilerParams(dimension_semantics=("parallel",)),
    )(x_flat, kt, w9, bias)

    # Wp-strided flat layout -> NCHW: the reshape is layout-free, the slice only drops
    # the 2 pad columns per row.  attention_type=None -> identity.
    return out_flat.reshape(N, Cout, H2, Wp)[..., :W2]


# ----------------------------------------------------------------------------
# Pure-JAX reference (correctness check)
# ----------------------------------------------------------------------------

def reference_forward(x, params, eps=1e-5):
    N, C, H, W = x.shape
    uh = _bilinear_matrix(H, 2)
    uw = _bilinear_matrix(W, 2)
    up = jnp.einsum('ph,nchw,qw->ncpq', uh, x.astype(jnp.float32), uw)
    y = lax.conv_general_dilated(
        up, params["conv_w"].astype(jnp.float32), (1, 1), 'SAME',
        dimension_numbers=('NCHW', 'OIHW', 'NCHW'))
    scale = params["bn_gamma"] / jnp.sqrt(params["bn_var"] + eps)
    shift = params["bn_beta"] - params["bn_mean"] * scale
    y = y * scale[None, :, None, None] + shift[None, :, None, None]
    return jnp.maximum(y, 0.0)


# ----------------------------------------------------------------------------
# Main
# ----------------------------------------------------------------------------

if __name__ == "__main__":
    N, Cin, Cout, H, W = 2, 4, 8, 16, 16

    key = jax.random.PRNGKey(0)
    kx, kw, kg, kb, km, kv = jax.random.split(key, 6)

    x = jax.random.normal(kx, (N, Cin, H, W), dtype=jnp.float32)

    params = {
        "conv_w":   0.1 * jax.random.normal(kw, (Cout, Cin, 3, 3), dtype=jnp.float32),
        "bn_gamma": 1.0 + 0.1 * jax.random.normal(kg, (Cout,), dtype=jnp.float32),
        "bn_beta":  0.1 * jax.random.normal(kb, (Cout,), dtype=jnp.float32),
        "bn_mean":  0.1 * jax.random.normal(km, (Cout,), dtype=jnp.float32),
        "bn_var":   1.0 + 0.5 * jax.random.uniform(kv, (Cout,), dtype=jnp.float32),
    }

    ref = jax.block_until_ready(reference_forward(x, params))

    # f32 path (matches the PyTorch module's numerics).
    out = jax.block_until_ready(upper_block_forward(x, params))
    assert out.shape == (N, Cout, 2 * H, 2 * W), out.shape
    err_f32 = float(jnp.max(jnp.abs(out - ref)))
    assert err_f32 < 1e-3, f"f32 mismatch vs reference: {err_f32}"

    # bf16 MXU-input path (v6e/v7x feedback): bf16 operands, f32 accumulation/epilogue.
    out_bf16 = jax.block_until_ready(
        upper_block_forward(x, params, compute_dtype=jnp.bfloat16))
    err_bf16 = float(jnp.max(jnp.abs(out_bf16 - ref)))
    assert err_bf16 < 8e-2, f"bf16 mismatch vs reference: {err_bf16}"

    print("KERNEL_OK")
</pallas_src>

<mosaic_0001>
module attributes {stable_mosaic.version = 11 : i64} {
  func.func @_upper_block_kernel(%arg0: i32, %arg1: memref<1x4x256xf32, #tpu.memory_space<vmem>>, %arg2: memref<256x1280xf32, #tpu.memory_space<vmem>>, %arg3: memref<9x8x4xf32, #tpu.memory_space<vmem>>, %arg4: memref<8x1xf32, #tpu.memory_space<vmem>>, %arg5: memref<1x8x1088xf32, #tpu.memory_space<vmem>>) attributes {dimension_semantics = [#tpu.dimension_semantics<parallel>], iteration_bounds = array<i64: 2>, scalar_prefetch = 0 : i64, scratch_operands = 0 : i64, tpu.core_type = #tpu.core_type<tc>, window_params = [{transform_indices = @transform_0, window_bounds = array<i64: 1, 4, 256>}, {pipeline_mode = #tpu.pipeline_mode<synchronous>, transform_indices = @transform_1, window_bounds = array<i64: 256, 1280>}, {pipeline_mode = #tpu.pipeline_mode<synchronous>, transform_indices = @transform_2, window_bounds = array<i64: 9, 8, 4>}, {pipeline_mode = #tpu.pipeline_mode<synchronous>, transform_indices = @transform_3, window_bounds = array<i64: 8, 1>}, {transform_indices = @transform_4, window_bounds = array<i64: 1, 8, 1088>}]} {
    %c0 = arith.constant 0 : index
    %c0_0 = arith.constant 0 : index
    %c0_1 = arith.constant 0 : index
    %0 = vector.load %arg1[%c0, %c0_0, %c0_1] : memref<1x4x256xf32, #tpu.memory_space<vmem>>, vector<1x4x256xf32>
    %1 = vector.shape_cast %0 : vector<1x4x256xf32> to vector<4x256xf32>
    %c0_2 = arith.constant 0 : index
    %c0_3 = arith.constant 0 : index
    %2 = vector.load %arg2[%c0_2, %c0_3] : memref<256x1280xf32, #tpu.memory_space<vmem>>, vector<256x1280xf32>
    %cst = arith.constant dense<0.000000e+00> : vector<4x1280xf32>
    %3 = tpu.matmul %1, %2, %cst {dimension_numbers = #tpu.dot_dimension_numbers<[1], [0], [0], [1], [0, 0, 1, 1], [], []>} : vector<4x256xf32>, vector<256x1280xf32>, vector<4x1280xf32> -> vector<4x1280xf32>
    %cst_4 = arith.constant 0.000000e+00 : f32
    %4 = vector.broadcast %cst_4 : f32 to vector<8x1088xf32>
    %5 = vector.extract_strided_slice %3 {offsets = [0, 0], sizes = [4, 1088], strides = [1, 1]} : vector<4x1280xf32> to vector<4x1088xf32>
    %c0_5 = arith.constant 0 : index
    %c0_6 = arith.constant 0 : index
    %c0_7 = arith.constant 0 : index
    %6 = vector.load %arg3[%c0_5, %c0_6, %c0_7] : memref<9x8x4xf32, #tpu.memory_space<vmem>>, vector<1x8x4xf32>
    %7 = vector.shape_cast %6 : vector<1x8x4xf32> to vector<8x4xf32>
    %cst_8 = arith.constant dense<0.000000e+00> : vector<8x1088xf32>
    %8 = tpu.matmul %7, %5, %cst_8 {dimension_numbers = #tpu.dot_dimension_numbers<[1], [0], [0], [1], [0, 0, 1, 1], [], []>} : vector<8x4xf32>, vector<4x1088xf32>, vector<8x1088xf32> -> vector<8x1088xf32>
    %9 = arith.addf %4, %8 : vector<8x1088xf32>
    %10 = vector.extract_strided_slice %3 {offsets = [0, 1], sizes = [4, 1088], strides = [1, 1]} : vector<4x1280xf32> to vector<4x1088xf32>
    %c1 = arith.constant 1 : index
    %c0_9 = arith.constant 0 : index
    %c0_10 = arith.constant 0 : index
    %11 = vector.load %arg3[%c1, %c0_9, %c0_10] : memref<9x8x4xf32, #tpu.memory_space<vmem>>, vector<1x8x4xf32>
    %12 = vector.shape_cast %11 : vector<1x8x4xf32> to vector<8x4xf32>
    %cst_11 = arith.constant dense<0.000000e+00> : vector<8x1088xf32>
    %13 = tpu.matmul %12, %10, %cst_11 {dimension_numbers = #tpu.dot_dimension_numbers<[1], [0], [0], [1], [0, 0, 1, 1], [], []>} : vector<8x4xf32>, vector<4x1088xf32>, vector<8x1088xf32> -> vector<8x1088xf32>
    %14 = arith.addf %9, %13 : vector<8x1088xf32>
    %15 = vector.extract_strided_slice %3 {offsets = [0, 2], sizes = [4, 1088], strides = [1, 1]} : vector<4x1280xf32> to vector<4x1088xf32>
    %c2 = arith.constant 2 : index
    %c0_12 = arith.constant 0 : index
    %c0_13 = arith.constant 0 : index
    %16 = vector.load %arg3[%c2, %c0_12, %c0_13] : memref<9x8x4xf32, #tpu.memory_space<vmem>>, vector<1x8x4xf32>
    %17 = vector.shape_cast %16 : vector<1x8x4xf32> to vector<8x4xf32>
    %cst_14 = arith.constant dense<0.000000e+00> : vector<8x1088xf32>
    %18 = tpu.matmul %17, %15, %cst_14 {dimension_numbers = #tpu.dot_dimension_numbers<[1], [0], [0], [1], [0, 0, 1, 1], [], []>} : vector<8x4xf32>, vector<4x1088xf32>, vector<8x1088xf32> -> vector<8x1088xf32>
    %19 = arith.addf %14, %18 : vector<8x1088xf32>
    %20 = vector.extract_strided_slice %3 {offsets = [0, 34], sizes = [4, 1088], strides = [1, 1]} : vector<4x1280xf32> to vector<4x1088xf32>
    %c3 = arith.constant 3 : index
    %c0_15 = arith.constant 0 : index
    %c0_16 = arith.constant 0 : index
    %21 = vector.load %arg3[%c3, %c0_15, %c0_16] : memref<9x8x4xf32, #tpu.memory_space<vmem>>, vector<1x8x4xf32>
    %22 = vector.shape_cast %21 : vector<1x8x4xf32> to vector<8x4xf32>
    %cst_17 = arith.constant dense<0.000000e+00> : vector<8x1088xf32>
    %23 = tpu.matmul %22, %20, %cst_17 {dimension_numbers = #tpu.dot_dimension_numbers<[1], [0], [0], [1], [0, 0, 1, 1], [], []>} : vector<8x4xf32>, vector<4x1088xf32>, vector<8x1088xf32> -> vector<8x1088xf32>
    %24 = arith.addf %19, %23 : vector<8x1088xf32>
    %25 = vector.extract_strided_slice %3 {offsets = [0, 35], sizes = [4, 1088], strides = [1, 1]} : vector<4x1280xf32> to vector<4x1088xf32>
    %c4 = arith.constant 4 : index
    %c0_18 = arith.constant 0 : index
    %c0_19 = arith.constant 0 : index
    %26 = vector.load %arg3[%c4, %c0_18, %c0_19] : memref<9x8x4xf32, #tpu.memory_space<vmem>>, vector<1x8x4xf32>
    %27 = vector.shape_cast %26 : vector<1x8x4xf32> to vector<8x4xf32>
    %cst_20 = arith.constant dense<0.000000e+00> : vector<8x1088xf32>
    %28 = tpu.matmul %27, %25, %cst_20 {dimension_numbers = #tpu.dot_dimension_numbers<[1], [0], [0], [1], [0, 0, 1, 1], [], []>} : vector<8x4xf32>, vector<4x1088xf32>, vector<8x1088xf32> -> vector<8x1088xf32>
    %29 = arith.addf %24, %28 : vector<8x1088xf32>
    %30 = vector.extract_strided_slice %3 {offsets = [0, 36], sizes = [4, 1088], strides = [1, 1]} : vector<4x1280xf32> to vector<4x1088xf32>
    %c5 = arith.constant 5 : index
    %c0_21 = arith.constant 0 : index
    %c0_22 = arith.constant 0 : index
    %31 = vector.load %arg3[%c5, %c0_21, %c0_22] : memref<9x8x4xf32, #tpu.memory_space<vmem>>, vector<1x8x4xf32>
    %32 = vector.shape_cast %31 : vector<1x8x4xf32> to vector<8x4xf32>
    %cst_23 = arith.constant dense<0.000000e+00> : vector<8x1088xf32>
    %33 = tpu.matmul %32, %30, %cst_23 {dimension_numbers = #tpu.dot_dimension_numbers<[1], [0], [0], [1], [0, 0, 1, 1], [], []>} : vector<8x4xf32>, vector<4x1088xf32>, vector<8x1088xf32> -> vector<8x1088xf32>
    %34 = arith.addf %29, %33 : vector<8x1088xf32>
    %35 = vector.extract_strided_slice %3 {offsets = [0, 68], sizes = [4, 1088], strides = [1, 1]} : vector<4x1280xf32> to vector<4x1088xf32>
    %c6 = arith.constant 6 : index
    %c0_24 = arith.constant 0 : index
    %c0_25 = arith.constant 0 : index
    %36 = vector.load %arg3[%c6, %c0_24, %c0_25] : memref<9x8x4xf32, #tpu.memory_space<vmem>>, vector<1x8x4xf32>
    %37 = vector.shape_cast %36 : vector<1x8x4xf32> to vector<8x4xf32>
    %cst_26 = arith.constant dense<0.000000e+00> : vector<8x1088xf32>
    %38 = tpu.matmul %37, %35, %cst_26 {dimension_numbers = #tpu.dot_dimension_numbers<[1], [0], [0], [1], [0, 0, 1, 1], [], []>} : vector<8x4xf32>, vector<4x1088xf32>, vector<8x1088xf32> -> vector<8x1088xf32>
    %39 = arith.addf %34, %38 : vector<8x1088xf32>
    %40 = vector.extract_strided_slice %3 {offsets = [0, 69], sizes = [4, 1088], strides = [1, 1]} : vector<4x1280xf32> to vector<4x1088xf32>
    %c7 = arith.constant 7 : index
    %c0_27 = arith.constant 0 : index
    %c0_28 = arith.constant 0 : index
    %41 = vector.load %arg3[%c7, %c0_27, %c0_28] : memref<9x8x4xf32, #tpu.memory_space<vmem>>, vector<1x8x4xf32>
    %42 = vector.shape_cast %41 : vector<1x8x4xf32> to vector<8x4xf32>
    %cst_29 = arith.constant dense<0.000000e+00> : vector<8x1088xf32>
    %43 = tpu.matmul %42, %40, %cst_29 {dimension_numbers = #tpu.dot_dimension_numbers<[1], [0], [0], [1], [0, 0, 1, 1], [], []>} : vector<8x4xf32>, vector<4x1088xf32>, vector<8x1088xf32> -> vector<8x1088xf32>
    %44 = arith.addf %39, %43 : vector<8x1088xf32>
    %45 = vector.extract_strided_slice %3 {offsets = [0, 70], sizes = [4, 1088], strides = [1, 1]} : vector<4x1280xf32> to vector<4x1088xf32>
    %c8 = arith.constant 8 : index
    %c0_30 = arith.constant 0 : index
    %c0_31 = arith.constant 0 : index
    %46 = vector.load %arg3[%c8, %c0_30, %c0_31] : memref<9x8x4xf32, #tpu.memory_space<vmem>>, vector<1x8x4xf32>
    %47 = vector.shape_cast %46 : vector<1x8x4xf32> to vector<8x4xf32>
    %cst_32 = arith.constant dense<0.000000e+00> : vector<8x1088xf32>
    %48 = tpu.matmul %47, %45, %cst_32 {dimension_numbers = #tpu.dot_dimension_numbers<[1], [0], [0], [1], [0, 0, 1, 1], [], []>} : vector<8x4xf32>, vector<4x1088xf32>, vector<8x1088xf32> -> vector<8x1088xf32>
    %49 = arith.addf %44, %48 : vector<8x1088xf32>
    %c0_33 = arith.constant 0 : index
    %c0_34 = arith.constant 0 : index
    %50 = vector.load %arg4[%c0_33, %c0_34] : memref<8x1xf32, #tpu.memory_space<vmem>>, vector<8x1xf32>
    %51 = vector.broadcast %50 : vector<8x1xf32> to vector<8x1088xf32>
    %52 = arith.addf %49, %51 : vector<8x1088xf32>
    %cst_35 = arith.constant 0.000000e+00 : f32
    %53 = vector.broadcast %cst_35 : f32 to vector<8x1088xf32>
    %54 = arith.maximumf %52, %53 : vector<8x1088xf32>
    %c0_36 = arith.constant 0 : index
    %c0_37 = arith.constant 0 : index
    %c0_38 = arith.constant 0 : index
    %55 = vector.load %arg5[%c0_36, %c0_37, %c0_38] : memref<1x8x1088xf32, #tpu.memory_space<vmem>>, vector<1x8x1088xf32>
    %56 = vector.shape_cast %55 : vector<1x8x1088xf32> to vector<8x1088xf32>
    %57 = vector.shape_cast %54 : vector<8x1088xf32> to vector<1x8x1088xf32>
    tpu.vector_store %arg5[%c0_36, %c0_37, %c0_38], %57 {strides = array<i32>} : memref<1x8x1088xf32, #tpu.memory_space<vmem>>, vector<1x8x1088xf32>,
    return
  }
  func.func @transform_0(%arg0: i32) -> (i32, i32, i32) {
    %c0_i32 = arith.constant 0 : i32
    %c0_i32_0 = arith.constant 0 : i32
    %c0_i32_1 = arith.constant 0 : i32
    return %arg0, %c0_i32, %c0_i32_0 : i32, i32, i32
  }
  func.func @transform_1(%arg0: i32) -> (i32, i32) {
    %c0_i32 = arith.constant 0 : i32
    %c0_i32_0 = arith.constant 0 : i32
    %c0_i32_1 = arith.constant 0 : i32
    return %c0_i32, %c0_i32_0 : i32, i32
  }
  func.func @transform_2(%arg0: i32) -> (i32, i32, i32) {
    %c0_i32 = arith.constant 0 : i32
    %c0_i32_0 = arith.constant 0 : i32
    %c0_i32_1 = arith.constant 0 : i32
    %c0_i32_2 = arith.constant 0 : i32
    return %c0_i32, %c0_i32_0, %c0_i32_1 : i32, i32, i32
  }
  func.func @transform_3(%arg0: i32) -> (i32, i32) {
    %c0_i32 = arith.constant 0 : i32
    %c0_i32_0 = arith.constant 0 : i32
    %c0_i32_1 = arith.constant 0 : i32
    return %c0_i32, %c0_i32_0 : i32, i32
  }
  func.func @transform_4(%arg0: i32) -> (i32, i32, i32) {
    %c0_i32 = arith.constant 0 : i32
    %c0_i32_0 = arith.constant 0 : i32
    %c0_i32_1 = arith.constant 0 : i32
    return %arg0, %c0_i32, %c0_i32_0 : i32, i32, i32
  }
}

</mosaic_0001>

<llo_original>
// kernel: tpu_custom_call.1
$region0: #{tpu_custom_call.1}
  #allocation0 [shape = 'u32[]', space=smem, size = 0x4, offset = 0x4, fixed_abs, tag = 'smem constant byte address 0x4 - core index']
  #allocation1 [shape = 'u32[72,128]{1,0:T(1,128)}', space=vmem, size = 0x9000, scoped, tag = 'internal scratch']
  %s0 = inlined_call_operand.hbm [shape: f32[2,4,256], index: 0, kind: input, shape index: {}]
  %s1 = inlined_call_operand.hbm [shape: f32[256,1280], index: 1, kind: input, shape index: {}]
  %s2 = inlined_call_operand.vmem [shape: f32[9,8,4], index: 2, kind: input, shape index: {}]
  %s3 = inlined_call_operand.vmem [shape: f32[8,1], index: 3, kind: input, shape index: {}]
  %s4 = inlined_call_operand.hbm [shape: f32[2,8,1088], index: 4, kind: output, shape index: {}]
  %s5 = sld [smem:[#allocation0]]
  $region57: #{tpu_custom_call.1} parent=0
    _
  %s7 = ssub.s32 1, %s5
  %s8 = scalar_select 0, %s7, %s5
  $region1: #{tpu_custom_call.1} parent=0
    #allocation2 [shape = 'u8[8192]{0}', space=vmem, size = 0x2000, scoped, tag = 'input window, operand 0']
    #allocation3 [shape = 's32[2]{0}', space=sflag, size = 0x8, scoped, tag = 'scoped memory for tpu_custom_call.1']
    #allocation4 [shape = 's32[2]{0}', space=sflag, size = 0x8, scoped, tag = 'scoped memory for tpu_custom_call.1']
    #allocation5 [shape = 'u8[1310720]{0}', space=vmem, size = 0x140000, scoped, tag = 'input window, operand 1, single buffered']
    #allocation6 [shape = 's32[1]{0}', space=sflag, size = 0x4, scoped, tag = 'scoped memory for tpu_custom_call.1']
    #allocation7 [shape = 'u8[73728]{0}', space=vmem, size = 0x12000, scoped, tag = 'output window, operand 0']
    %9 = vsyncpa [#allocation3], 0
    %s10 = scalar_lea.sflag [#allocation3], 1
    %11 = vsyncpa %s10, 0
    %12 = vsyncpa [#allocation6], 0
    %13 = vsyncpa [#allocation4], 0
    %s14 = scalar_lea.sflag [#allocation4], 1
    %15 = vsyncpa %s14, 0
    loop: start=0, step=1, limit=4
    $region2: #{tpu_custom_call.1} parent=1 // loop_pre_header
      _
    $region3: #{tpu_custom_call.1} parent=1 // loop_header
      %s17 = sphi 0, %s21
      %p18 = scmp.ge.s32.totalorder %s17, 4
      %s27 = sphi 0, %s29
      %s30 = sphi 0, %s27
      %s31 = sphi 0, %s30
      %s47 = sphi 0, %s31
      %s51 = sphi 0, %s51
      %s53 = sphi 0, %s51
      %s54 = sphi 0, %s53
      %s68 = sphi 0, %s54
      %s72 = sphi 0, %s72
      %s74 = sphi 0, %s72
      %s75 = sphi 0, %s74
      %s89 = sphi 0, %s75
      %s93 = sphi 0, %s93
      %s95 = sphi 0, %s93
      %s96 = sphi 0, %s95
      %s110 = sphi 0, %s96
      %s116 = sphi 0, %s118
      %s119 = sphi 0, %s116
      %s120 = sphi 0, %s119
      %s136 = sphi 0, %s120
    $region4: #{tpu_custom_call.1} parent=1 // loop_header_branch
      %20 = sbr.rel (%p18) target = $region8
    $region5: #{tpu_custom_call.1} parent=1 // loop_body
      %s22 = ssub.s32 %s17, 1
      %s23 = ssub.s32 %s17, 2
      %s24 = sadd.s32 %s17, 1
      %s25 = ssub.s32 %s17, %s24
      %p26 = scmp.eq.s32.totalorder %s25, 0
      %s28 = sadd.s32 %s27, 1
      %s29 = scalar_select %p26, %s27, %s28
      %p32 = pneg %p26
      %p33 = scmp.eq.s32.totalorder %s17, 1
      %p34 = por %p32, %p33
      %p35 = scmp.ne.s32.totalorder %s27, %s30
      %p36 = scmp.eq.s32.totalorder %s17, 0
      %p37 = por %p35, %p36
      %p38 = scmp.ne.s32.totalorder %s27, %s30
      %p39 = scmp.eq.s32.totalorder %s22, 1
      %p40 = por %p38, %p39
      %p41 = scmp.ne.s32.totalorder %s30, %s31
      %p42 = scmp.eq.s32.totalorder %s22, 0
      %p43 = por %p41, %p42
      %p44 = scmp.ne.s32.totalorder %s30, %s31
      %p45 = scmp.eq.s32.totalorder %s23, 1
      %p46 = por %p44, %p45
      %p48 = scmp.ne.s32.totalorder %s31, %s47
      %p49 = scmp.eq.s32.totalorder %s23, 0
      %p50 = por %p48, %p49
      %s52 = sadd.s32 %s51, 1
      %p55 = scmp.eq.s32.totalorder %s17, 1
      %p56 = scmp.ne.s32.totalorder %s51, %s53
      %p57 = scmp.eq.s32.totalorder %s17, 0
      %p58 = por %p56, %p57
      %p59 = scmp.ne.s32.totalorder %s51, %s53
      %p60 = scmp.eq.s32.totalorder %s22, 1
      %p61 = por %p59, %p60
      %p62 = scmp.ne.s32.totalorder %s53, %s54
      %p63 = scmp.eq.s32.totalorder %s22, 0
      %p64 = por %p62, %p63
      %p65 = scmp.ne.s32.totalorder %s53, %s54
      %p66 = scmp.eq.s32.totalorder %s23, 1
      %p67 = por %p65, %p66
      %p69 = scmp.ne.s32.totalorder %s54, %s68
      %p70 = scmp.eq.s32.totalorder %s23, 0
      %p71 = por %p69, %p70
      %s73 = sadd.s32 %s72, 1
      %p76 = scmp.eq.s32.totalorder %s17, 1
      %p77 = scmp.ne.s32.totalorder %s72, %s74
      %p78 = scmp.eq.s32.totalorder %s17, 0
      %p79 = por %p77, %p78
      %p80 = scmp.ne.s32.totalorder %s72, %s74
      %p81 = scmp.eq.s32.totalorder %s22, 1
      %p82 = por %p80, %p81
      %p83 = scmp.ne.s32.totalorder %s74, %s75
      %p84 = scmp.eq.s32.totalorder %s22, 0
      %p85 = por %p83, %p84
      %p86 = scmp.ne.s32.totalorder %s74, %s75
      %p87 = scmp.eq.s32.totalorder %s23, 1
      %p88 = por %p86, %p87
      %p90 = scmp.ne.s32.totalorder %s75, %s89
      %p91 = scmp.eq.s32.totalorder %s23, 0
      %p92 = por %p90, %p91
      %s94 = sadd.s32 %s93, 1
      %p97 = scmp.eq.s32.totalorder %s17, 1
      %p98 = scmp.ne.s32.totalorder %s93, %s95
      %p99 = scmp.eq.s32.totalorder %s17, 0
      %p100 = por %p98, %p99
      %p101 = scmp.ne.s32.totalorder %s93, %s95
      %p102 = scmp.eq.s32.totalorder %s22, 1
      %p103 = por %p101, %p102
      %p104 = scmp.ne.s32.totalorder %s95, %s96
      %p105 = scmp.eq.s32.totalorder %s22, 0
      %p106 = por %p104, %p105
      %p107 = scmp.ne.s32.totalorder %s95, %s96
      %p108 = scmp.eq.s32.totalorder %s23, 1
      %p109 = por %p107, %p108
      %p111 = scmp.ne.s32.totalorder %s96, %s110
      %p112 = scmp.eq.s32.totalorder %s23, 0
      %p113 = por %p111, %p112
      %s114 = ssub.s32 %s17, %s24
      %p115 = scmp.eq.s32.totalorder %s114, 0
      %s117 = sadd.s32 %s116, 1
      %s118 = scalar_select %p115, %s116, %s117
      %p121 = pneg %p115
      %p122 = scmp.eq.s32.totalorder %s17, 1
      %p123 = por %p121, %p122
      %p124 = scmp.ne.s32.totalorder %s116, %s119
      %p125 = scmp.eq.s32.totalorder %s17, 0
      %p126 = por %p124, %p125
      %p127 = scmp.ne.s32.totalorder %s116, %s119
      %p128 = scmp.eq.s32.totalorder %s22, 1
      %p129 = por %p127, %p128
      %p130 = scmp.ne.s32.totalorder %s119, %s120
      %p131 = scmp.eq.s32.totalorder %s22, 0
      %p132 = por %p130, %p131
      %p133 = scmp.ne.s32.totalorder %s119, %s120
      %p134 = scmp.eq.s32.totalorder %s23, 1
      %p135 = por %p133, %p134
      %p137 = scmp.ne.s32.totalorder %s120, %s136
      %p138 = scmp.eq.s32.totalorder %s23, 0
      %p139 = por %p137, %p138
      %p140 = scmp.le.s32.totalorder 1, %s17
      %p141 = scmp.lt.s32.totalorder %s17, 3
      %p142 = pnand %p140, %p141
      %p143 = pneg %p142
      // Predicated region
      $region9: #{tpu_custom_call.1} parent=5 // pred_check
        _
      $region10: #{tpu_custom_call.1} parent=5 // pred_check_branch
        %145 = sbr.rel (%p142) target = $region12
      $region11: #{tpu_custom_call.1} parent=5 // pred_region
        %s146 = ssub.s32 %s17, 1
        // Predicated region
        $region13: #{tpu_custom_call.1} parent=11 // pred_check
          %p147 = pneg %p64
        $region14: #{tpu_custom_call.1} parent=11 // pred_check_branch
          %149 = sbr.rel (%p147) target = $region16
        $region15: #{tpu_custom_call.1} parent=11 // pred_region
          %151 = vsyncadd [#allocation6], 0
          %s152 = sshll.u32 %s1, 4
          %s153 = int_to_ptr.hbm [resolvable:$true] %s152
          %s154 = sshll.u32 [#allocation5], 4
          %s155 = int_to_ptr.vmem [resolvable:$true] %s154
          %160 = dma.hbm_to_vmem [thread:$0]  %s153, 40960, %s155, [#allocation6], 1280, 1280, 80
        $region16: #{tpu_custom_call.1} parent=11 // pred_fallthru
          _
        // Predicated region
        $region17: #{tpu_custom_call.1} parent=11 // pred_check
          %p161 = pneg %p85
        $region18: #{tpu_custom_call.1} parent=11 // pred_check_branch
          %163 = sbr.rel (%p161) target = $region20
        $region19: #{tpu_custom_call.1} parent=11 // pred_region
          _
        $region20: #{tpu_custom_call.1} parent=11 // pred_fallthru
          _
        // Predicated region
        $region21: #{tpu_custom_call.1} parent=11 // pred_check
          %p164 = pneg %p106
        $region22: #{tpu_custom_call.1} parent=11 // pred_check_branch
          %166 = sbr.rel (%p164) target = $region24
        $region23: #{tpu_custom_call.1} parent=11 // pred_region
          _
        $region24: #{tpu_custom_call.1} parent=11 // pred_fallthru
          _
      $region12: #{tpu_custom_call.1} parent=5 // pred_fallthru
        _
      %p167 = scmp.lt.s32.totalorder %s17, 2
      // Predicated region
      $region25: #{tpu_custom_call.1} parent=5 // pred_check
        %p168 = pneg %p167
      $region26: #{tpu_custom_call.1} parent=5 // pred_check_branch
        %170 = sbr.rel (%p168) target = $region28
      $region27: #{tpu_custom_call.1} parent=5 // pred_region
        // Predicated region
        $region29: #{tpu_custom_call.1} parent=27 // pred_check
          %p171 = pneg %p37
        $region30: #{tpu_custom_call.1} parent=27 // pred_check_branch
          %173 = sbr.rel (%p171) target = $region32
        $region31: #{tpu_custom_call.1} parent=27 // pred_region
          %s174 = sand.u32 %s27, 1
          %s175 = scalar_lea.sflag [#allocation3], %s174
          %s176 = sand.u32 %s27, 1
          %s177 = smul.addr %s176, 8
          %s178 = scalar_lea.vmem [#allocation2], %s177
          %180 = vsyncadd %s175, 0
          %s181 = smul.addr %s17, 2
          %s182 = smul.addr %s181, 4
          %s183 = scalar_lea.hbm %s0, %s182
          %s185 = sshll.u32 %s183, 4
          %s186 = int_to_ptr.hbm [resolvable:$true] %s185
          %s187 = sshll.u32 %s178, 4
          %s188 = int_to_ptr.vmem [resolvable:$true] %s187
          %190 = dma.hbm_to_vmem [thread:$0]  %s186, 128, %s188, %s175
        $region32: #{tpu_custom_call.1} parent=27 // pred_fallthru
          _
      $region28: #{tpu_custom_call.1} parent=5 // pred_fallthru
        _
      %p191 = scmp.le.s32.totalorder 1, %s17
      %p192 = scmp.lt.s32.totalorder %s17, 3
      %p193 = pnand %p191, %p192
      %p194 = pneg %p193
      // Predicated region
      $region33: #{tpu_custom_call.1} parent=5 // pred_check
        _
      $region34: #{tpu_custom_call.1} parent=5 // pred_check_branch
        %196 = sbr.rel (%p193) target = $region36
      $region35: #{tpu_custom_call.1} parent=5 // pred_region
        %s197 = ssub.s32 %s17, 1
        %s198 = sand.u32 %s30, 1
        %s199 = scalar_lea.sflag [#allocation3], %s198
        %s200 = sand.u32 %s30, 1
        %s201 = smul.addr %s200, 8
        %s202 = scalar_lea.vmem [#allocation2], %s201
        // Predicated region
        $region37: #{tpu_custom_call.1} parent=35 // pred_check
          %p203 = pneg %p43
        $region38: #{tpu_custom_call.1} parent=35 // pred_check_branch
          %205 = sbr.rel (%p203) target = $region40
        $region39: #{tpu_custom_call.1} parent=35 // pred_region
          %207 = dma.done %s199, 128
        $region40: #{tpu_custom_call.1} parent=35 // pred_fallthru
          _
        // Predicated region
        $region41: #{tpu_custom_call.1} parent=35 // pred_check
          %p208 = pneg %p64
        $region42: #{tpu_custom_call.1} parent=35 // pred_check_branch
          %210 = sbr.rel (%p208) target = $region44
        $region43: #{tpu_custom_call.1} parent=35 // pred_region
          %212 = dma.done [#allocation6], 40960
        $region44: #{tpu_custom_call.1} parent=35 // pred_fallthru
          _
        %s213 = sand.u32 %s30, 1
        %s214 = scalar_lea.sflag [#allocation3], %s213
        %s215 = sand.u32 %s30, 1
        %s216 = smul.addr %s215, 8
        %s217 = scalar_lea.vmem [#allocation2], %s216
        %p218 = pneg %p43
        %p219 = pneg %p40
        %p220 = pneg %p64
        %p221 = pneg %p61
        %p222 = pneg %p85
        %p223 = pneg %p82
        %p224 = pneg %p106
        %p225 = pneg %p103
        %p226 = pneg %p132
        %p227 = pneg %p129
        %s228 = sand.u32 %s119, 1
        %s229 = scalar_lea.sflag [#allocation4], %s228
        %s230 = sand.u32 %s119, 1
        %s231 = smul.addr %s230, 72
        %s232 = scalar_lea.vmem [#allocation7], %s231
        %v233 = vld [vmem:[%s202] sm:$0xff]
        %v234 = vld [vmem:[#allocation5] sm:$0xff]
        %v235 = vld [vmem:[#allocation5 + $0x8] sm:$0xff]
        %v236 = vld [vmem:[#allocation5 + $0x10] sm:$0xff]
        %v237 = vld [vmem:[#allocation5 + $0x18] sm:$0xff]
        %v238 = vld [vmem:[#allocation5 + $0x20] sm:$0xff]
        %v239 = vld [vmem:[#allocation5 + $0x28] sm:$0xff]
        %v240 = vld [vmem:[#allocation5 + $0x30] sm:$0xff]
        %v241 = vld [vmem:[#allocation5 + $0x38] sm:$0xff]
        %v242 = vld [vmem:[#allocation5 + $0x40] sm:$0xff]
        %v243 = vld [vmem:[#allocation5 + $0x48] sm:$0xff]
        %v244 = vld [vmem:[#allocation5 + $0x50] sm:$0xff]
        %v245 = vld [vmem:[#allocation5 + $0x58] sm:$0xff]
        %v246 = vld [vmem:[#allocation5 + $0x60] sm:$0xff]
        %v247 = vld [vmem:[#allocation5 + $0x68] sm:$0xff]
        %v248 = vld [vmem:[#allocation5 + $0x70] sm:$0xff]
        %v249 = vld [vmem:[#allocation5 + $0x78] sm:$0xff]
        %v250 = vld [vmem:[#allocation5 + $0x80] sm:$0xff]
        %v251 = vld [vmem:[#allocation5 + $0x88] sm:$0xff]
        %v252 = vld [vmem:[#allocation5 + $0x90] sm:$0xff]
        %v253 = vld [vmem:[#allocation5 + $0x98] sm:$0xff]
        %v254 = vld [vmem:[#allocation5 + $0xa0] sm:$0xff]
        %v255 = vld [vmem:[#allocation5 + $0xa8] sm:$0xff]
        %v256 = vld [vmem:[#allocation5 + $0xb0] sm:$0xff]
        %v257 = vld [vmem:[#allocation5 + $0xb8] sm:$0xff]
        %v258 = vld [vmem:[#allocation5 + $0xc0] sm:$0xff]
        %v259 = vld [vmem:[#allocation5 + $0xc8] sm:$0xff]
        %v260 = vld [vmem:[#allocation5 + $0xd0] sm:$0xff]
        %v261 = vld [vmem:[#allocation5 + $0xd8] sm:$0xff]
        %v262 = vld [vmem:[#allocation5 + $0xe0] sm:$0xff]
        %v263 = vld [vmem:[#allocation5 + $0xe8] sm:$0xff]
        %v264 = vld [vmem:[#allocation5 + $0xf0] sm:$0xff]
        %v265 = vld [vmem:[#allocation5 + $0xf8] sm:$0xff]
        %v266 = vld [vmem:[#allocation5 + $0x100] sm:$0xff]
        %v267 = vld [vmem:[#allocation5 + $0x108] sm:$0xff]
        %v268 = vld [vmem:[#allocation5 + $0x110] sm:$0xff]
        %v269 = vld [vmem:[#allocation5 + $0x118] sm:$0xff]
        %v270 = vld [vmem:[#allocation5 + $0x120] sm:$0xff]
        %v271 = vld [vmem:[#allocation5 + $0x128] sm:$0xff]
        %v272 = vld [vmem:[#allocation5 + $0x130] sm:$0xff]
        %v273 = vld [vmem:[#allocation5 + $0x138] sm:$0xff]
        %v274 = vld [vmem:[#allocation5 + $0x140] sm:$0xff]
        %v275 = vld [vmem:[#allocation5 + $0x148] sm:$0xff]
        %v276 = vld [vmem:[#allocation5 + $0x150] sm:$0xff]
        %v277 = vld [vmem:[#allocation5 + $0x158] sm:$0xff]
        %v278 = vld [vmem:[#allocation5 + $0x160] sm:$0xff]
        %v279 = vld [vmem:[#allocation5 + $0x168] sm:$0xff]
        %v280 = vld [vmem:[#allocation5 + $0x170] sm:$0xff]
        %v281 = vld [vmem:[#allocation5 + $0x178] sm:$0xff]
        %v282 = vld [vmem:[#allocation5 + $0x180] sm:$0xff]
        %v283 = vld [vmem:[#allocation5 + $0x188] sm:$0xff]
        %v284 = vld [vmem:[#allocation5 + $0x190] sm:$0xff]
        %v285 = vld [vmem:[#allocation5 + $0x198] sm:$0xff]
        %v286 = vld [vmem:[#allocation5 + $0x1a0] sm:$0xff]
        %v287 = vld [vmem:[#allocation5 + $0x1a8] sm:$0xff]
        %v288 = vld [vmem:[#allocation5 + $0x1b0] sm:$0xff]
        %v289 = vld [vmem:[#allocation5 + $0x1b8] sm:$0xff]
        %v290 = vld [vmem:[#allocation5 + $0x1c0] sm:$0xff]
        %v291 = vld [vmem:[#allocation5 + $0x1c8] sm:$0xff]
        %v292 = vld [vmem:[#allocation5 + $0x1d0] sm:$0xff]
        %v293 = vld [vmem:[#allocation5 + $0x1d8] sm:$0xff]
        %v294 = vld [vmem:[#allocation5 + $0x1e0] sm:$0xff]
        %v295 = vld [vmem:[#allocation5 + $0x1e8] sm:$0xff]
        %v296 = vld [vmem:[#allocation5 + $0x1f0] sm:$0xff]
        %v297 = vld [vmem:[#allocation5 + $0x1f8] sm:$0xff]
        %v298 = vld [vmem:[#allocation5 + $0x200] sm:$0xff]
        %v299 = vld [vmem:[#allocation5 + $0x208] sm:$0xff]
        %v300 = vld [vmem:[#allocation5 + $0x210] sm:$0xff]
        %v301 = vld [vmem:[#allocation5 + $0x218] sm:$0xff]
        %v302 = vld [vmem:[#allocation5 + $0x220] sm:$0xff]
        %v303 = vld [vmem:[#allocation5 + $0x228] sm:$0xff]
        %v304 = vld [vmem:[#allocation5 + $0x230] sm:$0xff]
        %v305 = vld [vmem:[#allocation5 + $0x238] sm:$0xff]
        %v306 = vld [vmem:[#allocation5 + $0x240] sm:$0xff]
        %v307 = vld [vmem:[#allocation5 + $0x248] sm:$0xff]
        %v308 = vld [vmem:[#allocation5 + $0x250] sm:$0xff]
        %v309 = vld [vmem:[#allocation5 + $0x258] sm:$0xff]
        %v310 = vld [vmem:[#allocation5 + $0x260] sm:$0xff]
        %v311 = vld [vmem:[#allocation5 + $0x268] sm:$0xff]
        %v312 = vld [vmem:[#allocation5 + $0x270] sm:$0xff]
        %v313 = vld [vmem:[#allocation5 + $0x278] sm:$0xff]
        %v314 = vld [vmem:[#allocation5 + $0x280] sm:$0xff]
        %v315 = vld [vmem:[#allocation5 + $0x288] sm:$0xff]
        %v316 = vld [vmem:[#allocation5 + $0x290] sm:$0xff]
        %v317 = vld [vmem:[#allocation5 + $0x298] sm:$0xff]
        %v318 = vld [vmem:[#allocation5 + $0x2a0] sm:$0xff]
        %v319 = vld [vmem:[#allocation5 + $0x2a8] sm:$0xff]
        %v320 = vld [vmem:[#allocation5 + $0x2b0] sm:$0xff]
        %v321 = vld [vmem:[#allocation5 + $0x2b8] sm:$0xff]
        %v322 = vld [vmem:[#allocation5 + $0x2c0] sm:$0xff]
        %v323 = vld [vmem:[#allocation5 + $0x2c8] sm:$0xff]
        %v324 = vld [vmem:[#allocation5 + $0x2d0] sm:$0xff]
        %v325 = vld [vmem:[#allocation5 + $0x2d8] sm:$0xff]
        %v326 = vld [vmem:[#allocation5 + $0x2e0] sm:$0xff]
        %v327 = vld [vmem:[#allocation5 + $0x2e8] sm:$0xff]
        %v328 = vld [vmem:[#allocation5 + $0x2f0] sm:$0xff]
        %v329 = vld [vmem:[#allocation5 + $0x2f8] sm:$0xff]
        %v330 = vld [vmem:[#allocation5 + $0x300] sm:$0xff]
        %v331 = vld [vmem:[#allocation5 + $0x308] sm:$0xff]
        %v332 = vld [vmem:[#allocation5 + $0x310] sm:$0xff]
        %v333 = vld [vmem:[#allocation5 + $0x318] sm:$0xff]
        %v334 = vld [vmem:[#allocation5 + $0x320] sm:$0xff]
        %v335 = vld [vmem:[#allocation5 + $0x328] sm:$0xff]
        %v336 = vld [vmem:[#allocation5 + $0x330] sm:$0xff]
        %v337 = vld [vmem:[#allocation5 + $0x338] sm:$0xff]
        %v338 = vld [vmem:[#allocation5 + $0x340] sm:$0xff]
        %v339 = vld [vmem:[#allocation5 + $0x348] sm:$0xff]
        %v340 = vld [vmem:[#allocation5 + $0x350] sm:$0xff]
        %v341 = vld [vmem:[#allocation5 + $0x358] sm:$0xff]
        %v342 = vld [vmem:[#allocation5 + $0x360] sm:$0xff]
        %v343 = vld [vmem:[#allocation5 + $0x368] sm:$0xff]
        %v344 = vld [vmem:[#allocation5 + $0x370] sm:$0xff]
        %v345 = vld [vmem:[#allocation5 + $0x378] sm:$0xff]
        %v346 = vld [vmem:[#allocation5 + $0x380] sm:$0xff]
        %v347 = vld [vmem:[#allocation5 + $0x388] sm:$0xff]
        %v348 = vld [vmem:[#allocation5 + $0x390] sm:$0xff]
        %v349 = vld [vmem:[#allocation5 + $0x398] sm:$0xff]
        %v350 = vld [vmem:[#allocation5 + $0x3a0] sm:$0xff]
        %v351 = vld [vmem:[#allocation5 + $0x3a8] sm:$0xff]
        %v352 = vld [vmem:[#allocation5 + $0x3b0] sm:$0xff]
        %v353 = vld [vmem:[#allocation5 + $0x3b8] sm:$0xff]
        %v354 = vld [vmem:[#allocation5 + $0x3c0] sm:$0xff]
        %v355 = vld [vmem:[#allocation5 + $0x3c8] sm:$0xff]
        %v356 = vld [vmem:[#allocation5 + $0x3d0] sm:$0xff]
        %v357 = vld [vmem:[#allocation5 + $0x3d8] sm:$0xff]
        %v358 = vld [vmem:[#allocation5 + $0x3e0] sm:$0xff]
        %v359 = vld [vmem:[#allocation5 + $0x3e8] sm:$0xff]
        %v360 = vld [vmem:[#allocation5 + $0x3f0] sm:$0xff]
        %v361 = vld [vmem:[#allocation5 + $0x3f8] sm:$0xff]
        %v362 = vld [vmem:[#allocation5 + $0x400] sm:$0xff]
        %v363 = vld [vmem:[#allocation5 + $0x408] sm:$0xff]
        %v364 = vld [vmem:[#allocation5 + $0x410] sm:$0xff]
        %v365 = vld [vmem:[#allocation5 + $0x418] sm:$0xff]
        %v366 = vld [vmem:[#allocation5 + $0x420] sm:$0xff]
        %v367 = vld [vmem:[#allocation5 + $0x428] sm:$0xff]
        %v368 = vld [vmem:[#allocation5 + $0x430] sm:$0xff]
        %v369 = vld [vmem:[#allocation5 + $0x438] sm:$0xff]
        %v370 = vld [vmem:[#allocation5 + $0x440] sm:$0xff]
        %v371 = vld [vmem:[#allocation5 + $0x448] sm:$0xff]
        %v372 = vld [vmem:[#allocation5 + $0x450] sm:$0xff]
        %v373 = vld [vmem:[#allocation5 + $0x458] sm:$0xff]
        %v374 = vld [vmem:[#allocation5 + $0x460] sm:$0xff]
        %v375 = vld [vmem:[#allocation5 + $0x468] sm:$0xff]
        %v376 = vld [vmem:[#allocation5 + $0x470] sm:$0xff]
        %v377 = vld [vmem:[#allocation5 + $0x478] sm:$0xff]
        %v378 = vld [vmem:[#allocation5 + $0x480] sm:$0xff]
        %v379 = vld [vmem:[#allocation5 + $0x488] sm:$0xff]
        %v380 = vld [vmem:[#allocation5 + $0x490] sm:$0xff]
        %v381 = vld [vmem:[#allocation5 + $0x498] sm:$0xff]
        %v382 = vld [vmem:[#allocation5 + $0x4a0] sm:$0xff]
        %v383 = vld [vmem:[#allocation5 + $0x4a8] sm:$0xff]
        %v384 = vld [vmem:[#allocation5 + $0x4b0] sm:$0xff]
        %v385 = vld [vmem:[#allocation5 + $0x4b8] sm:$0xff]
        %v386 = vld [vmem:[#allocation5 + $0x4c0] sm:$0xff]
        %v387 = vld [vmem:[#allocation5 + $0x4c8] sm:$0xff]
        %v388 = vld [vmem:[#allocation5 + $0x4d0] sm:$0xff]
        %v389 = vld [vmem:[#allocation5 + $0x4d8] sm:$0xff]
        %v390 = vld [vmem:[#allocation5 + $0x4e0] sm:$0xff]
        %v391 = vld [vmem:[#allocation5 + $0x4e8] sm:$0xff]
        %v392 = vld [vmem:[#allocation5 + $0x4f0] sm:$0xff]
        %v393 = vld [vmem:[#allocation5 + $0x4f8] sm:$0xff]
        %v394 = vld [vmem:[#allocation5 + $0x500] sm:$0xff]
        %v395 = vld [vmem:[#allocation5 + $0x508] sm:$0xff]
        %v396 = vld [vmem:[#allocation5 + $0x510] sm:$0xff]
        %v397 = vld [vmem:[#allocation5 + $0x518] sm:$0xff]
        %v398 = vld [vmem:[#allocation5 + $0x520] sm:$0xff]
        %v399 = vld [vmem:[#allocation5 + $0x528] sm:$0xff]
        %v400 = vld [vmem:[#allocation5 + $0x530] sm:$0xff]
        %v401 = vld [vmem:[#allocation5 + $0x538] sm:$0xff]
        %v402 = vld [vmem:[#allocation5 + $0x540] sm:$0xff]
        %v403 = vld [vmem:[#allocation5 + $0x548] sm:$0xff]
        %v404 = vld [vmem:[#allocation5 + $0x550] sm:$0xff]
        %v405 = vld [vmem:[#allocation5 + $0x558] sm:$0xff]
        %v406 = vld [vmem:[#allocation5 + $0x560] sm:$0xff]
        %v407 = vld [vmem:[#allocation5 + $0x568] sm:$0xff]
        %v408 = vld [vmem:[#allocation5 + $0x570] sm:$0xff]
        %v409 = vld [vmem:[#allocation5 + $0x578] sm:$0xff]
        %v410 = vld [vmem:[#allocation5 + $0x580] sm:$0xff]
        %v411 = vld [vmem:[#allocation5 + $0x588] sm:$0xff]
        %v412 = vld [vmem:[#allocation5 + $0x590] sm:$0xff]
        %v413 = vld [vmem:[#allocation5 + $0x598] sm:$0xff]
        %v414 = vld [vmem:[#allocation5 + $0x5a0] sm:$0xff]
        %v415 = vld [vmem:[#allocation5 + $0x5a8] sm:$0xff]
        %v416 = vld [vmem:[#allocation5 + $0x5b0] sm:$0xff]
        %v417 = vld [vmem:[#allocation5 + $0x5b8] sm:$0xff]
        %v418 = vld [vmem:[#allocation5 + $0x5c0] sm:$0xff]
        %v419 = vld [vmem:[#allocation5 + $0x5c8] sm:$0xff]
        %v420 = vld [vmem:[#allocation5 + $0x5d0] sm:$0xff]
        %v421 = vld [vmem:[#allocation5 + $0x5d8] sm:$0xff]
        %v422 = vld [vmem:[#allocation5 + $0x5e0] sm:$0xff]
        %v423 = vld [vmem:[#allocation5 + $0x5e8] sm:$0xff]
        %v424 = vld [vmem:[#allocation5 + $0x5f0] sm:$0xff]
        %v425 = vld [vmem:[#allocation5 + $0x5f8] sm:$0xff]
        %v426 = vld [vmem:[#allocation5 + $0x600] sm:$0xff]
        %v427 = vld [vmem:[#allocation5 + $0x608] sm:$0xff]
        %v428 = vld [vmem:[#allocation5 + $0x610] sm:$0xff]
        %v429 = vld [vmem:[#allocation5 + $0x618] sm:$0xff]
        %v430 = vld [vmem:[#allocation5 + $0x620] sm:$0xff]
        %v431 = vld [vmem:[#allocation5 + $0x628] sm:$0xff]
        %v432 = vld [vmem:[#allocation5 + $0x630] sm:$0xff]
        %v433 = vld [vmem:[#allocation5 + $0x638] sm:$0xff]
        %v434 = vld [vmem:[#allocation5 + $0x640] sm:$0xff]
        %v435 = vld [vmem:[#allocation5 + $0x648] sm:$0xff]
        %v436 = vld [vmem:[#allocation5 + $0x650] sm:$0xff]
        %v437 = vld [vmem:[#allocation5 + $0x658] sm:$0xff]
        %v438 = vld [vmem:[#allocation5 + $0x660] sm:$0xff]
        %v439 = vld [vmem:[#allocation5 + $0x668] sm:$0xff]
        %v440 = vld [vmem:[#allocation5 + $0x670] sm:$0xff]
        %v441 = vld [vmem:[#allocation5 + $0x678] sm:$0xff]
        %v442 = vld [vmem:[#allocation5 + $0x680] sm:$0xff]
        %v443 = vld [vmem:[#allocation5 + $0x688] sm:$0xff]
        %v444 = vld [vmem:[#allocation5 + $0x690] sm:$0xff]
        %v445 = vld [vmem:[#allocation5 + $0x698] sm:$0xff]
        %v446 = vld [vmem:[#allocation5 + $0x6a0] sm:$0xff]
        %v447 = vld [vmem:[#allocation5 + $0x6a8] sm:$0xff]
        %v448 = vld [vmem:[#allocation5 + $0x6b0] sm:$0xff]
        %v449 = vld [vmem:[#allocation5 + $0x6b8] sm:$0xff]
        %v450 = vld [vmem:[#allocation5 + $0x6c0] sm:$0xff]
        %v451 = vld [vmem:[#allocation5 + $0x6c8] sm:$0xff]
        %v452 = vld [vmem:[#allocation5 + $0x6d0] sm:$0xff]
        %v453 = vld [vmem:[#allocation5 + $0x6d8] sm:$0xff]
        %v454 = vld [vmem:[#allocation5 + $0x6e0] sm:$0xff]
        %v455 = vld [vmem:[#allocation5 + $0x6e8] sm:$0xff]
        %v456 = vld [vmem:[#allocation5 + $0x6f0] sm:$0xff]
        %v457 = vld [vmem:[#allocation5 + $0x6f8] sm:$0xff]
        %v458 = vld [vmem:[#allocation5 + $0x700] sm:$0xff]
        %v459 = vld [vmem:[#allocation5 + $0x708] sm:$0xff]
        %v460 = vld [vmem:[#allocation5 + $0x710] sm:$0xff]
        %v461 = vld [vmem:[#allocation5 + $0x718] sm:$0xff]
        %v462 = vld [vmem:[#allocation5 + $0x720] sm:$0xff]
        %v463 = vld [vmem:[#allocation5 + $0x728] sm:$0xff]
        %v464 = vld [vmem:[#allocation5 + $0x730] sm:$0xff]
        %v465 = vld [vmem:[#allocation5 + $0x738] sm:$0xff]
        %v466 = vld [vmem:[#allocation5 + $0x740] sm:$0xff]
        %v467 = vld [vmem:[#allocation5 + $0x748] sm:$0xff]
        %v468 = vld [vmem:[#allocation5 + $0x750] sm:$0xff]
        %v469 = vld [vmem:[#allocation5 + $0x758] sm:$0xff]
        %v470 = vld [vmem:[#allocation5 + $0x760] sm:$0xff]
        %v471 = vld [vmem:[#allocation5 + $0x768] sm:$0xff]
        %v472 = vld [vmem:[#allocation5 + $0x770] sm:$0xff]
        %v473 = vld [vmem:[#allocation5 + $0x778] sm:$0xff]
        %v474 = vld [vmem:[#allocation5 + $0x780] sm:$0xff]
        %v475 = vld [vmem:[#allocation5 + $0x788] sm:$0xff]
        %v476 = vld [vmem:[#allocation5 + $0x790] sm:$0xff]
        %v477 = vld [vmem:[#allocation5 + $0x798] sm:$0xff]
        %v478 = vld [vmem:[#allocation5 + $0x7a0] sm:$0xff]
        %v479 = vld [vmem:[#allocation5 + $0x7a8] sm:$0xff]
        %v480 = vld [vmem:[#allocation5 + $0x7b0] sm:$0xff]
        %v481 = vld [vmem:[#allocation5 + $0x7b8] sm:$0xff]
        %v482 = vld [vmem:[#allocation5 + $0x7c0] sm:$0xff]
        %v483 = vld [vmem:[#allocation5 + $0x7c8] sm:$0xff]
        %v484 = vld [vmem:[#allocation5 + $0x7d0] sm:$0xff]
        %v485 = vld [vmem:[#allocation5 + $0x7d8] sm:$0xff]
        %v486 = vld [vmem:[#allocation5 + $0x7e0] sm:$0xff]
        %v487 = vld [vmem:[#allocation5 + $0x7e8] sm:$0xff]
        %v488 = vld [vmem:[#allocation5 + $0x7f0] sm:$0xff]
        %v489 = vld [vmem:[#allocation5 + $0x7f8] sm:$0xff]
        %v490 = vld [vmem:[#allocation5 + $0x800] sm:$0xff]
        %v491 = vld [vmem:[#allocation5 + $0x808] sm:$0xff]
        %v492 = vld [vmem:[#allocation5 + $0x810] sm:$0xff]
        %v493 = vld [vmem:[#allocation5 + $0x818] sm:$0xff]
        %v494 = vld [vmem:[#allocation5 + $0x820] sm:$0xff]
        %v495 = vld [vmem:[#allocation5 + $0x828] sm:$0xff]
        %v496 = vld [vmem:[#allocation5 + $0x830] sm:$0xff]
        %v497 = vld [vmem:[#allocation5 + $0x838] sm:$0xff]
        %v498 = vld [vmem:[#allocation5 + $0x840] sm:$0xff]
        %v499 = vld [vmem:[#allocation5 + $0x848] sm:$0xff]
        %v500 = vld [vmem:[#allocation5 + $0x850] sm:$0xff]
        %v501 = vld [vmem:[#allocation5 + $0x858] sm:$0xff]
        %v502 = vld [vmem:[#allocation5 + $0x860] sm:$0xff]
        %v503 = vld [vmem:[#allocation5 + $0x868] sm:$0xff]
        %v504 = vld [vmem:[#allocation5 + $0x870] sm:$0xff]
        %v505 = vld [vmem:[#allocation5 + $0x878] sm:$0xff]
        %v506 = vld [vmem:[#allocation5 + $0x880] sm:$0xff]
        %v507 = vld [vmem:[#allocation5 + $0x888] sm:$0xff]
        %v508 = vld [vmem:[#allocation5 + $0x890] sm:$0xff]
        %v509 = vld [vmem:[#allocation5 + $0x898] sm:$0xff]
        %v510 = vld [vmem:[#allocation5 + $0x8a0] sm:$0xff]
        %v511 = vld [vmem:[#allocation5 + $0x8a8] sm:$0xff]
        %v512 = vld [vmem:[#allocation5 + $0x8b0] sm:$0xff]
        %v513 = vld [vmem:[#allocation5 + $0x8b8] sm:$0xff]
        %v514 = vld [vmem:[#allocation5 + $0x8c0] sm:$0xff]
        %v515 = vld [vmem:[#allocation5 + $0x8c8] sm:$0xff]
        %v516 = vld [vmem:[#allocation5 + $0x8d0] sm:$0xff]
        %v517 = vld [vmem:[#allocation5 + $0x8d8] sm:$0xff]
        %v518 = vld [vmem:[#allocation5 + $0x8e0] sm:$0xff]
        %v519 = vld [vmem:[#allocation5 + $0x8e8] sm:$0xff]
        %v520 = vld [vmem:[#allocation5 + $0x8f0] sm:$0xff]
        %v521 = vld [vmem:[#allocation5 + $0x8f8] sm:$0xff]
        %v522 = vld [vmem:[#allocation5 + $0x900] sm:$0xff]
        %v523 = vld [vmem:[#allocation5 + $0x908] sm:$0xff]
        %v524 = vld [vmem:[#allocation5 + $0x910] sm:$0xff]
        %v525 = vld [vmem:[#allocation5 + $0x918] sm:$0xff]
        %v526 = vld [vmem:[#allocation5 + $0x920] sm:$0xff]
        %v527 = vld [vmem:[#allocation5 + $0x928] sm:$0xff]
        %v528 = vld [vmem:[#allocation5 + $0x930] sm:$0xff]
        %v529 = vld [vmem:[#allocation5 + $0x938] sm:$0xff]
        %v530 = vld [vmem:[#allocation5 + $0x940] sm:$0xff]
        %v531 = vld [vmem:[#allocation5 + $0x948] sm:$0xff]
        %v532 = vld [vmem:[#allocation5 + $0x950] sm:$0xff]
        %v533 = vld [vmem:[#allocation5 + $0x958] sm:$0xff]
        %v534 = vld [vmem:[#allocation5 + $0x960] sm:$0xff]
        %v535 = vld [vmem:[#allocation5 + $0x968] sm:$0xff]
        %v536 = vld [vmem:[#allocation5 + $0x970] sm:$0xff]
        %v537 = vld [vmem:[#allocation5 + $0x978] sm:$0xff]
        %v538 = vld [vmem:[#allocation5 + $0x980] sm:$0xff]
        %v539 = vld [vmem:[#allocation5 + $0x988] sm:$0xff]
        %v540 = vld [vmem:[#allocation5 + $0x990] sm:$0xff]
        %v541 = vld [vmem:[#allocation5 + $0x998] sm:$0xff]
        %v542 = vld [vmem:[#allocation5 + $0x9a0] sm:$0xff]
        %v543 = vld [vmem:[#allocation5 + $0x9a8] sm:$0xff]
        %v544 = vld [vmem:[#allocation5 + $0x9b0] sm:$0xff]
        %v545 = vld [vmem:[#allocation5 + $0x9b8] sm:$0xff]
        %v546 = vld [vmem:[#allocation5 + $0x9c0] sm:$0xff]
        %v547 = vld [vmem:[#allocation5 + $0x9c8] sm:$0xff]
        %v548 = vld [vmem:[#allocation5 + $0x9d0] sm:$0xff]
        %v549 = vld [vmem:[#allocation5 + $0x9d8] sm:$0xff]
        %v550 = vld [vmem:[#allocation5 + $0x9e0] sm:$0xff]
        %v551 = vld [vmem:[#allocation5 + $0x9e8] sm:$0xff]
        %v552 = vld [vmem:[#allocation5 + $0x9f0] sm:$0xff]
        %v553 = vld [vmem:[#allocation5 + $0x9f8] sm:$0xff]
        %555 = vst [vmem:[#allocation1] ss:$2 sm:$0xff] %v233
        %v556 = vld.sshfl [vmem:[#allocation1] sm:$0xff pattern:$0x75316420]
        %v557 = vld.sshfl [vmem:[#allocation1 + $0x8] sm:$0xff pattern:$0x75316420]
        %560 = vmatpush.msra.mxu0 %v384
        %561 = vmatpush.msra.mxu0 %v374
        %562 = vmatpush.msra.mxu0 %v364
        %563 = vmatpush.msra.mxu0 %v354
        %564 = vmatpush.msra.mxu0 %v344
        %565 = vmatpush.msra.mxu0 %v334
        %566 = vmatpush.msra.mxu0 %v324
        %567 = vmatpush.msra.mxu0 %v314
        %568 = vmatpush.msra.mxu0 %v304
        %569 = vmatpush.msra.mxu0 %v294
        %570 = vmatpush.msra.mxu0 %v284
        %571 = vmatpush.msra.mxu0 %v274
        %572 = vmatpush.msra.mxu0 %v264
        %573 = vmatpush.msra.mxu0 %v254
        %574 = vmatpush.msra.mxu0 %v244
        %575 = vmatpush.msra.mxu0 %v234
        %576 = vmatmul.f32.gmra.mxu0 %v556
        %v577 = vpop.f32.mrf.mxu0
        %v578 = vadd.f32 0.0, %v577
        %579 = vdwg.mxu0
        %580 = vmatpush.msra.mxu0 %v544
        %581 = vmatpush.msra.mxu0 %v534
        %582 = vmatpush.msra.mxu0 %v524
        %583 = vmatpush.msra.mxu0 %v514
        %584 = vmatpush.msra.mxu0 %v504
        %585 = vmatpush.msra.mxu0 %v494
        %586 = vmatpush.msra.mxu0 %v484
        %587 = vmatpush.msra.mxu0 %v474
        %588 = vmatpush.msra.mxu0 %v464
        %589 = vmatpush.msra.mxu0 %v454
        %590 = vmatpush.msra.mxu0 %v444
        %591 = vmatpush.msra.mxu0 %v434
        %592 = vmatpush.msra.mxu0 %v424
        %593 = vmatpush.msra.mxu0 %v414
        %594 = vmatpush.msra.mxu0 %v404
        %595 = vmatpush.msra.mxu0 %v394
        %596 = vmatmul.f32.gmra.mxu0 %v557
        %v597 = vpop.f32.mrf.mxu0
        %v598 = vadd.f32 %v578, %v597
        %599 = vdwg.mxu0
        %600 = vmatpush.msra.mxu0 %v385
        %601 = vmatpush.msra.mxu0 %v375
        %602 = vmatpush.msra.mxu0 %v365
        %603 = vmatpush.msra.mxu0 %v355
        %604 = vmatpush.msra.mxu0 %v345
        %605 = vmatpush.msra.mxu0 %v335
        %606 = vmatpush.msra.mxu0 %v325
        %607 = vmatpush.msra.mxu0 %v315
        %608 = vmatpush.msra.mxu0 %v305
        %609 = vmatpush.msra.mxu0 %v295
        %610 = vmatpush.msra.mxu0 %v285
        %611 = vmatpush.msra.mxu0 %v275
        %612 = vmatpush.msra.mxu0 %v265
        %613 = vmatpush.msra.mxu0 %v255
        %614 = vmatpush.msra.mxu0 %v245
        %615 = vmatpush.msra.mxu0 %v235
        %616 = vmatmul.f32.gmra.mxu0 %v556
        %v617 = vpop.f32.mrf.mxu0
        %v618 = vadd.f32 0.0, %v617
        %619 = vdwg.mxu0
        %620 = vmatpush.msra.mxu0 %v545
        %621 = vmatpush.msra.mxu0 %v535
        %622 = vmatpush.msra.mxu0 %v525
        %623 = vmatpush.msra.mxu0 %v515
        %624 = vmatpush.msra.mxu0 %v505
        %625 = vmatpush.msra.mxu0 %v495
        %626 = vmatpush.msra.mxu0 %v485
        %627 = vmatpush.msra.mxu0 %v475
        %628 = vmatpush.msra.mxu0 %v465
        %629 = vmatpush.msra.mxu0 %v455
        %630 = vmatpush.msra.mxu0 %v445
        %631 = vmatpush.msra.mxu0 %v435
        %632 = vmatpush.msra.mxu0 %v425
        %633 = vmatpush.msra.mxu0 %v415
        %634 = vmatpush.msra.mxu0 %v405
        %635 = vmatpush.msra.mxu0 %v395
        %636 = vmatmul.f32.gmra.mxu0 %v557
        %v637 = vpop.f32.mrf.mxu0
        %v638 = vadd.f32 %v618, %v637
        %639 = vdwg.mxu0
        %640 = vmatpush.msra.mxu0 %v386
        %641 = vmatpush.msra.mxu0 %v376
        %642 = vmatpush.msra.mxu0 %v366
        %643 = vmatpush.msra.mxu0 %v356
        %644 = vmatpush.msra.mxu0 %v346
        %645 = vmatpush.msra.mxu0 %v336
        %646 = vmatpush.msra.mxu0 %v326
        %647 = vmatpush.msra.mxu0 %v316
        %648 = vmatpush.msra.mxu0 %v306
        %649 = vmatpush.msra.mxu0 %v296
        %650 = vmatpush.msra.mxu0 %v286
        %651 = vmatpush.msra.mxu0 %v276
        %652 = vmatpush.msra.mxu0 %v266
        %653 = vmatpush.msra.mxu0 %v256
        %654 = vmatpush.msra.mxu0 %v246
        %655 = vmatpush.msra.mxu0 %v236
        %656 = vmatmul.f32.gmra.mxu0 %v556
        %v657 = vpop.f32.mrf.mxu0
        %v658 = vadd.f32 0.0, %v657
        %659 = vdwg.mxu0
        %660 = vmatpush.msra.mxu0 %v546
        %661 = vmatpush.msra.mxu0 %v536
        %662 = vmatpush.msra.mxu0 %v526
        %663 = vmatpush.msra.mxu0 %v516
        %664 = vmatpush.msra.mxu0 %v506
        %665 = vmatpush.msra.mxu0 %v496
        %666 = vmatpush.msra.mxu0 %v486
        %667 = vmatpush.msra.mxu0 %v476
        %668 = vmatpush.msra.mxu0 %v466
        %669 = vmatpush.msra.mxu0 %v456
        %670 = vmatpush.msra.mxu0 %v446
        %671 = vmatpush.msra.mxu0 %v436
        %672 = vmatpush.msra.mxu0 %v426
        %673 = vmatpush.msra.mxu0 %v416
        %674 = vmatpush.msra.mxu0 %v406
        %675 = vmatpush.msra.mxu0 %v396
        %676 = vmatmul.f32.gmra.mxu0 %v557
        %v677 = vpop.f32.mrf.mxu0
        %v678 = vadd.f32 %v658, %v677
        %679 = vdwg.mxu0
        %680 = vmatpush.msra.mxu0 %v387
        %681 = vmatpush.msra.mxu0 %v377
        %682 = vmatpush.msra.mxu0 %v367
        %683 = vmatpush.msra.mxu0 %v357
        %684 = vmatpush.msra.mxu0 %v347
        %685 = vmatpush.msra.mxu0 %v337
        %686 = vmatpush.msra.mxu0 %v327
        %687 = vmatpush.msra.mxu0 %v317
        %688 = vmatpush.msra.mxu0 %v307
        %689 = vmatpush.msra.mxu0 %v297
        %690 = vmatpush.msra.mxu0 %v287
        %691 = vmatpush.msra.mxu0 %v277
        %692 = vmatpush.msra.mxu0 %v267
        %693 = vmatpush.msra.mxu0 %v257
        %694 = vmatpush.msra.mxu0 %v247
        %695 = vmatpush.msra.mxu0 %v237
        %696 = vmatmul.f32.gmra.mxu0 %v556
        %v697 = vpop.f32.mrf.mxu0
        %v698 = vadd.f32 0.0, %v697
        %699 = vdwg.mxu0
        %700 = vmatpush.msra.mxu0 %v547
        %701 = vmatpush.msra.mxu0 %v537
        %702 = vmatpush.msra.mxu0 %v527
        %703 = vmatpush.msra.mxu0 %v517
        %704 = vmatpush.msra.mxu0 %v507
        %705 = vmatpush.msra.mxu0 %v497
        %706 = vmatpush.msra.mxu0 %v487
        %707 = vmatpush.msra.mxu0 %v477
        %708 = vmatpush.msra.mxu0 %v467
        %709 = vmatpush.msra.mxu0 %v457
        %710 = vmatpush.msra.mxu0 %v447
        %711 = vmatpush.msra.mxu0 %v437
        %712 = vmatpush.msra.mxu0 %v427
        %713 = vmatpush.msra.mxu0 %v417
        %714 = vmatpush.msra.mxu0 %v407
        %715 = vmatpush.msra.mxu0 %v397
        %716 = vmatmul.f32.gmra.mxu0 %v557
        %v717 = vpop.f32.mrf.mxu0
        %v718 = vadd.f32 %v698, %v717
        %719 = vdwg.mxu0
        %720 = vmatpush.msra.mxu0 %v388
        %721 = vmatpush.msra.mxu0 %v378
        %722 = vmatpush.msra.mxu0 %v368
        %723 = vmatpush.msra.mxu0 %v358
        %724 = vmatpush.msra.mxu0 %v348
        %725 = vmatpush.msra.mxu0 %v338
        %726 = vmatpush.msra.mxu0 %v328
        %727 = vmatpush.msra.mxu0 %v318
        %728 = vmatpush.msra.mxu0 %v308
        %729 = vmatpush.msra.mxu0 %v298
        %730 = vmatpush.msra.mxu0 %v288
        %731 = vmatpush.msra.mxu0 %v278
        %732 = vmatpush.msra.mxu0 %v268
        %733 = vmatpush.msra.mxu0 %v258
        %734 = vmatpush.msra.mxu0 %v248
        %735 = vmatpush.msra.mxu0 %v238
        %736 = vmatmul.f32.gmra.mxu0 %v556
        %v737 = vpop.f32.mrf.mxu0
        %v738 = vadd.f32 0.0, %v737
        %739 = vdwg.mxu0
        %740 = vmatpush.msra.mxu0 %v548
        %741 = vmatpush.msra.mxu0 %v538
        %742 = vmatpush.msra.mxu0 %v528
        %743 = vmatpush.msra.mxu0 %v518
        %744 = vmatpush.msra.mxu0 %v508
        %745 = vmatpush.msra.mxu0 %v498
        %746 = vmatpush.msra.mxu0 %v488
        %747 = vmatpush.msra.mxu0 %v478
        %748 = vmatpush.msra.mxu0 %v468
        %749 = vmatpush.msra.mxu0 %v458
        %750 = vmatpush.msra.mxu0 %v448
        %751 = vmatpush.msra.mxu0 %v438
        %752 = vmatpush.msra.mxu0 %v428
        %753 = vmatpush.msra.mxu0 %v418
        %754 = vmatpush.msra.mxu0 %v408
        %755 = vmatpush.msra.mxu0 %v398
        %756 = vmatmul.f32.gmra.mxu0 %v557
        %v757 = vpop.f32.mrf.mxu0
        %v758 = vadd.f32 %v738, %v757
        %759 = vdwg.mxu0
        %760 = vmatpush.msra.mxu0 %v389
        %761 = vmatpush.msra.mxu0 %v379
        %762 = vmatpush.msra.mxu0 %v369
        %763 = vmatpush.msra.mxu0 %v359
        %764 = vmatpush.msra.mxu0 %v349
        %765 = vmatpush.msra.mxu0 %v339
        %766 = vmatpush.msra.mxu0 %v329
        %767 = vmatpush.msra.mxu0 %v319
        %768 = vmatpush.msra.mxu0 %v309
        %769 = vmatpush.msra.mxu0 %v299
        %770 = vmatpush.msra.mxu0 %v289
        %771 = vmatpush.msra.mxu0 %v279
        %772 = vmatpush.msra.mxu0 %v269
        %773 = vmatpush.msra.mxu0 %v259
        %774 = vmatpush.msra.mxu0 %v249
        %775 = vmatpush.msra.mxu0 %v239
        %776 = vmatmul.f32.gmra.mxu0 %v556
        %v777 = vpop.f32.mrf.mxu0
        %v778 = vadd.f32 0.0, %v777
        %779 = vdwg.mxu0
        %780 = vmatpush.msra.mxu0 %v549
        %781 = vmatpush.msra.mxu0 %v539
        %782 = vmatpush.msra.mxu0 %v529
        %783 = vmatpush.msra.mxu0 %v519
        %784 = vmatpush.msra.mxu0 %v509
        %785 = vmatpush.msra.mxu0 %v499
        %786 = vmatpush.msra.mxu0 %v489
        %787 = vmatpush.msra.mxu0 %v479
        %788 = vmatpush.msra.mxu0 %v469
        %789 = vmatpush.msra.mxu0 %v459
        %790 = vmatpush.msra.mxu0 %v449
        %791 = vmatpush.msra.mxu0 %v439
        %792 = vmatpush.msra.mxu0 %v429
        %793 = vmatpush.msra.mxu0 %v419
        %794 = vmatpush.msra.mxu0 %v409
        %795 = vmatpush.msra.mxu0 %v399
        %796 = vmatmul.f32.gmra.mxu0 %v557
        %v797 = vpop.f32.mrf.mxu0
        %v798 = vadd.f32 %v778, %v797
        %799 = vdwg.mxu0
        %800 = vmatpush.msra.mxu0 %v390
        %801 = vmatpush.msra.mxu0 %v380
        %802 = vmatpush.msra.mxu0 %v370
        %803 = vmatpush.msra.mxu0 %v360
        %804 = vmatpush.msra.mxu0 %v350
        %805 = vmatpush.msra.mxu0 %v340
        %806 = vmatpush.msra.mxu0 %v330
        %807 = vmatpush.msra.mxu0 %v320
        %808 = vmatpush.msra.mxu0 %v310
        %809 = vmatpush.msra.mxu0 %v300
        %810 = vmatpush.msra.mxu0 %v290
        %811 = vmatpush.msra.mxu0 %v280
        %812 = vmatpush.msra.mxu0 %v270
        %813 = vmatpush.msra.mxu0 %v260
        %814 = vmatpush.msra.mxu0 %v250
        %815 = vmatpush.msra.mxu0 %v240
        %816 = vmatmul.f32.gmra.mxu0 %v556
        %v817 = vpop.f32.mrf.mxu0
        %v818 = vadd.f32 0.0, %v817
        %819 = vdwg.mxu0
        %820 = vmatpush.msra.mxu0 %v550
        %821 = vmatpush.msra.mxu0 %v540
        %822 = vmatpush.msra.mxu0 %v530
        %823 = vmatpush.msra.mxu0 %v520
        %824 = vmatpush.msra.mxu0 %v510
        %825 = vmatpush.msra.mxu0 %v500
        %826 = vmatpush.msra.mxu0 %v490
        %827 = vmatpush.msra.mxu0 %v480
        %828 = vmatpush.msra.mxu0 %v470
        %829 = vmatpush.msra.mxu0 %v460
        %830 = vmatpush.msra.mxu0 %v450
        %831 = vmatpush.msra.mxu0 %v440
        %832 = vmatpush.msra.mxu0 %v430
        %833 = vmatpush.msra.mxu0 %v420
        %834 = vmatpush.msra.mxu0 %v410
        %835 = vmatpush.msra.mxu0 %v400
        %836 = vmatmul.f32.gmra.mxu0 %v557
        %v837 = vpop.f32.mrf.mxu0
        %v838 = vadd.f32 %v818, %v837
        %839 = vdwg.mxu0
        %840 = vmatpush.msra.mxu0 %v391
        %841 = vmatpush.msra.mxu0 %v381
        %842 = vmatpush.msra.mxu0 %v371
        %843 = vmatpush.msra.mxu0 %v361
        %844 = vmatpush.msra.mxu0 %v351
        %845 = vmatpush.msra.mxu0 %v341
        %846 = vmatpush.msra.mxu0 %v331
        %847 = vmatpush.msra.mxu0 %v321
        %848 = vmatpush.msra.mxu0 %v311
        %849 = vmatpush.msra.mxu0 %v301
        %850 = vmatpush.msra.mxu0 %v291
        %851 = vmatpush.msra.mxu0 %v281
        %852 = vmatpush.msra.mxu0 %v271
        %853 = vmatpush.msra.mxu0 %v261
        %854 = vmatpush.msra.mxu0 %v251
        %855 = vmatpush.msra.mxu0 %v241
        %856 = vmatmul.f32.gmra.mxu0 %v556
        %v857 = vpop.f32.mrf.mxu0
        %v858 = vadd.f32 0.0, %v857
        %859 = vdwg.mxu0
        %860 = vmatpush.msra.mxu0 %v551
        %861 = vmatpush.msra.mxu0 %v541
        %862 = vmatpush.msra.mxu0 %v531
        %863 = vmatpush.msra.mxu0 %v521
        %864 = vmatpush.msra.mxu0 %v511
        %865 = vmatpush.msra.mxu0 %v501
        %866 = vmatpush.msra.mxu0 %v491
        %867 = vmatpush.msra.mxu0 %v481
        %868 = vmatpush.msra.mxu0 %v471
        %869 = vmatpush.msra.mxu0 %v461
        %870 = vmatpush.msra.mxu0 %v451
        %871 = vmatpush.msra.mxu0 %v441
        %872 = vmatpush.msra.mxu0 %v431
        %873 = vmatpush.msra.mxu0 %v421
        %874 = vmatpush.msra.mxu0 %v411
        %875 = vmatpush.msra.mxu0 %v401
        %876 = vmatmul.f32.gmra.mxu0 %v557
        %v877 = vpop.f32.mrf.mxu0
        %v878 = vadd.f32 %v858, %v877
        %879 = vdwg.mxu0
        %880 = vmatpush.msra.mxu0 %v392
        %881 = vmatpush.msra.mxu0 %v382
        %882 = vmatpush.msra.mxu0 %v372
        %883 = vmatpush.msra.mxu0 %v362
        %884 = vmatpush.msra.mxu0 %v352
        %885 = vmatpush.msra.mxu0 %v342
        %886 = vmatpush.msra.mxu0 %v332
        %887 = vmatpush.msra.mxu0 %v322
        %888 = vmatpush.msra.mxu0 %v312
        %889 = vmatpush.msra.mxu0 %v302
        %890 = vmatpush.msra.mxu0 %v292
        %891 = vmatpush.msra.mxu0 %v282
        %892 = vmatpush.msra.mxu0 %v272
        %893 = vmatpush.msra.mxu0 %v262
        %894 = vmatpush.msra.mxu0 %v252
        %895 = vmatpush.msra.mxu0 %v242
        %896 = vmatmul.f32.gmra.mxu0 %v556
        %v897 = vpop.f32.mrf.mxu0
        %v898 = vadd.f32 0.0, %v897
        %899 = vdwg.mxu0
        %900 = vmatpush.msra.mxu0 %v552
        %901 = vmatpush.msra.mxu0 %v542
        %902 = vmatpush.msra.mxu0 %v532
        %903 = vmatpush.msra.mxu0 %v522
        %904 = vmatpush.msra.mxu0 %v512
        %905 = vmatpush.msra.mxu0 %v502
        %906 = vmatpush.msra.mxu0 %v492
        %907 = vmatpush.msra.mxu0 %v482
        %908 = vmatpush.msra.mxu0 %v472
        %909 = vmatpush.msra.mxu0 %v462
        %910 = vmatpush.msra.mxu0 %v452
        %911 = vmatpush.msra.mxu0 %v442
        %912 = vmatpush.msra.mxu0 %v432
        %913 = vmatpush.msra.mxu0 %v422
        %914 = vmatpush.msra.mxu0 %v412
        %915 = vmatpush.msra.mxu0 %v402
        %916 = vmatmul.f32.gmra.mxu0 %v557
        %v917 = vpop.f32.mrf.mxu0
        %v918 = vadd.f32 %v898, %v917
        %919 = vdwg.mxu0
        %920 = vmatpush.msra.mxu0 %v393
        %921 = vmatpush.msra.mxu0 %v383
        %922 = vmatpush.msra.mxu0 %v373
        %923 = vmatpush.msra.mxu0 %v363
        %924 = vmatpush.msra.mxu0 %v353
        %925 = vmatpush.msra.mxu0 %v343
        %926 = vmatpush.msra.mxu0 %v333
        %927 = vmatpush.msra.mxu0 %v323
        %928 = vmatpush.msra.mxu0 %v313
        %929 = vmatpush.msra.mxu0 %v303
        %930 = vmatpush.msra.mxu0 %v293
        %931 = vmatpush.msra.mxu0 %v283
        %932 = vmatpush.msra.mxu0 %v273
        %933 = vmatpush.msra.mxu0 %v263
        %934 = vmatpush.msra.mxu0 %v253
        %935 = vmatpush.msra.mxu0 %v243
        %936 = vmatmul.f32.gmra.mxu0 %v556
        %v937 = vpop.f32.mrf.mxu0
        %v938 = vadd.f32 0.0, %v937
        %939 = vdwg.mxu0
        %940 = vmatpush.msra.mxu0 %v553
        %941 = vmatpush.msra.mxu0 %v543
        %942 = vmatpush.msra.mxu0 %v533
        %943 = vmatpush.msra.mxu0 %v523
        %944 = vmatpush.msra.mxu0 %v513
        %945 = vmatpush.msra.mxu0 %v503
        %946 = vmatpush.msra.mxu0 %v493
        %947 = vmatpush.msra.mxu0 %v483
        %948 = vmatpush.msra.mxu0 %v473
        %949 = vmatpush.msra.mxu0 %v463
        %950 = vmatpush.msra.mxu0 %v453
        %951 = vmatpush.msra.mxu0 %v443
        %952 = vmatpush.msra.mxu0 %v433
        %953 = vmatpush.msra.mxu0 %v423
        %954 = vmatpush.msra.mxu0 %v413
        %955 = vmatpush.msra.mxu0 %v403
        %956 = vmatmul.f32.gmra.mxu0 %v557
        %v957 = vpop.f32.mrf.mxu0
        %v958 = vadd.f32 %v938, %v957
        %959 = vdwg.mxu0
        %v960 = vld [vmem:[%s2] sm:$0xff]
        %s961 = scalar_lea.vmem %s2, 8
        %v962 = vld [vmem:[%s961] sm:$0xff]
        %972 = vrot.lane.b32.xlu0 %v598, 127
        %v973 = vpop.permute.xlu0 %972
        %974 = vrot.lane.b32.xlu0 %v638, 127
        %v975 = vpop.permute.xlu0 %974
        %976 = vrot.lane.b32.xlu0 %v678, 127
        %v977 = vpop.permute.xlu0 %976
        %978 = vrot.lane.b32.xlu0 %v718, 127
        %v979 = vpop.permute.xlu0 %978
        %980 = vrot.lane.b32.xlu0 %v758, 127
        %v981 = vpop.permute.xlu0 %980
        %982 = vrot.lane.b32.xlu0 %v798, 127
        %v983 = vpop.permute.xlu0 %982
        %984 = vrot.lane.b32.xlu0 %v838, 127
        %v985 = vpop.permute.xlu0 %984
        %986 = vrot.lane.b32.xlu0 %v878, 127
        %v987 = vpop.permute.xlu0 %986
        %988 = vrot.lane.b32.xlu0 %v918, 127
        %v989 = vpop.permute.xlu0 %988
        %vm990 = vcmask 1039360
        %v991 = vsel %vm990, %v973, %v975
        %v992 = vsel %vm990, %v975, %v977
        %v993 = vsel %vm990, %v977, %v979
        %v994 = vsel %vm990, %v979, %v981
        %v995 = vsel %vm990, %v981, %v983
        %v996 = vsel %vm990, %v983, %v985
        %v997 = vsel %vm990, %v985, %v987
        %v998 = vsel %vm990, %v987, %v989
        %vm999 = vcmask 31744
        %v1001 = vsel %vm999, %v962, 0
        %vm1003 = vcmask 1043456
        %v1004 = vsel %vm1003, %v991, 0
        %v1006 = vsel %vm1003, %v992, 0
        %v1008 = vsel %vm1003, %v993, 0
        %v1010 = vsel %vm1003, %v994, 0
        %v1012 = vsel %vm1003, %v995, 0
        %v1014 = vsel %vm1003, %v996, 0
        %v1016 = vsel %vm1003, %v997, 0
        %v1018 = vsel %vm1003, %v998, 0
        %v1020 = vsel %vm1003, %v989, 0
        %1022 = vmatpush.msra.mxu0 0.0
        %1023 = vmatpush.msra.mxu0 0.0
        %1024 = vmatpush.msra.mxu0 0.0
        %1025 = vmatpush.msra.mxu0 0.0
        %1026 = vmatpush.msra.mxu0 0.0
        %1027 = vmatpush.msra.mxu0 0.0
        %1028 = vmatpush.msra.mxu0 0.0
        %1029 = vmatpush.msra.mxu0 0.0
        %1030 = vmatpush.msra.mxu0 0.0
        %1031 = vmatpush.msra.mxu0 0.0
        %1032 = vmatpush.msra.mxu0 0.0
        %1033 = vmatpush.msra.mxu0 0.0
        %1034 = vmatpush.msra.mxu0 0.0
        %1035 = vmatpush.msra.mxu0 0.0
        %1036 = vmatpush.msra.mxu0 0.0
        %1037 = vmatpush.msra.mxu0 %v1004
        %1038 = vmatmul.f32.gmra.mxu0 %v1001
        %v1039 = vpop.f32.mrf.mxu0
        %v1040 = vadd.f32 0.0, %v1039
        %1041 = vdwg.mxu0
        %1042 = vmatpush.msra.mxu0 0.0
        %1043 = vmatpush.msra.mxu0 0.0
        %1044 = vmatpush.msra.mxu0 0.0
        %1045 = vmatpush.msra.mxu0 0.0
        %1046 = vmatpush.msra.mxu0 0.0
        %1047 = vmatpush.msra.mxu0 0.0
        %1048 = vmatpush.msra.mxu0 0.0
        %1049 = vmatpush.msra.mxu0 0.0
        %1050 = vmatpush.msra.mxu0 0.0
        %1051 = vmatpush.msra.mxu0 0.0
        %1052 = vmatpush.msra.mxu0 0.0
        %1053 = vmatpush.msra.mxu0 0.0
        %1054 = vmatpush.msra.mxu0 0.0
        %1055 = vmatpush.msra.mxu0 0.0
        %1056 = vmatpush.msra.mxu0 0.0
        %1057 = vmatpush.msra.mxu0 %v1006
        %1058 = vmatmul.f32.gmra.mxu0 %v1001
        %v1059 = vpop.f32.mrf.mxu0
        %v1060 = vadd.f32 0.0, %v1059
        %1061 = vdwg.mxu0
        %1062 = vmatpush.msra.mxu0 0.0
        %1063 = vmatpush.msra.mxu0 0.0
        %1064 = vmatpush.msra.mxu0 0.0
        %1065 = vmatpush.msra.mxu0 0.0
        %1066 = vmatpush.msra.mxu0 0.0
        %1067 = vmatpush.msra.mxu0 0.0
        %1068 = vmatpush.msra.mxu0 0.0
        %1069 = vmatpush.msra.mxu0 0.0
        %1070 = vmatpush.msra.mxu0 0.0
        %1071 = vmatpush.msra.mxu0 0.0
        %1072 = vmatpush.msra.mxu0 0.0
        %1073 = vmatpush.msra.mxu0 0.0
        %1074 = vmatpush.msra.mxu0 0.0
        %1075 = vmatpush.msra.mxu0 0.0
        %1076 = vmatpush.msra.mxu0 0.0
        %1077 = vmatpush.msra.mxu0 %v1008
        %1078 = vmatmul.f32.gmra.mxu0 %v1001
        %v1079 = vpop.f32.mrf.mxu0
        %v1080 = vadd.f32 0.0, %v1079
        %1081 = vdwg.mxu0
        %1082 = vmatpush.msra.mxu0 0.0
        %1083 = vmatpush.msra.mxu0 0.0
        %1084 = vmatpush.msra.mxu0 0.0
        %1085 = vmatpush.msra.mxu0 0.0
        %1086 = vmatpush.msra.mxu0 0.0
        %1087 = vmatpush.msra.mxu0 0.0
        %1088 = vmatpush.msra.mxu0 0.0
        %1089 = vmatpush.msra.mxu0 0.0
        %1090 = vmatpush.msra.mxu0 0.0
        %1091 = vmatpush.msra.mxu0 0.0
        %1092 = vmatpush.msra.mxu0 0.0
        %1093 = vmatpush.msra.mxu0 0.0
        %1094 = vmatpush.msra.mxu0 0.0
        %1095 = vmatpush.msra.mxu0 0.0
        %1096 = vmatpush.msra.mxu0 0.0
        %1097 = vmatpush.msra.mxu0 %v1010
        %1098 = vmatmul.f32.gmra.mxu0 %v1001
        %v1099 = vpop.f32.mrf.mxu0
        %v1100 = vadd.f32 0.0, %v1099
        %1101 = vdwg.mxu0
        %1102 = vmatpush.msra.mxu0 0.0
        %1103 = vmatpush.msra.mxu0 0.0
        %1104 = vmatpush.msra.mxu0 0.0
        %1105 = vmatpush.msra.mxu0 0.0
        %1106 = vmatpush.msra.mxu0 0.0
        %1107 = vmatpush.msra.mxu0 0.0
        %1108 = vmatpush.msra.mxu0 0.0
        %1109 = vmatpush.msra.mxu0 0.0
        %1110 = vmatpush.msra.mxu0 0.0
        %1111 = vmatpush.msra.mxu0 0.0
        %1112 = vmatpush.msra.mxu0 0.0
        %1113 = vmatpush.msra.mxu0 0.0
        %1114 = vmatpush.msra.mxu0 0.0
        %1115 = vmatpush.msra.mxu0 0.0
        %1116 = vmatpush.msra.mxu0 0.0
        %1117 = vmatpush.msra.mxu0 %v1012
        %1118 = vmatmul.f32.gmra.mxu0 %v1001
        %v1119 = vpop.f32.mrf.mxu0
        %v1120 = vadd.f32 0.0, %v1119
        %1121 = vdwg.mxu0
        %1122 = vmatpush.msra.mxu0 0.0
        %1123 = vmatpush.msra.mxu0 0.0
        %1124 = vmatpush.msra.mxu0 0.0
        %1125 = vmatpush.msra.mxu0 0.0
        %1126 = vmatpush.msra.mxu0 0.0
        %1127 = vmatpush.msra.mxu0 0.0
        %1128 = vmatpush.msra.mxu0 0.0
        %1129 = vmatpush.msra.mxu0 0.0
        %1130 = vmatpush.msra.mxu0 0.0
        %1131 = vmatpush.msra.mxu0 0.0
        %1132 = vmatpush.msra.mxu0 0.0
        %1133 = vmatpush.msra.mxu0 0.0
        %1134 = vmatpush.msra.mxu0 0.0
        %1135 = vmatpush.msra.mxu0 0.0
        %1136 = vmatpush.msra.mxu0 0.0
        %1137 = vmatpush.msra.mxu0 %v1014
        %1138 = vmatmul.f32.gmra.mxu0 %v1001
        %v1139 = vpop.f32.mrf.mxu0
        %v1140 = vadd.f32 0.0, %v1139
        %1141 = vdwg.mxu0
        %1142 = vmatpush.msra.mxu0 0.0
        %1143 = vmatpush.msra.mxu0 0.0
        %1144 = vmatpush.msra.mxu0 0.0
        %1145 = vmatpush.msra.mxu0 0.0
        %1146 = vmatpush.msra.mxu0 0.0
        %1147 = vmatpush.msra.mxu0 0.0
        %1148 = vmatpush.msra.mxu0 0.0
        %1149 = vmatpush.msra.mxu0 0.0
        %1150 = vmatpush.msra.mxu0 0.0
        %1151 = vmatpush.msra.mxu0 0.0
        %1152 = vmatpush.msra.mxu0 0.0
        %1153 = vmatpush.msra.mxu0 0.0
        %1154 = vmatpush.msra.mxu0 0.0
        %1155 = vmatpush.msra.mxu0 0.0
        %1156 = vmatpush.msra.mxu0 0.0
        %1157 = vmatpush.msra.mxu0 %v1016
        %1158 = vmatmul.f32.gmra.mxu0 %v1001
        %v1159 = vpop.f32.mrf.mxu0
        %v1160 = vadd.f32 0.0, %v1159
        %1161 = vdwg.mxu0
        %1162 = vmatpush.msra.mxu0 0.0
        %1163 = vmatpush.msra.mxu0 0.0
        %1164 = vmatpush.msra.mxu0 0.0
        %1165 = vmatpush.msra.mxu0 0.0
        %1166 = vmatpush.msra.mxu0 0.0
        %1167 = vmatpush.msra.mxu0 0.0
        %1168 = vmatpush.msra.mxu0 0.0
        %1169 = vmatpush.msra.mxu0 0.0
        %1170 = vmatpush.msra.mxu0 0.0
        %1171 = vmatpush.msra.mxu0 0.0
        %1172 = vmatpush.msra.mxu0 0.0
        %1173 = vmatpush.msra.mxu0 0.0
        %1174 = vmatpush.msra.mxu0 0.0
        %1175 = vmatpush.msra.mxu0 0.0
        %1176 = vmatpush.msra.mxu0 0.0
        %1177 = vmatpush.msra.mxu0 %v1018
        %1178 = vmatmul.f32.gmra.mxu0 %v1001
        %v1179 = vpop.f32.mrf.mxu0
        %v1180 = vadd.f32 0.0, %v1179
        %1181 = vdwg.mxu0
        %1182 = vmatpush.msra.mxu0 0.0
        %1183 = vmatpush.msra.mxu0 0.0
        %1184 = vmatpush.msra.mxu0 0.0
        %1185 = vmatpush.msra.mxu0 0.0
        %1186 = vmatpush.msra.mxu0 0.0
        %1187 = vmatpush.msra.mxu0 0.0
        %1188 = vmatpush.msra.mxu0 0.0
        %1189 = vmatpush.msra.mxu0 0.0
        %1190 = vmatpush.msra.mxu0 0.0
        %1191 = vmatpush.msra.mxu0 0.0
        %1192 = vmatpush.msra.mxu0 0.0
        %1193 = vmatpush.msra.mxu0 0.0
        %1194 = vmatpush.msra.mxu0 0.0
        %1195 = vmatpush.msra.mxu0 0.0
        %1196 = vmatpush.msra.mxu0 0.0
        %1197 = vmatpush.msra.mxu0 %v1020
        %1198 = vmatmul.f32.gmra.mxu0 %v1001
        %v1199 = vpop.f32.mrf.mxu0
        %v1200 = vadd.f32 0.0, %v1199
        %1201 = vdwg.mxu0
        %v1203 = vsel %vm999, %v960, 0
        %v1205 = vsel %vm1003, %v598, 0
        %v1207 = vsel %vm1003, %v638, 0
        %v1209 = vsel %vm1003, %v678, 0
        %v1211 = vsel %vm1003, %v718, 0
        %v1213 = vsel %vm1003, %v758, 0
        %v1215 = vsel %vm1003, %v798, 0
        %v1217 = vsel %vm1003, %v838, 0
        %v1219 = vsel %vm1003, %v878, 0
        %v1221 = vsel %vm1003, %v918, 0
        %1223 = vmatpush.msra.mxu0 0.0
        %1224 = vmatpush.msra.mxu0 0.0
        %1225 = vmatpush.msra.mxu0 0.0
        %1226 = vmatpush.msra.mxu0 0.0
        %1227 = vmatpush.msra.mxu0 0.0
        %1228 = vmatpush.msra.mxu0 0.0
        %1229 = vmatpush.msra.mxu0 0.0
        %1230 = vmatpush.msra.mxu0 0.0
        %1231 = vmatpush.msra.mxu0 0.0
        %1232 = vmatpush.msra.mxu0 0.0
        %1233 = vmatpush.msra.mxu0 0.0
        %1234 = vmatpush.msra.mxu0 0.0
        %1235 = vmatpush.msra.mxu0 0.0
        %1236 = vmatpush.msra.mxu0 0.0
        %1237 = vmatpush.msra.mxu0 0.0
        %1238 = vmatpush.msra.mxu0 %v1205
        %1239 = vmatmul.f32.gmra.mxu0 %v1203
        %v1240 = vpop.f32.mrf.mxu0
        %v1241 = vadd.f32 %v1040, %v1240
        %1242 = vdwg.mxu0
        %1243 = vmatpush.msra.mxu0 0.0
        %1244 = vmatpush.msra.mxu0 0.0
        %1245 = vmatpush.msra.mxu0 0.0
        %1246 = vmatpush.msra.mxu0 0.0
        %1247 = vmatpush.msra.mxu0 0.0
        %1248 = vmatpush.msra.mxu0 0.0
        %1249 = vmatpush.msra.mxu0 0.0
        %1250 = vmatpush.msra.mxu0 0.0
        %1251 = vmatpush.msra.mxu0 0.0
        %1252 = vmatpush.msra.mxu0 0.0
        %1253 = vmatpush.msra.mxu0 0.0
        %1254 = vmatpush.msra.mxu0 0.0
        %1255 = vmatpush.msra.mxu0 0.0
        %1256 = vmatpush.msra.mxu0 0.0
        %1257 = vmatpush.msra.mxu0 0.0
        %1258 = vmatpush.msra.mxu0 %v1207
        %1259 = vmatmul.f32.gmra.mxu0 %v1203
        %v1260 = vpop.f32.mrf.mxu0
        %v1261 = vadd.f32 %v1060, %v1260
        %1262 = vdwg.mxu0
        %1263 = vmatpush.msra.mxu0 0.0
        %1264 = vmatpush.msra.mxu0 0.0
        %1265 = vmatpush.msra.mxu0 0.0
        %1266 = vmatpush.msra.mxu0 0.0
        %1267 = vmatpush.msra.mxu0 0.0
        %1268 = vmatpush.msra.mxu0 0.0
        %1269 = vmatpush.msra.mxu0 0.0
        %1270 = vmatpush.msra.mxu0 0.0
        %1271 = vmatpush.msra.mxu0 0.0
        %1272 = vmatpush.msra.mxu0 0.0
        %1273 = vmatpush.msra.mxu0 0.0
        %1274 = vmatpush.msra.mxu0 0.0
        %1275 = vmatpush.msra.mxu0 0.0
        %1276 = vmatpush.msra.mxu0 0.0
        %1277 = vmatpush.msra.mxu0 0.0
        %1278 = vmatpush.msra.mxu0 %v1209
        %1279 = vmatmul.f32.gmra.mxu0 %v1203
        %v1280 = vpop.f32.mrf.mxu0
        %v1281 = vadd.f32 %v1080, %v1280
        %1282 = vdwg.mxu0
        %1283 = vmatpush.msra.mxu0 0.0
        %1284 = vmatpush.msra.mxu0 0.0
        %1285 = vmatpush.msra.mxu0 0.0
        %1286 = vmatpush.msra.mxu0 0.0
        %1287 = vmatpush.msra.mxu0 0.0
        %1288 = vmatpush.msra.mxu0 0.0
        %1289 = vmatpush.msra.mxu0 0.0
        %1290 = vmatpush.msra.mxu0 0.0
        %1291 = vmatpush.msra.mxu0 0.0
        %1292 = vmatpush.msra.mxu0 0.0
        %1293 = vmatpush.msra.mxu0 0.0
        %1294 = vmatpush.msra.mxu0 0.0
        %1295 = vmatpush.msra.mxu0 0.0
        %1296 = vmatpush.msra.mxu0 0.0
        %1297 = vmatpush.msra.mxu0 0.0
        %1298 = vmatpush.msra.mxu0 %v1211
        %1299 = vmatmul.f32.gmra.mxu0 %v1203
        %v1300 = vpop.f32.mrf.mxu0
        %v1301 = vadd.f32 %v1100, %v1300
        %1302 = vdwg.mxu0
        %1303 = vmatpush.msra.mxu0 0.0
        %1304 = vmatpush.msra.mxu0 0.0
        %1305 = vmatpush.msra.mxu0 0.0
        %1306 = vmatpush.msra.mxu0 0.0
        %1307 = vmatpush.msra.mxu0 0.0
        %1308 = vmatpush.msra.mxu0 0.0
        %1309 = vmatpush.msra.mxu0 0.0
        %1310 = vmatpush.msra.mxu0 0.0
        %1311 = vmatpush.msra.mxu0 0.0
        %1312 = vmatpush.msra.mxu0 0.0
        %1313 = vmatpush.msra.mxu0 0.0
        %1314 = vmatpush.msra.mxu0 0.0
        %1315 = vmatpush.msra.mxu0 0.0
        %1316 = vmatpush.msra.mxu0 0.0
        %1317 = vmatpush.msra.mxu0 0.0
        %1318 = vmatpush.msra.mxu0 %v1213
        %1319 = vmatmul.f32.gmra.mxu0 %v1203
        %v1320 = vpop.f32.mrf.mxu0
        %v1321 = vadd.f32 %v1120, %v1320
        %1322 = vdwg.mxu0
        %1323 = vmatpush.msra.mxu0 0.0
        %1324 = vmatpush.msra.mxu0 0.0
        %1325 = vmatpush.msra.mxu0 0.0
        %1326 = vmatpush.msra.mxu0 0.0
        %1327 = vmatpush.msra.mxu0 0.0
        %1328 = vmatpush.msra.mxu0 0.0
        %1329 = vmatpush.msra.mxu0 0.0
        %1330 = vmatpush.msra.mxu0 0.0
        %1331 = vmatpush.msra.mxu0 0.0
        %1332 = vmatpush.msra.mxu0 0.0
        %1333 = vmatpush.msra.mxu0 0.0
        %1334 = vmatpush.msra.mxu0 0.0
        %1335 = vmatpush.msra.mxu0 0.0
        %1336 = vmatpush.msra.mxu0 0.0
        %1337 = vmatpush.msra.mxu0 0.0
        %1338 = vmatpush.msra.mxu0 %v1215
        %1339 = vmatmul.f32.gmra.mxu0 %v1203
        %v1340 = vpop.f32.mrf.mxu0
        %v1341 = vadd.f32 %v1140, %v1340
        %1342 = vdwg.mxu0
        %1343 = vmatpush.msra.mxu0 0.0
        %1344 = vmatpush.msra.mxu0 0.0
        %1345 = vmatpush.msra.mxu0 0.0
        %1346 = vmatpush.msra.mxu0 0.0
        %1347 = vmatpush.msra.mxu0 0.0
        %1348 = vmatpush.msra.mxu0 0.0
        %1349 = vmatpush.msra.mxu0 0.0
        %1350 = vmatpush.msra.mxu0 0.0
        %1351 = vmatpush.msra.mxu0 0.0
        %1352 = vmatpush.msra.mxu0 0.0
        %1353 = vmatpush.msra.mxu0 0.0
        %1354 = vmatpush.msra.mxu0 0.0
        %1355 = vmatpush.msra.mxu0 0.0
        %1356 = vmatpush.msra.mxu0 0.0
        %1357 = vmatpush.msra.mxu0 0.0
        %1358 = vmatpush.msra.mxu0 %v1217
        %1359 = vmatmul.f32.gmra.mxu0 %v1203
        %v1360 = vpop.f32.mrf.mxu0
        %v1361 = vadd.f32 %v1160, %v1360
        %1362 = vdwg.mxu0
        %1363 = vmatpush.msra.mxu0 0.0
        %1364 = vmatpush.msra.mxu0 0.0
        %1365 = vmatpush.msra.mxu0 0.0
        %1366 = vmatpush.msra.mxu0 0.0
        %1367 = vmatpush.msra.mxu0 0.0
        %1368 = vmatpush.msra.mxu0 0.0
        %1369 = vmatpush.msra.mxu0 0.0
        %1370 = vmatpush.msra.mxu0 0.0
        %1371 = vmatpush.msra.mxu0 0.0
        %1372 = vmatpush.msra.mxu0 0.0
        %1373 = vmatpush.msra.mxu0 0.0
        %1374 = vmatpush.msra.mxu0 0.0
        %1375 = vmatpush.msra.mxu0 0.0
        %1376 = vmatpush.msra.mxu0 0.0
        %1377 = vmatpush.msra.mxu0 0.0
        %1378 = vmatpush.msra.mxu0 %v1219
        %1379 = vmatmul.f32.gmra.mxu0 %v1203
        %v1380 = vpop.f32.mrf.mxu0
        %v1381 = vadd.f32 %v1180, %v1380
        %1382 = vdwg.mxu0
        %1383 = vmatpush.msra.mxu0 0.0
        %1384 = vmatpush.msra.mxu0 0.0
        %1385 = vmatpush.msra.mxu0 0.0
        %1386 = vmatpush.msra.mxu0 0.0
        %1387 = vmatpush.msra.mxu0 0.0
        %1388 = vmatpush.msra.mxu0 0.0
        %1389 = vmatpush.msra.mxu0 0.0
        %1390 = vmatpush.msra.mxu0 0.0
        %1391 = vmatpush.msra.mxu0 0.0
        %1392 = vmatpush.msra.mxu0 0.0
        %1393 = vmatpush.msra.mxu0 0.0
        %1394 = vmatpush.msra.mxu0 0.0
        %1395 = vmatpush.msra.mxu0 0.0
        %1396 = vmatpush.msra.mxu0 0.0
        %1397 = vmatpush.msra.mxu0 0.0
        %1398 = vmatpush.msra.mxu0 %v1221
        %1399 = vmatmul.f32.gmra.mxu0 %v1203
        %v1400 = vpop.f32.mrf.mxu0
        %v1401 = vadd.f32 %v1200, %v1400
        %1402 = vdwg.mxu0
        %s1403 = scalar_lea.vmem %s2, 16
        %v1404 = vld [vmem:[%s1403] sm:$0xff]
        %1405 = vrot.lane.b32.xlu0 %v598, 126
        %v1406 = vpop.permute.xlu0 %1405
        %1407 = vrot.lane.b32.xlu0 %v638, 126
        %v1408 = vpop.permute.xlu0 %1407
        %1409 = vrot.lane.b32.xlu0 %v678, 126
        %v1410 = vpop.permute.xlu0 %1409
        %1411 = vrot.lane.b32.xlu0 %v718, 126
        %v1412 = vpop.permute.xlu0 %1411
        %1413 = vrot.lane.b32.xlu0 %v758, 126
        %v1414 = vpop.permute.xlu0 %1413
        %1415 = vrot.lane.b32.xlu0 %v798, 126
        %v1416 = vpop.permute.xlu0 %1415
        %1417 = vrot.lane.b32.xlu0 %v838, 126
        %v1418 = vpop.permute.xlu0 %1417
        %1419 = vrot.lane.b32.xlu0 %v878, 126
        %v1420 = vpop.permute.xlu0 %1419
        %1421 = vrot.lane.b32.xlu0 %v918, 126
        %v1422 = vpop.permute.xlu0 %1421
        %vm1423 = vcmask 1031168
        %v1424 = vsel %vm1423, %v1406, %v1408
        %v1425 = vsel %vm1423, %v1408, %v1410
        %v1426 = vsel %vm1423, %v1410, %v1412
        %v1427 = vsel %vm1423, %v1412, %v1414
        %v1428 = vsel %vm1423, %v1414, %v1416
        %v1429 = vsel %vm1423, %v1416, %v1418
        %v1430 = vsel %vm1423, %v1418, %v1420
        %v1431 = vsel %vm1423, %v1420, %v1422
        %v1433 = vsel %vm999, %v1404, 0
        %v1435 = vsel %vm1003, %v1424, 0
        %v1437 = vsel %vm1003, %v1425, 0
        %v1439 = vsel %vm1003, %v1426, 0
        %v1441 = vsel %vm1003, %v1427, 0
        %v1443 = vsel %vm1003, %v1428, 0
        %v1445 = vsel %vm1003, %v1429, 0
        %v1447 = vsel %vm1003, %v1430, 0
        %v1449 = vsel %vm1003, %v1431, 0
        %v1451 = vsel %vm1003, %v1422, 0
        %1453 = vmatpush.msra.mxu0 0.0
        %1454 = vmatpush.msra.mxu0 0.0
        %1455 = vmatpush.msra.mxu0 0.0
        %1456 = vmatpush.msra.mxu0 0.0
        %1457 = vmatpush.msra.mxu0 0.0
        %1458 = vmatpush.msra.mxu0 0.0
        %1459 = vmatpush.msra.mxu0 0.0
        %1460 = vmatpush.msra.mxu0 0.0
        %1461 = vmatpush.msra.mxu0 0.0
        %1462 = vmatpush.msra.mxu0 0.0
        %1463 = vmatpush.msra.mxu0 0.0
        %1464 = vmatpush.msra.mxu0 0.0
        %1465 = vmatpush.msra.mxu0 0.0
        %1466 = vmatpush.msra.mxu0 0.0
        %1467 = vmatpush.msra.mxu0 0.0
        %1468 = vmatpush.msra.mxu0 %v1435
        %1469 = vmatmul.f32.gmra.mxu0 %v1433
        %v1470 = vpop.f32.mrf.mxu0
        %v1471 = vadd.f32 0.0, %v1470
        %1472 = vdwg.mxu0
        %1473 = vmatpush.msra.mxu0 0.0
        %1474 = vmatpush.msra.mxu0 0.0
        %1475 = vmatpush.msra.mxu0 0.0
        %1476 = vmatpush.msra.mxu0 0.0
        %1477 = vmatpush.msra.mxu0 0.0
        %1478 = vmatpush.msra.mxu0 0.0
        %1479 = vmatpush.msra.mxu0 0.0
        %1480 = vmatpush.msra.mxu0 0.0
        %1481 = vmatpush.msra.mxu0 0.0
        %1482 = vmatpush.msra.mxu0 0.0
        %1483 = vmatpush.msra.mxu0 0.0
        %1484 = vmatpush.msra.mxu0 0.0
        %1485 = vmatpush.msra.mxu0 0.0
        %1486 = vmatpush.msra.mxu0 0.0
        %1487 = vmatpush.msra.mxu0 0.0
        %1488 = vmatpush.msra.mxu0 %v1437
        %1489 = vmatmul.f32.gmra.mxu0 %v1433
        %v1490 = vpop.f32.mrf.mxu0
        %v1491 = vadd.f32 0.0, %v1490
        %1492 = vdwg.mxu0
        %1493 = vmatpush.msra.mxu0 0.0
        %1494 = vmatpush.msra.mxu0 0.0
        %1495 = vmatpush.msra.mxu0 0.0
        %1496 = vmatpush.msra.mxu0 0.0
        %1497 = vmatpush.msra.mxu0 0.0
        %1498 = vmatpush.msra.mxu0 0.0
        %1499 = vmatpush.msra.mxu0 0.0
        %1500 = vmatpush.msra.mxu0 0.0
        %1501 = vmatpush.msra.mxu0 0.0
        %1502 = vmatpush.msra.mxu0 0.0
        %1503 = vmatpush.msra.mxu0 0.0
        %1504 = vmatpush.msra.mxu0 0.0
        %1505 = vmatpush.msra.mxu0 0.0
        %1506 = vmatpush.msra.mxu0 0.0
        %1507 = vmatpush.msra.mxu0 0.0
        %1508 = vmatpush.msra.mxu0 %v1439
        %1509 = vmatmul.f32.gmra.mxu0 %v1433
        %v1510 = vpop.f32.mrf.mxu0
        %v1511 = vadd.f32 0.0, %v1510
        %1512 = vdwg.mxu0
        %1513 = vmatpush.msra.mxu0 0.0
        %1514 = vmatpush.msra.mxu0 0.0
        %1515 = vmatpush.msra.mxu0 0.0
        %1516 = vmatpush.msra.mxu0 0.0
        %1517 = vmatpush.msra.mxu0 0.0
        %1518 = vmatpush.msra.mxu0 0.0
        %1519 = vmatpush.msra.mxu0 0.0
        %1520 = vmatpush.msra.mxu0 0.0
        %1521 = vmatpush.msra.mxu0 0.0
        %1522 = vmatpush.msra.mxu0 0.0
        %1523 = vmatpush.msra.mxu0 0.0
        %1524 = vmatpush.msra.mxu0 0.0
        %1525 = vmatpush.msra.mxu0 0.0
        %1526 = vmatpush.msra.mxu0 0.0
        %1527 = vmatpush.msra.mxu0 0.0
        %1528 = vmatpush.msra.mxu0 %v1441
        %1529 = vmatmul.f32.gmra.mxu0 %v1433
        %v1530 = vpop.f32.mrf.mxu0
        %v1531 = vadd.f32 0.0, %v1530
        %1532 = vdwg.mxu0
        %1533 = vmatpush.msra.mxu0 0.0
        %1534 = vmatpush.msra.mxu0 0.0
        %1535 = vmatpush.msra.mxu0 0.0
        %1536 = vmatpush.msra.mxu0 0.0
        %1537 = vmatpush.msra.mxu0 0.0
        %1538 = vmatpush.msra.mxu0 0.0
        %1539 = vmatpush.msra.mxu0 0.0
        %1540 = vmatpush.msra.mxu0 0.0
        %1541 = vmatpush.msra.mxu0 0.0
        %1542 = vmatpush.msra.mxu0 0.0
        %1543 = vmatpush.msra.mxu0 0.0
        %1544 = vmatpush.msra.mxu0 0.0
        %1545 = vmatpush.msra.mxu0 0.0
        %1546 = vmatpush.msra.mxu0 0.0
        %1547 = vmatpush.msra.mxu0 0.0
        %1548 = vmatpush.msra.mxu0 %v1443
        %1549 = vmatmul.f32.gmra.mxu0 %v1433
        %v1550 = vpop.f32.mrf.mxu0
        %v1551 = vadd.f32 0.0, %v1550
        %1552 = vdwg.mxu0
        %1553 = vmatpush.msra.mxu0 0.0
        %1554 = vmatpush.msra.mxu0 0.0
        %1555 = vmatpush.msra.mxu0 0.0
        %1556 = vmatpush.msra.mxu0 0.0
        %1557 = vmatpush.msra.mxu0 0.0
        %1558 = vmatpush.msra.mxu0 0.0
        %1559 = vmatpush.msra.mxu0 0.0
        %1560 = vmatpush.msra.mxu0 0.0
        %1561 = vmatpush.msra.mxu0 0.0
        %1562 = vmatpush.msra.mxu0 0.0
        %1563 = vmatpush.msra.mxu0 0.0
        %1564 = vmatpush.msra.mxu0 0.0
        %1565 = vmatpush.msra.mxu0 0.0
        %1566 = vmatpush.msra.mxu0 0.0
        %1567 = vmatpush.msra.mxu0 0.0
        %1568 = vmatpush.msra.mxu0 %v1445
        %1569 = vmatmul.f32.gmra.mxu0 %v1433
        %v1570 = vpop.f32.mrf.mxu0
        %v1571 = vadd.f32 0.0, %v1570
        %1572 = vdwg.mxu0
        %1573 = vmatpush.msra.mxu0 0.0
        %1574 = vmatpush.msra.mxu0 0.0
        %1575 = vmatpush.msra.mxu0 0.0
        %1576 = vmatpush.msra.mxu0 0.0
        %1577 = vmatpush.msra.mxu0 0.0
        %1578 = vmatpush.msra.mxu0 0.0
        %1579 = vmatpush.msra.mxu0 0.0
        %1580 = vmatpush.msra.mxu0 0.0
        %1581 = vmatpush.msra.mxu0 0.0
        %1582 = vmatpush.msra.mxu0 0.0
        %1583 = vmatpush.msra.mxu0 0.0
        %1584 = vmatpush.msra.mxu0 0.0
        %1585 = vmatpush.msra.mxu0 0.0
        %1586 = vmatpush.msra.mxu0 0.0
        %1587 = vmatpush.msra.mxu0 0.0
        %1588 = vmatpush.msra.mxu0 %v1447
        %1589 = vmatmul.f32.gmra.mxu0 %v1433
        %v1590 = vpop.f32.mrf.mxu0
        %v1591 = vadd.f32 0.0, %v1590
        %1592 = vdwg.mxu0
        %1593 = vmatpush.msra.mxu0 0.0
        %1594 = vmatpush.msra.mxu0 0.0
        %1595 = vmatpush.msra.mxu0 0.0
        %1596 = vmatpush.msra.mxu0 0.0
        %1597 = vmatpush.msra.mxu0 0.0
        %1598 = vmatpush.msra.mxu0 0.0
        %1599 = vmatpush.msra.mxu0 0.0
        %1600 = vmatpush.msra.mxu0 0.0
        %1601 = vmatpush.msra.mxu0 0.0
        %1602 = vmatpush.msra.mxu0 0.0
        %1603 = vmatpush.msra.mxu0 0.0
        %1604 = vmatpush.msra.mxu0 0.0
        %1605 = vmatpush.msra.mxu0 0.0
        %1606 = vmatpush.msra.mxu0 0.0
        %1607 = vmatpush.msra.mxu0 0.0
        %1608 = vmatpush.msra.mxu0 %v1449
        %1609 = vmatmul.f32.gmra.mxu0 %v1433
        %v1610 = vpop.f32.mrf.mxu0
        %v1611 = vadd.f32 0.0, %v1610
        %1612 = vdwg.mxu0
        %1613 = vmatpush.msra.mxu0 0.0
        %1614 = vmatpush.msra.mxu0 0.0
        %1615 = vmatpush.msra.mxu0 0.0
        %1616 = vmatpush.msra.mxu0 0.0
        %1617 = vmatpush.msra.mxu0 0.0
        %1618 = vmatpush.msra.mxu0 0.0
        %1619 = vmatpush.msra.mxu0 0.0
        %1620 = vmatpush.msra.mxu0 0.0
        %1621 = vmatpush.msra.mxu0 0.0
        %1622 = vmatpush.msra.mxu0 0.0
        %1623 = vmatpush.msra.mxu0 0.0
        %1624 = vmatpush.msra.mxu0 0.0
        %1625 = vmatpush.msra.mxu0 0.0
        %1626 = vmatpush.msra.mxu0 0.0
        %1627 = vmatpush.msra.mxu0 0.0
        %1628 = vmatpush.msra.mxu0 %v1451
        %1629 = vmatmul.f32.gmra.mxu0 %v1433
        %v1630 = vpop.f32.mrf.mxu0
        %v1631 = vadd.f32 0.0, %v1630
        %1632 = vdwg.mxu0
        %v1633 = vadd.f32 %v1241, %v1471
        %v1634 = vadd.f32 %v1261, %v1491
        %v1635 = vadd.f32 %v1281, %v1511
        %v1636 = vadd.f32 %v1301, %v1531
        %v1637 = vadd.f32 %v1321, %v1551
        %v1638 = vadd.f32 %v1341, %v1571
        %v1639 = vadd.f32 %v1361, %v1591
        %v1640 = vadd.f32 %v1381, %v1611
        %v1641 = vadd.f32 %v1401, %v1631
        %s1642 = scalar_lea.vmem %s2, 24
        %v1643 = vld [vmem:[%s1642] sm:$0xff]
        %1644 = vrot.lane.b32.xlu0 %v598, 94
        %v1645 = vpop.permute.xlu0 %1644
        %1646 = vrot.lane.b32.xlu0 %v638, 94
        %v1647 = vpop.permute.xlu0 %1646
        %1648 = vrot.lane.b32.xlu0 %v678, 94
        %v1649 = vpop.permute.xlu0 %1648
        %1650 = vrot.lane.b32.xlu0 %v718, 94
        %v1651 = vpop.permute.xlu0 %1650
        %1652 = vrot.lane.b32.xlu0 %v758, 94
        %v1653 = vpop.permute.xlu0 %1652
        %1654 = vrot.lane.b32.xlu0 %v798, 94
        %v1655 = vpop.permute.xlu0 %1654
        %1656 = vrot.lane.b32.xlu0 %v838, 94
        %v1657 = vpop.permute.xlu0 %1656
        %1658 = vrot.lane.b32.xlu0 %v878, 94
        %v1659 = vpop.permute.xlu0 %1658
        %1660 = vrot.lane.b32.xlu0 %v918, 94
        %v1661 = vpop.permute.xlu0 %1660
        %vm1662 = vcmask 769024
        %v1663 = vsel %vm1662, %v1645, %v1647
        %v1664 = vsel %vm1662, %v1647, %v1649
        %v1665 = vsel %vm1662, %v1649, %v1651
        %v1666 = vsel %vm1662, %v1651, %v1653
        %v1667 = vsel %vm1662, %v1653, %v1655
        %v1668 = vsel %vm1662, %v1655, %v1657
        %v1669 = vsel %vm1662, %v1657, %v1659
        %v1670 = vsel %vm1662, %v1659, %v1661
        %v1672 = vsel %vm999, %v1643, 0
        %v1674 = vsel %vm1003, %v1663, 0
        %v1676 = vsel %vm1003, %v1664, 0
        %v1678 = vsel %vm1003, %v1665, 0
        %v1680 = vsel %vm1003, %v1666, 0
        %v1682 = vsel %vm1003, %v1667, 0
        %v1684 = vsel %vm1003, %v1668, 0
        %v1686 = vsel %vm1003, %v1669, 0
        %v1688 = vsel %vm1003, %v1670, 0
        %v1690 = vsel %vm1003, %v1661, 0
        %1692 = vmatpush.msra.mxu0 0.0
        %1693 = vmatpush.msra.mxu0 0.0
        %1694 = vmatpush.msra.mxu0 0.0
        %1695 = vmatpush.msra.mxu0 0.0
        %1696 = vmatpush.msra.mxu0 0.0
        %1697 = vmatpush.msra.mxu0 0.0
        %1698 = vmatpush.msra.mxu0 0.0
        %1699 = vmatpush.msra.mxu0 0.0
        %1700 = vmatpush.msra.mxu0 0.0
        %1701 = vmatpush.msra.mxu0 0.0
        %1702 = vmatpush.msra.mxu0 0.0
        %1703 = vmatpush.msra.mxu0 0.0
        %1704 = vmatpush.msra.mxu0 0.0
        %1705 = vmatpush.msra.mxu0 0.0
        %1706 = vmatpush.msra.mxu0 0.0
        %1707 = vmatpush.msra.mxu0 %v1674
        %1708 = vmatmul.f32.gmra.mxu0 %v1672
        %v1709 = vpop.f32.mrf.mxu0
        %v1710 = vadd.f32 0.0, %v1709
        %1711 = vdwg.mxu0
        %1712 = vmatpush.msra.mxu0 0.0
        %1713 = vmatpush.msra.mxu0 0.0
        %1714 = vmatpush.msra.mxu0 0.0
        %1715 = vmatpush.msra.mxu0 0.0
        %1716 = vmatpush.msra.mxu0 0.0
        %1717 = vmatpush.msra.mxu0 0.0
        %1718 = vmatpush.msra.mxu0 0.0
        %1719 = vmatpush.msra.mxu0 0.0
        %1720 = vmatpush.msra.mxu0 0.0
        %1721 = vmatpush.msra.mxu0 0.0
        %1722 = vmatpush.msra.mxu0 0.0
        %1723 = vmatpush.msra.mxu0 0.0
        %1724 = vmatpush.msra.mxu0 0.0
        %1725 = vmatpush.msra.mxu0 0.0
        %1726 = vmatpush.msra.mxu0 0.0
        %1727 = vmatpush.msra.mxu0 %v1676
        %1728 = vmatmul.f32.gmra.mxu0 %v1672
        %v1729 = vpop.f32.mrf.mxu0
        %v1730 = vadd.f32 0.0, %v1729
        %1731 = vdwg.mxu0
        %1732 = vmatpush.msra.mxu0 0.0
        %1733 = vmatpush.msra.mxu0 0.0
        %1734 = vmatpush.msra.mxu0 0.0
        %1735 = vmatpush.msra.mxu0 0.0
        %1736 = vmatpush.msra.mxu0 0.0
        %1737 = vmatpush.msra.mxu0 0.0
        %1738 = vmatpush.msra.mxu0 0.0
        %1739 = vmatpush.msra.mxu0 0.0
        %1740 = vmatpush.msra.mxu0 0.0
        %1741 = vmatpush.msra.mxu0 0.0
        %1742 = vmatpush.msra.mxu0 0.0
        %1743 = vmatpush.msra.mxu0 0.0
        %1744 = vmatpush.msra.mxu0 0.0
        %1745 = vmatpush.msra.mxu0 0.0
        %1746 = vmatpush.msra.mxu0 0.0
        %1747 = vmatpush.msra.mxu0 %v1678
        %1748 = vmatmul.f32.gmra.mxu0 %v1672
        %v1749 = vpop.f32.mrf.mxu0
        %v1750 = vadd.f32 0.0, %v1749
        %1751 = vdwg.mxu0
        %1752 = vmatpush.msra.mxu0 0.0
        %1753 = vmatpush.msra.mxu0 0.0
        %1754 = vmatpush.msra.mxu0 0.0
        %1755 = vmatpush.msra.mxu0 0.0
        %1756 = vmatpush.msra.mxu0 0.0
        %1757 = vmatpush.msra.mxu0 0.0
        %1758 = vmatpush.msra.mxu0 0.0
        %1759 = vmatpush.msra.mxu0 0.0
        %1760 = vmatpush.msra.mxu0 0.0
        %1761 = vmatpush.msra.mxu0 0.0
        %1762 = vmatpush.msra.mxu0 0.0
        %1763 = vmatpush.msra.mxu0 0.0
        %1764 = vmatpush.msra.mxu0 0.0
        %1765 = vmatpush.msra.mxu0 0.0
        %1766 = vmatpush.msra.mxu0 0.0
        %1767 = vmatpush.msra.mxu0 %v1680
        %1768 = vmatmul.f32.gmra.mxu0 %v1672
        %v1769 = vpop.f32.mrf.mxu0
        %v1770 = vadd.f32 0.0, %v1769
        %1771 = vdwg.mxu0
        %1772 = vmatpush.msra.mxu0 0.0
        %1773 = vmatpush.msra.mxu0 0.0
        %1774 = vmatpush.msra.mxu0 0.0
        %1775 = vmatpush.msra.mxu0 0.0
        %1776 = vmatpush.msra.mxu0 0.0
        %1777 = vmatpush.msra.mxu0 0.0
        %1778 = vmatpush.msra.mxu0 0.0
        %1779 = vmatpush.msra.mxu0 0.0
        %1780 = vmatpush.msra.mxu0 0.0
        %1781 = vmatpush.msra.mxu0 0.0
        %1782 = vmatpush.msra.mxu0 0.0
        %1783 = vmatpush.msra.mxu0 0.0
        %1784 = vmatpush.msra.mxu0 0.0
        %1785 = vmatpush.msra.mxu0 0.0
        %1786 = vmatpush.msra.mxu0 0.0
        %1787 = vmatpush.msra.mxu0 %v1682
        %1788 = vmatmul.f32.gmra.mxu0 %v1672
        %v1789 = vpop.f32.mrf.mxu0
        %v1790 = vadd.f32 0.0, %v1789
        %1791 = vdwg.mxu0
        %1792 = vmatpush.msra.mxu0 0.0
        %1793 = vmatpush.msra.mxu0 0.0
        %1794 = vmatpush.msra.mxu0 0.0
        %1795 = vmatpush.msra.mxu0 0.0
        %1796 = vmatpush.msra.mxu0 0.0
        %1797 = vmatpush.msra.mxu0 0.0
        %1798 = vmatpush.msra.mxu0 0.0
        %1799 = vmatpush.msra.mxu0 0.0
        %1800 = vmatpush.msra.mxu0 0.0
        %1801 = vmatpush.msra.mxu0 0.0
        %1802 = vmatpush.msra.mxu0 0.0
        %1803 = vmatpush.msra.mxu0 0.0
        %1804 = vmatpush.msra.mxu0 0.0
        %1805 = vmatpush.msra.mxu0 0.0
        %1806 = vmatpush.msra.mxu0 0.0
        %1807 = vmatpush.msra.mxu0 %v1684
        %1808 = vmatmul.f32.gmra.mxu0 %v1672
        %v1809 = vpop.f32.mrf.mxu0
        %v1810 = vadd.f32 0.0, %v1809
        %1811 = vdwg.mxu0
        %1812 = vmatpush.msra.mxu0 0.0
        %1813 = vmatpush.msra.mxu0 0.0
        %1814 = vmatpush.msra.mxu0 0.0
        %1815 = vmatpush.msra.mxu0 0.0
        %1816 = vmatpush.msra.mxu0 0.0
        %1817 = vmatpush.msra.mxu0 0.0
        %1818 = vmatpush.msra.mxu0 0.0
        %1819 = vmatpush.msra.mxu0 0.0
        %1820 = vmatpush.msra.mxu0 0.0
        %1821 = vmatpush.msra.mxu0 0.0
        %1822 = vmatpush.msra.mxu0 0.0
        %1823 = vmatpush.msra.mxu0 0.0
        %1824 = vmatpush.msra.mxu0 0.0
        %1825 = vmatpush.msra.mxu0 0.0
        %1826 = vmatpush.msra.mxu0 0.0
        %1827 = vmatpush.msra.mxu0 %v1686
        %1828 = vmatmul.f32.gmra.mxu0 %v1672
        %v1829 = vpop.f32.mrf.mxu0
        %v1830 = vadd.f32 0.0, %v1829
        %1831 = vdwg.mxu0
        %1832 = vmatpush.msra.mxu0 0.0
        %1833 = vmatpush.msra.mxu0 0.0
        %1834 = vmatpush.msra.mxu0 0.0
        %1835 = vmatpush.msra.mxu0 0.0
        %1836 = vmatpush.msra.mxu0 0.0
        %1837 = vmatpush.msra.mxu0 0.0
        %1838 = vmatpush.msra.mxu0 0.0
        %1839 = vmatpush.msra.mxu0 0.0
        %1840 = vmatpush.msra.mxu0 0.0
        %1841 = vmatpush.msra.mxu0 0.0
        %1842 = vmatpush.msra.mxu0 0.0
        %1843 = vmatpush.msra.mxu0 0.0
        %1844 = vmatpush.msra.mxu0 0.0
        %1845 = vmatpush.msra.mxu0 0.0
        %1846 = vmatpush.msra.mxu0 0.0
        %1847 = vmatpush.msra.mxu0 %v1688
        %1848 = vmatmul.f32.gmra.mxu0 %v1672
        %v1849 = vpop.f32.mrf.mxu0
        %v1850 = vadd.f32 0.0, %v1849
        %1851 = vdwg.mxu0
        %1852 = vmatpush.msra.mxu0 0.0
        %1853 = vmatpush.msra.mxu0 0.0
        %1854 = vmatpush.msra.mxu0 0.0
        %1855 = vmatpush.msra.mxu0 0.0
        %1856 = vmatpush.msra.mxu0 0.0
        %1857 = vmatpush.msra.mxu0 0.0
        %1858 = vmatpush.msra.mxu0 0.0
        %1859 = vmatpush.msra.mxu0 0.0
        %1860 = vmatpush.msra.mxu0 0.0
        %1861 = vmatpush.msra.mxu0 0.0
        %1862 = vmatpush.msra.mxu0 0.0
        %1863 = vmatpush.msra.mxu0 0.0
        %1864 = vmatpush.msra.mxu0 0.0
        %1865 = vmatpush.msra.mxu0 0.0
        %1866 = vmatpush.msra.mxu0 0.0
        %1867 = vmatpush.msra.mxu0 %v1690
        %1868 = vmatmul.f32.gmra.mxu0 %v1672
        %v1869 = vpop.f32.mrf.mxu0
        %v1870 = vadd.f32 0.0, %v1869
        %1871 = vdwg.mxu0
        %v1872 = vadd.f32 %v1633, %v1710
        %v1873 = vadd.f32 %v1634, %v1730
        %v1874 = vadd.f32 %v1635, %v1750
        %v1875 = vadd.f32 %v1636, %v1770
        %v1876 = vadd.f32 %v1637, %v1790
        %v1877 = vadd.f32 %v1638, %v1810
        %v1878 = vadd.f32 %v1639, %v1830
        %v1879 = vadd.f32 %v1640, %v1850
        %v1880 = vadd.f32 %v1641, %v1870
        %s1881 = scalar_lea.vmem %s2, 32
        %v1882 = vld [vmem:[%s1881] sm:$0xff]
        %1883 = vrot.lane.b32.xlu0 %v598, 93
        %v1884 = vpop.permute.xlu0 %1883
        %1885 = vrot.lane.b32.xlu0 %v638, 93
        %v1886 = vpop.permute.xlu0 %1885
        %1887 = vrot.lane.b32.xlu0 %v678, 93
        %v1888 = vpop.permute.xlu0 %1887
        %1889 = vrot.lane.b32.xlu0 %v718, 93
        %v1890 = vpop.permute.xlu0 %1889
        %1891 = vrot.lane.b32.xlu0 %v758, 93
        %v1892 = vpop.permute.xlu0 %1891
        %1893 = vrot.lane.b32.xlu0 %v798, 93
        %v1894 = vpop.permute.xlu0 %1893
        %1895 = vrot.lane.b32.xlu0 %v838, 93
        %v1896 = vpop.permute.xlu0 %1895
        %1897 = vrot.lane.b32.xlu0 %v878, 93
        %v1898 = vpop.permute.xlu0 %1897
        %1899 = vrot.lane.b32.xlu0 %v918, 93
        %v1900 = vpop.permute.xlu0 %1899
        %vm1901 = vcmask 760832
        %v1902 = vsel %vm1901, %v1884, %v1886
        %v1903 = vsel %vm1901, %v1886, %v1888
        %v1904 = vsel %vm1901, %v1888, %v1890
        %v1905 = vsel %vm1901, %v1890, %v1892
        %v1906 = vsel %vm1901, %v1892, %v1894
        %v1907 = vsel %vm1901, %v1894, %v1896
        %v1908 = vsel %vm1901, %v1896, %v1898
        %v1909 = vsel %vm1901, %v1898, %v1900
        %v1911 = vsel %vm999, %v1882, 0
        %v1913 = vsel %vm1003, %v1902, 0
        %v1915 = vsel %vm1003, %v1903, 0
        %v1917 = vsel %vm1003, %v1904, 0
        %v1919 = vsel %vm1003, %v1905, 0
        %v1921 = vsel %vm1003, %v1906, 0
        %v1923 = vsel %vm1003, %v1907, 0
        %v1925 = vsel %vm1003, %v1908, 0
        %v1927 = vsel %vm1003, %v1909, 0
        %v1929 = vsel %vm1003, %v1900, 0
        %1931 = vmatpush.msra.mxu0 0.0
        %1932 = vmatpush.msra.mxu0 0.0
        %1933 = vmatpush.msra.mxu0 0.0
        %1934 = vmatpush.msra.mxu0 0.0
        %1935 = vmatpush.msra.mxu0 0.0
        %1936 = vmatpush.msra.mxu0 0.0
        %1937 = vmatpush.msra.mxu0 0.0
        %1938 = vmatpush.msra.mxu0 0.0
        %1939 = vmatpush.msra.mxu0 0.0
        %1940 = vmatpush.msra.mxu0 0.0
        %1941 = vmatpush.msra.mxu0 0.0
        %1942 = vmatpush.msra.mxu0 0.0
        %1943 = vmatpush.msra.mxu0 0.0
        %1944 = vmatpush.msra.mxu0 0.0
        %1945 = vmatpush.msra.mxu0 0.0
        %1946 = vmatpush.msra.mxu0 %v1913
        %1947 = vmatmul.f32.gmra.mxu0 %v1911
        %v1948 = vpop.f32.mrf.mxu0
        %v1949 = vadd.f32 0.0, %v1948
        %1950 = vdwg.mxu0
        %1951 = vmatpush.msra.mxu0 0.0
        %1952 = vmatpush.msra.mxu0 0.0
        %1953 = vmatpush.msra.mxu0 0.0
        %1954 = vmatpush.msra.mxu0 0.0
        %1955 = vmatpush.msra.mxu0 0.0
        %1956 = vmatpush.msra.mxu0 0.0
        %1957 = vmatpush.msra.mxu0 0.0
        %1958 = vmatpush.msra.mxu0 0.0
        %1959 = vmatpush.msra.mxu0 0.0
        %1960 = vmatpush.msra.mxu0 0.0
        %1961 = vmatpush.msra.mxu0 0.0
        %1962 = vmatpush.msra.mxu0 0.0
        %1963 = vmatpush.msra.mxu0 0.0
        %1964 = vmatpush.msra.mxu0 0.0
        %1965 = vmatpush.msra.mxu0 0.0
        %1966 = vmatpush.msra.mxu0 %v1915
        %1967 = vmatmul.f32.gmra.mxu0 %v1911
        %v1968 = vpop.f32.mrf.mxu0
        %v1969 = vadd.f32 0.0, %v1968
        %1970 = vdwg.mxu0
        %1971 = vmatpush.msra.mxu0 0.0
        %1972 = vmatpush.msra.mxu0 0.0
        %1973 = vmatpush.msra.mxu0 0.0
        %1974 = vmatpush.msra.mxu0 0.0
        %1975 = vmatpush.msra.mxu0 0.0
        %1976 = vmatpush.msra.mxu0 0.0
        %1977 = vmatpush.msra.mxu0 0.0
        %1978 = vmatpush.msra.mxu0 0.0
        %1979 = vmatpush.msra.mxu0 0.0
        %1980 = vmatpush.msra.mxu0 0.0
        %1981 = vmatpush.msra.mxu0 0.0
        %1982 = vmatpush.msra.mxu0 0.0
        %1983 = vmatpush.msra.mxu0 0.0
        %1984 = vmatpush.msra.mxu0 0.0
        %1985 = vmatpush.msra.mxu0 0.0
        %1986 = vmatpush.msra.mxu0 %v1917
        %1987 = vmatmul.f32.gmra.mxu0 %v1911
        %v1988 = vpop.f32.mrf.mxu0
        %v1989 = vadd.f32 0.0, %v1988
        %1990 = vdwg.mxu0
        %1991 = vmatpush.msra.mxu0 0.0
        %1992 = vmatpush.msra.mxu0 0.0
        %1993 = vmatpush.msra.mxu0 0.0
        %1994 = vmatpush.msra.mxu0 0.0
        %1995 = vmatpush.msra.mxu0 0.0
        %1996 = vmatpush.msra.mxu0 0.0
        %1997 = vmatpush.msra.mxu0 0.0
        %1998 = vmatpush.msra.mxu0 0.0
        %1999 = vmatpush.msra.mxu0 0.0
        %2000 = vmatpush.msra.mxu0 0.0
        %2001 = vmatpush.msra.mxu0 0.0
        %2002 = vmatpush.msra.mxu0 0.0
        %2003 = vmatpush.msra.mxu0 0.0
        %2004 = vmatpush.msra.mxu0 0.0
        %2005 = vmatpush.msra.mxu0 0.0
        %2006 = vmatpush.msra.mxu0 %v1919
        %2007 = vmatmul.f32.gmra.mxu0 %v1911
        %v2008 = vpop.f32.mrf.mxu0
        %v2009 = vadd.f32 0.0, %v2008
        %2010 = vdwg.mxu0
        %2011 = vmatpush.msra.mxu0 0.0
        %2012 = vmatpush.msra.mxu0 0.0
        %2013 = vmatpush.msra.mxu0 0.0
        %2014 = vmatpush.msra.mxu0 0.0
        %2015 = vmatpush.msra.mxu0 0.0
        %2016 = vmatpush.msra.mxu0 0.0
        %2017 = vmatpush.msra.mxu0 0.0
        %2018 = vmatpush.msra.mxu0 0.0
        %2019 = vmatpush.msra.mxu0 0.0
        %2020 = vmatpush.msra.mxu0 0.0
        %2021 = vmatpush.msra.mxu0 0.0
        %2022 = vmatpush.msra.mxu0 0.0
        %2023 = vmatpush.msra.mxu0 0.0
        %2024 = vmatpush.msra.mxu0 0.0
        %2025 = vmatpush.msra.mxu0 0.0
        %2026 = vmatpush.msra.mxu0 %v1921
        %2027 = vmatmul.f32.gmra.mxu0 %v1911
        %v2028 = vpop.f32.mrf.mxu0
        %v2029 = vadd.f32 0.0, %v2028
        %2030 = vdwg.mxu0
        %2031 = vmatpush.msra.mxu0 0.0
        %2032 = vmatpush.msra.mxu0 0.0
        %2033 = vmatpush.msra.mxu0 0.0
        %2034 = vmatpush.msra.mxu0 0.0
        %2035 = vmatpush.msra.mxu0 0.0
        %2036 = vmatpush.msra.mxu0 0.0
        %2037 = vmatpush.msra.mxu0 0.0
        %2038 = vmatpush.msra.mxu0 0.0
        %2039 = vmatpush.msra.mxu0 0.0
        %2040 = vmatpush.msra.mxu0 0.0
        %2041 = vmatpush.msra.mxu0 0.0
        %2042 = vmatpush.msra.mxu0 0.0
        %2043 = vmatpush.msra.mxu0 0.0
        %2044 = vmatpush.msra.mxu0 0.0
        %2045 = vmatpush.msra.mxu0 0.0
        %2046 = vmatpush.msra.mxu0 %v1923
        %2047 = vmatmul.f32.gmra.mxu0 %v1911
        %v2048 = vpop.f32.mrf.mxu0
        %v2049 = vadd.f32 0.0, %v2048
        %2050 = vdwg.mxu0
        %2051 = vmatpush.msra.mxu0 0.0
        %2052 = vmatpush.msra.mxu0 0.0
        %2053 = vmatpush.msra.mxu0 0.0
        %2054 = vmatpush.msra.mxu0 0.0
        %2055 = vmatpush.msra.mxu0 0.0
        %2056 = vmatpush.msra.mxu0 0.0
        %2057 = vmatpush.msra.mxu0 0.0
        %2058 = vmatpush.msra.mxu0 0.0
        %2059 = vmatpush.msra.mxu0 0.0
        %2060 = vmatpush.msra.mxu0 0.0
        %2061 = vmatpush.msra.mxu0 0.0
        %2062 = vmatpush.msra.mxu0 0.0
        %2063 = vmatpush.msra.mxu0 0.0
        %2064 = vmatpush.msra.mxu0 0.0
        %2065 = vmatpush.msra.mxu0 0.0
        %2066 = vmatpush.msra.mxu0 %v1925
        %2067 = vmatmul.f32.gmra.mxu0 %v1911
        %v2068 = vpop.f32.mrf.mxu0
        %v2069 = vadd.f32 0.0, %v2068
        %2070 = vdwg.mxu0
        %2071 = vmatpush.msra.mxu0 0.0
        %2072 = vmatpush.msra.mxu0 0.0
        %2073 = vmatpush.msra.mxu0 0.0
        %2074 = vmatpush.msra.mxu0 0.0
        %2075 = vmatpush.msra.mxu0 0.0
        %2076 = vmatpush.msra.mxu0 0.0
        %2077 = vmatpush.msra.mxu0 0.0
        %2078 = vmatpush.msra.mxu0 0.0
        %2079 = vmatpush.msra.mxu0 0.0
        %2080 = vmatpush.msra.mxu0 0.0
        %2081 = vmatpush.msra.mxu0 0.0
        %2082 = vmatpush.msra.mxu0 0.0
        %2083 = vmatpush.msra.mxu0 0.0
        %2084 = vmatpush.msra.mxu0 0.0
        %2085 = vmatpush.msra.mxu0 0.0
        %2086 = vmatpush.msra.mxu0 %v1927
        %2087 = vmatmul.f32.gmra.mxu0 %v1911
        %v2088 = vpop.f32.mrf.mxu0
        %v2089 = vadd.f32 0.0, %v2088
        %2090 = vdwg.mxu0
        %2091 = vmatpush.msra.mxu0 0.0
        %2092 = vmatpush.msra.mxu0 0.0
        %2093 = vmatpush.msra.mxu0 0.0
        %2094 = vmatpush.msra.mxu0 0.0
        %2095 = vmatpush.msra.mxu0 0.0
        %2096 = vmatpush.msra.mxu0 0.0
        %2097 = vmatpush.msra.mxu0 0.0
        %2098 = vmatpush.msra.mxu0 0.0
        %2099 = vmatpush.msra.mxu0 0.0
        %2100 = vmatpush.msra.mxu0 0.0
        %2101 = vmatpush.msra.mxu0 0.0
        %2102 = vmatpush.msra.mxu0 0.0
        %2103 = vmatpush.msra.mxu0 0.0
        %2104 = vmatpush.msra.mxu0 0.0
        %2105 = vmatpush.msra.mxu0 0.0
        %2106 = vmatpush.msra.mxu0 %v1929
        %2107 = vmatmul.f32.gmra.mxu0 %v1911
        %v2108 = vpop.f32.mrf.mxu0
        %v2109 = vadd.f32 0.0, %v2108
        %2110 = vdwg.mxu0
        %v2111 = vadd.f32 %v1872, %v1949
        %v2112 = vadd.f32 %v1873, %v1969
        %v2113 = vadd.f32 %v1874, %v1989
        %v2114 = vadd.f32 %v1875, %v2009
        %v2115 = vadd.f32 %v1876, %v2029
        %v2116 = vadd.f32 %v1877, %v2049
        %v2117 = vadd.f32 %v1878, %v2069
        %v2118 = vadd.f32 %v1879, %v2089
        %v2119 = vadd.f32 %v1880, %v2109
        %s2120 = scalar_lea.vmem %s2, 40
        %v2121 = vld [vmem:[%s2120] sm:$0xff]
        %2122 = vrot.lane.b32.xlu0 %v598, 92
        %v2123 = vpop.permute.xlu0 %2122
        %2124 = vrot.lane.b32.xlu0 %v638, 92
        %v2125 = vpop.permute.xlu0 %2124
        %2126 = vrot.lane.b32.xlu0 %v678, 92
        %v2127 = vpop.permute.xlu0 %2126
        %2128 = vrot.lane.b32.xlu0 %v718, 92
        %v2129 = vpop.permute.xlu0 %2128
        %2130 = vrot.lane.b32.xlu0 %v758, 92
        %v2131 = vpop.permute.xlu0 %2130
        %2132 = vrot.lane.b32.xlu0 %v798, 92
        %v2133 = vpop.permute.xlu0 %2132
        %2134 = vrot.lane.b32.xlu0 %v838, 92
        %v2135 = vpop.permute.xlu0 %2134
        %2136 = vrot.lane.b32.xlu0 %v878, 92
        %v2137 = vpop.permute.xlu0 %2136
        %2138 = vrot.lane.b32.xlu0 %v918, 92
        %v2139 = vpop.permute.xlu0 %2138
        %vm2140 = vcmask 752640
        %v2141 = vsel %vm2140, %v2123, %v2125
        %v2142 = vsel %vm2140, %v2125, %v2127
        %v2143 = vsel %vm2140, %v2127, %v2129
        %v2144 = vsel %vm2140, %v2129, %v2131
        %v2145 = vsel %vm2140, %v2131, %v2133
        %v2146 = vsel %vm2140, %v2133, %v2135
        %v2147 = vsel %vm2140, %v2135, %v2137
        %v2148 = vsel %vm2140, %v2137, %v2139
        %v2150 = vsel %vm999, %v2121, 0
        %v2152 = vsel %vm1003, %v2141, 0
        %v2154 = vsel %vm1003, %v2142, 0
        %v2156 = vsel %vm1003, %v2143, 0
        %v2158 = vsel %vm1003, %v2144, 0
        %v2160 = vsel %vm1003, %v2145, 0
        %v2162 = vsel %vm1003, %v2146, 0
        %v2164 = vsel %vm1003, %v2147, 0
        %v2166 = vsel %vm1003, %v2148, 0
        %v2168 = vsel %vm1003, %v2139, 0
        %2170 = vmatpush.msra.mxu0 0.0
        %2171 = vmatpush.msra.mxu0 0.0
        %2172 = vmatpush.msra.mxu0 0.0
        %2173 = vmatpush.msra.mxu0 0.0
        %2174 = vmatpush.msra.mxu0 0.0
        %2175 = vmatpush.msra.mxu0 0.0
        %2176 = vmatpush.msra.mxu0 0.0
        %2177 = vmatpush.msra.mxu0 0.0
        %2178 = vmatpush.msra.mxu0 0.0
        %2179 = vmatpush.msra.mxu0 0.0
        %2180 = vmatpush.msra.mxu0 0.0
        %2181 = vmatpush.msra.mxu0 0.0
        %2182 = vmatpush.msra.mxu0 0.0
        %2183 = vmatpush.msra.mxu0 0.0
        %2184 = vmatpush.msra.mxu0 0.0
        %2185 = vmatpush.msra.mxu0 %v2152
        %2186 = vmatmul.f32.gmra.mxu0 %v2150
        %v2187 = vpop.f32.mrf.mxu0
        %v2188 = vadd.f32 0.0, %v2187
        %2189 = vdwg.mxu0
        %2190 = vmatpush.msra.mxu0 0.0
        %2191 = vmatpush.msra.mxu0 0.0
        %2192 = vmatpush.msra.mxu0 0.0
        %2193 = vmatpush.msra.mxu0 0.0
        %2194 = vmatpush.msra.mxu0 0.0
        %2195 = vmatpush.msra.mxu0 0.0
        %2196 = vmatpush.msra.mxu0 0.0
        %2197 = vmatpush.msra.mxu0 0.0
        %2198 = vmatpush.msra.mxu0 0.0
        %2199 = vmatpush.msra.mxu0 0.0
        %2200 = vmatpush.msra.mxu0 0.0
        %2201 = vmatpush.msra.mxu0 0.0
        %2202 = vmatpush.msra.mxu0 0.0
        %2203 = vmatpush.msra.mxu0 0.0
        %2204 = vmatpush.msra.mxu0 0.0
        %2205 = vmatpush.msra.mxu0 %v2154
        %2206 = vmatmul.f32.gmra.mxu0 %v2150
        %v2207 = vpop.f32.mrf.mxu0
        %v2208 = vadd.f32 0.0, %v2207
        %2209 = vdwg.mxu0
        %2210 = vmatpush.msra.mxu0 0.0
        %2211 = vmatpush.msra.mxu0 0.0
        %2212 = vmatpush.msra.mxu0 0.0
        %2213 = vmatpush.msra.mxu0 0.0
        %2214 = vmatpush.msra.mxu0 0.0
        %2215 = vmatpush.msra.mxu0 0.0
        %2216 = vmatpush.msra.mxu0 0.0
        %2217 = vmatpush.msra.mxu0 0.0
        %2218 = vmatpush.msra.mxu0 0.0
        %2219 = vmatpush.msra.mxu0 0.0
        %2220 = vmatpush.msra.mxu0 0.0
        %2221 = vmatpush.msra.mxu0 0.0
        %2222 = vmatpush.msra.mxu0 0.0
        %2223 = vmatpush.msra.mxu0 0.0
        %2224 = vmatpush.msra.mxu0 0.0
        %2225 = vmatpush.msra.mxu0 %v2156
        %2226 = vmatmul.f32.gmra.mxu0 %v2150
        %v2227 = vpop.f32.mrf.mxu0
        %v2228 = vadd.f32 0.0, %v2227
        %2229 = vdwg.mxu0
        %2230 = vmatpush.msra.mxu0 0.0
        %2231 = vmatpush.msra.mxu0 0.0
        %2232 = vmatpush.msra.mxu0 0.0
        %2233 = vmatpush.msra.mxu0 0.0
        %2234 = vmatpush.msra.mxu0 0.0
        %2235 = vmatpush.msra.mxu0 0.0
        %2236 = vmatpush.msra.mxu0 0.0
        %2237 = vmatpush.msra.mxu0 0.0
        %2238 = vmatpush.msra.mxu0 0.0
        %2239 = vmatpush.msra.mxu0 0.0
        %2240 = vmatpush.msra.mxu0 0.0
        %2241 = vmatpush.msra.mxu0 0.0
        %2242 = vmatpush.msra.mxu0 0.0
        %2243 = vmatpush.msra.mxu0 0.0
        %2244 = vmatpush.msra.mxu0 0.0
        %2245 = vmatpush.msra.mxu0 %v2158
        %2246 = vmatmul.f32.gmra.mxu0 %v2150
        %v2247 = vpop.f32.mrf.mxu0
        %v2248 = vadd.f32 0.0, %v2247
        %2249 = vdwg.mxu0
        %2250 = vmatpush.msra.mxu0 0.0
        %2251 = vmatpush.msra.mxu0 0.0
        %2252 = vmatpush.msra.mxu0 0.0
        %2253 = vmatpush.msra.mxu0 0.0
        %2254 = vmatpush.msra.mxu0 0.0
        %2255 = vmatpush.msra.mxu0 0.0
        %2256 = vmatpush.msra.mxu0 0.0
        %2257 = vmatpush.msra.mxu0 0.0
        %2258 = vmatpush.msra.mxu0 0.0
        %2259 = vmatpush.msra.mxu0 0.0
        %2260 = vmatpush.msra.mxu0 0.0
        %2261 = vmatpush.msra.mxu0 0.0
        %2262 = vmatpush.msra.mxu0 0.0
        %2263 = vmatpush.msra.mxu0 0.0
        %2264 = vmatpush.msra.mxu0 0.0
        %2265 = vmatpush.msra.mxu0 %v2160
        %2266 = vmatmul.f32.gmra.mxu0 %v2150
        %v2267 = vpop.f32.mrf.mxu0
        %v2268 = vadd.f32 0.0, %v2267
        %2269 = vdwg.mxu0
        %2270 = vmatpush.msra.mxu0 0.0
        %2271 = vmatpush.msra.mxu0 0.0
        %2272 = vmatpush.msra.mxu0 0.0
        %2273 = vmatpush.msra.mxu0 0.0
        %2274 = vmatpush.msra.mxu0 0.0
        %2275 = vmatpush.msra.mxu0 0.0
        %2276 = vmatpush.msra.mxu0 0.0
        %2277 = vmatpush.msra.mxu0 0.0
        %2278 = vmatpush.msra.mxu0 0.0
        %2279 = vmatpush.msra.mxu0 0.0
        %2280 = vmatpush.msra.mxu0 0.0
        %2281 = vmatpush.msra.mxu0 0.0
        %2282 = vmatpush.msra.mxu0 0.0
        %2283 = vmatpush.msra.mxu0 0.0
        %2284 = vmatpush.msra.mxu0 0.0
        %2285 = vmatpush.msra.mxu0 %v2162
        %2286 = vmatmul.f32.gmra.mxu0 %v2150
        %v2287 = vpop.f32.mrf.mxu0
        %v2288 = vadd.f32 0.0, %v2287
        %2289 = vdwg.mxu0
        %2290 = vmatpush.msra.mxu0 0.0
        %2291 = vmatpush.msra.mxu0 0.0
        %2292 = vmatpush.msra.mxu0 0.0
        %2293 = vmatpush.msra.mxu0 0.0
        %2294 = vmatpush.msra.mxu0 0.0
        %2295 = vmatpush.msra.mxu0 0.0
        %2296 = vmatpush.msra.mxu0 0.0
        %2297 = vmatpush.msra.mxu0 0.0
        %2298 = vmatpush.msra.mxu0 0.0
        %2299 = vmatpush.msra.mxu0 0.0
        %2300 = vmatpush.msra.mxu0 0.0
        %2301 = vmatpush.msra.mxu0 0.0
        %2302 = vmatpush.msra.mxu0 0.0
        %2303 = vmatpush.msra.mxu0 0.0
        %2304 = vmatpush.msra.mxu0 0.0
        %2305 = vmatpush.msra.mxu0 %v2164
        %2306 = vmatmul.f32.gmra.mxu0 %v2150
        %v2307 = vpop.f32.mrf.mxu0
        %v2308 = vadd.f32 0.0, %v2307
        %2309 = vdwg.mxu0
        %2310 = vmatpush.msra.mxu0 0.0
        %2311 = vmatpush.msra.mxu0 0.0
        %2312 = vmatpush.msra.mxu0 0.0
        %2313 = vmatpush.msra.mxu0 0.0
        %2314 = vmatpush.msra.mxu0 0.0
        %2315 = vmatpush.msra.mxu0 0.0
        %2316 = vmatpush.msra.mxu0 0.0
        %2317 = vmatpush.msra.mxu0 0.0
        %2318 = vmatpush.msra.mxu0 0.0
        %2319 = vmatpush.msra.mxu0 0.0
        %2320 = vmatpush.msra.mxu0 0.0
        %2321 = vmatpush.msra.mxu0 0.0
        %2322 = vmatpush.msra.mxu0 0.0
        %2323 = vmatpush.msra.mxu0 0.0
        %2324 = vmatpush.msra.mxu0 0.0
        %2325 = vmatpush.msra.mxu0 %v2166
        %2326 = vmatmul.f32.gmra.mxu0 %v2150
        %v2327 = vpop.f32.mrf.mxu0
        %v2328 = vadd.f32 0.0, %v2327
        %2329 = vdwg.mxu0
        %2330 = vmatpush.msra.mxu0 0.0
        %2331 = vmatpush.msra.mxu0 0.0
        %2332 = vmatpush.msra.mxu0 0.0
        %2333 = vmatpush.msra.mxu0 0.0
        %2334 = vmatpush.msra.mxu0 0.0
        %2335 = vmatpush.msra.mxu0 0.0
        %2336 = vmatpush.msra.mxu0 0.0
        %2337 = vmatpush.msra.mxu0 0.0
        %2338 = vmatpush.msra.mxu0 0.0
        %2339 = vmatpush.msra.mxu0 0.0
        %2340 = vmatpush.msra.mxu0 0.0
        %2341 = vmatpush.msra.mxu0 0.0
        %2342 = vmatpush.msra.mxu0 0.0
        %2343 = vmatpush.msra.mxu0 0.0
        %2344 = vmatpush.msra.mxu0 0.0
        %2345 = vmatpush.msra.mxu0 %v2168
        %2346 = vmatmul.f32.gmra.mxu0 %v2150
        %v2347 = vpop.f32.mrf.mxu0
        %v2348 = vadd.f32 0.0, %v2347
        %2349 = vdwg.mxu0
        %v2350 = vadd.f32 %v2111, %v2188
        %v2351 = vadd.f32 %v2112, %v2208
        %v2352 = vadd.f32 %v2113, %v2228
        %v2353 = vadd.f32 %v2114, %v2248
        %v2354 = vadd.f32 %v2115, %v2268
        %v2355 = vadd.f32 %v2116, %v2288
        %v2356 = vadd.f32 %v2117, %v2308
        %v2357 = vadd.f32 %v2118, %v2328
        %v2358 = vadd.f32 %v2119, %v2348
        %s2359 = scalar_lea.vmem %s2, 48
        %v2360 = vld [vmem:[%s2359] sm:$0xff]
        %2362 = vrot.lane.b32.xlu0 %v598, 60
        %v2363 = vpop.permute.xlu0 %2362
        %2364 = vrot.lane.b32.xlu0 %v638, 60
        %v2365 = vpop.permute.xlu0 %2364
        %2366 = vrot.lane.b32.xlu0 %v678, 60
        %v2367 = vpop.permute.xlu0 %2366
        %2368 = vrot.lane.b32.xlu0 %v718, 60
        %v2369 = vpop.permute.xlu0 %2368
        %2370 = vrot.lane.b32.xlu0 %v758, 60
        %v2371 = vpop.permute.xlu0 %2370
        %2372 = vrot.lane.b32.xlu0 %v798, 60
        %v2373 = vpop.permute.xlu0 %2372
        %2374 = vrot.lane.b32.xlu0 %v838, 60
        %v2375 = vpop.permute.xlu0 %2374
        %2376 = vrot.lane.b32.xlu0 %v878, 60
        %v2377 = vpop.permute.xlu0 %2376
        %2378 = vrot.lane.b32.xlu0 %v918, 60
        %v2379 = vpop.permute.xlu0 %2378
        %2380 = vrot.lane.b32.xlu0 %v958, 60
        %v2381 = vpop.permute.xlu0 %2380
        %vm2382 = vcmask 490496
        %v2383 = vsel %vm2382, %v2363, %v2365
        %v2384 = vsel %vm2382, %v2365, %v2367
        %v2385 = vsel %vm2382, %v2367, %v2369
        %v2386 = vsel %vm2382, %v2369, %v2371
        %v2387 = vsel %vm2382, %v2371, %v2373
        %v2388 = vsel %vm2382, %v2373, %v2375
        %v2389 = vsel %vm2382, %v2375, %v2377
        %v2390 = vsel %vm2382, %v2377, %v2379
        %v2391 = vsel %vm2382, %v2379, %v2381
        %v2393 = vsel %vm999, %v2360, 0
        %v2395 = vsel %vm1003, %v2383, 0
        %v2397 = vsel %vm1003, %v2384, 0
        %v2399 = vsel %vm1003, %v2385, 0
        %v2401 = vsel %vm1003, %v2386, 0
        %v2403 = vsel %vm1003, %v2387, 0
        %v2405 = vsel %vm1003, %v2388, 0
        %v2407 = vsel %vm1003, %v2389, 0
        %v2409 = vsel %vm1003, %v2390, 0
        %v2411 = vsel %vm1003, %v2391, 0
        %2413 = vmatpush.msra.mxu0 0.0
        %2414 = vmatpush.msra.mxu0 0.0
        %2415 = vmatpush.msra.mxu0 0.0
        %2416 = vmatpush.msra.mxu0 0.0
        %2417 = vmatpush.msra.mxu0 0.0
        %2418 = vmatpush.msra.mxu0 0.0
        %2419 = vmatpush.msra.mxu0 0.0
        %2420 = vmatpush.msra.mxu0 0.0
        %2421 = vmatpush.msra.mxu0 0.0
        %2422 = vmatpush.msra.mxu0 0.0
        %2423 = vmatpush.msra.mxu0 0.0
        %2424 = vmatpush.msra.mxu0 0.0
        %2425 = vmatpush.msra.mxu0 0.0
        %2426 = vmatpush.msra.mxu0 0.0
        %2427 = vmatpush.msra.mxu0 0.0
        %2428 = vmatpush.msra.mxu0 %v2395
        %2429 = vmatmul.f32.gmra.mxu0 %v2393
        %v2430 = vpop.f32.mrf.mxu0
        %v2431 = vadd.f32 0.0, %v2430
        %2432 = vdwg.mxu0
        %2433 = vmatpush.msra.mxu0 0.0
        %2434 = vmatpush.msra.mxu0 0.0
        %2435 = vmatpush.msra.mxu0 0.0
        %2436 = vmatpush.msra.mxu0 0.0
        %2437 = vmatpush.msra.mxu0 0.0
        %2438 = vmatpush.msra.mxu0 0.0
        %2439 = vmatpush.msra.mxu0 0.0
        %2440 = vmatpush.msra.mxu0 0.0
        %2441 = vmatpush.msra.mxu0 0.0
        %2442 = vmatpush.msra.mxu0 0.0
        %2443 = vmatpush.msra.mxu0 0.0
        %2444 = vmatpush.msra.mxu0 0.0
        %2445 = vmatpush.msra.mxu0 0.0
        %2446 = vmatpush.msra.mxu0 0.0
        %2447 = vmatpush.msra.mxu0 0.0
        %2448 = vmatpush.msra.mxu0 %v2397
        %2449 = vmatmul.f32.gmra.mxu0 %v2393
        %v2450 = vpop.f32.mrf.mxu0
        %v2451 = vadd.f32 0.0, %v2450
        %2452 = vdwg.mxu0
        %2453 = vmatpush.msra.mxu0 0.0
        %2454 = vmatpush.msra.mxu0 0.0
        %2455 = vmatpush.msra.mxu0 0.0
        %2456 = vmatpush.msra.mxu0 0.0
        %2457 = vmatpush.msra.mxu0 0.0
        %2458 = vmatpush.msra.mxu0 0.0
        %2459 = vmatpush.msra.mxu0 0.0
        %2460 = vmatpush.msra.mxu0 0.0
        %2461 = vmatpush.msra.mxu0 0.0
        %2462 = vmatpush.msra.mxu0 0.0
        %2463 = vmatpush.msra.mxu0 0.0
        %2464 = vmatpush.msra.mxu0 0.0
        %2465 = vmatpush.msra.mxu0 0.0
        %2466 = vmatpush.msra.mxu0 0.0
        %2467 = vmatpush.msra.mxu0 0.0
        %2468 = vmatpush.msra.mxu0 %v2399
        %2469 = vmatmul.f32.gmra.mxu0 %v2393
        %v2470 = vpop.f32.mrf.mxu0
        %v2471 = vadd.f32 0.0, %v2470
        %2472 = vdwg.mxu0
        %2473 = vmatpush.msra.mxu0 0.0
        %2474 = vmatpush.msra.mxu0 0.0
        %2475 = vmatpush.msra.mxu0 0.0
        %2476 = vmatpush.msra.mxu0 0.0
        %2477 = vmatpush.msra.mxu0 0.0
        %2478 = vmatpush.msra.mxu0 0.0
        %2479 = vmatpush.msra.mxu0 0.0
        %2480 = vmatpush.msra.mxu0 0.0
        %2481 = vmatpush.msra.mxu0 0.0
        %2482 = vmatpush.msra.mxu0 0.0
        %2483 = vmatpush.msra.mxu0 0.0
        %2484 = vmatpush.msra.mxu0 0.0
        %2485 = vmatpush.msra.mxu0 0.0
        %2486 = vmatpush.msra.mxu0 0.0
        %2487 = vmatpush.msra.mxu0 0.0
        %2488 = vmatpush.msra.mxu0 %v2401
        %2489 = vmatmul.f32.gmra.mxu0 %v2393
        %v2490 = vpop.f32.mrf.mxu0
        %v2491 = vadd.f32 0.0, %v2490
        %2492 = vdwg.mxu0
        %2493 = vmatpush.msra.mxu0 0.0
        %2494 = vmatpush.msra.mxu0 0.0
        %2495 = vmatpush.msra.mxu0 0.0
        %2496 = vmatpush.msra.mxu0 0.0
        %2497 = vmatpush.msra.mxu0 0.0
        %2498 = vmatpush.msra.mxu0 0.0
        %2499 = vmatpush.msra.mxu0 0.0
        %2500 = vmatpush.msra.mxu0 0.0
        %2501 = vmatpush.msra.mxu0 0.0
        %2502 = vmatpush.msra.mxu0 0.0
        %2503 = vmatpush.msra.mxu0 0.0
        %2504 = vmatpush.msra.mxu0 0.0
        %2505 = vmatpush.msra.mxu0 0.0
        %2506 = vmatpush.msra.mxu0 0.0
        %2507 = vmatpush.msra.mxu0 0.0
        %2508 = vmatpush.msra.mxu0 %v2403
        %2509 = vmatmul.f32.gmra.mxu0 %v2393
        %v2510 = vpop.f32.mrf.mxu0
        %v2511 = vadd.f32 0.0, %v2510
        %2512 = vdwg.mxu0
        %2513 = vmatpush.msra.mxu0 0.0
        %2514 = vmatpush.msra.mxu0 0.0
        %2515 = vmatpush.msra.mxu0 0.0
        %2516 = vmatpush.msra.mxu0 0.0
        %2517 = vmatpush.msra.mxu0 0.0
        %2518 = vmatpush.msra.mxu0 0.0
        %2519 = vmatpush.msra.mxu0 0.0
        %2520 = vmatpush.msra.mxu0 0.0
        %2521 = vmatpush.msra.mxu0 0.0
        %2522 = vmatpush.msra.mxu0 0.0
        %2523 = vmatpush.msra.mxu0 0.0
        %2524 = vmatpush.msra.mxu0 0.0
        %2525 = vmatpush.msra.mxu0 0.0
        %2526 = vmatpush.msra.mxu0 0.0
        %2527 = vmatpush.msra.mxu0 0.0
        %2528 = vmatpush.msra.mxu0 %v2405
        %2529 = vmatmul.f32.gmra.mxu0 %v2393
        %v2530 = vpop.f32.mrf.mxu0
        %v2531 = vadd.f32 0.0, %v2530
        %2532 = vdwg.mxu0
        %2533 = vmatpush.msra.mxu0 0.0
        %2534 = vmatpush.msra.mxu0 0.0
        %2535 = vmatpush.msra.mxu0 0.0
        %2536 = vmatpush.msra.mxu0 0.0
        %2537 = vmatpush.msra.mxu0 0.0
        %2538 = vmatpush.msra.mxu0 0.0
        %2539 = vmatpush.msra.mxu0 0.0
        %2540 = vmatpush.msra.mxu0 0.0
        %2541 = vmatpush.msra.mxu0 0.0
        %2542 = vmatpush.msra.mxu0 0.0
        %2543 = vmatpush.msra.mxu0 0.0
        %2544 = vmatpush.msra.mxu0 0.0
        %2545 = vmatpush.msra.mxu0 0.0
        %2546 = vmatpush.msra.mxu0 0.0
        %2547 = vmatpush.msra.mxu0 0.0
        %2548 = vmatpush.msra.mxu0 %v2407
        %2549 = vmatmul.f32.gmra.mxu0 %v2393
        %v2550 = vpop.f32.mrf.mxu0
        %v2551 = vadd.f32 0.0, %v2550
        %2552 = vdwg.mxu0
        %2553 = vmatpush.msra.mxu0 0.0
        %2554 = vmatpush.msra.mxu0 0.0
        %2555 = vmatpush.msra.mxu0 0.0
        %2556 = vmatpush.msra.mxu0 0.0
        %2557 = vmatpush.msra.mxu0 0.0
        %2558 = vmatpush.msra.mxu0 0.0
        %2559 = vmatpush.msra.mxu0 0.0
        %2560 = vmatpush.msra.mxu0 0.0
        %2561 = vmatpush.msra.mxu0 0.0
        %2562 = vmatpush.msra.mxu0 0.0
        %2563 = vmatpush.msra.mxu0 0.0
        %2564 = vmatpush.msra.mxu0 0.0
        %2565 = vmatpush.msra.mxu0 0.0
        %2566 = vmatpush.msra.mxu0 0.0
        %2567 = vmatpush.msra.mxu0 0.0
        %2568 = vmatpush.msra.mxu0 %v2409
        %2569 = vmatmul.f32.gmra.mxu0 %v2393
        %v2570 = vpop.f32.mrf.mxu0
        %v2571 = vadd.f32 0.0, %v2570
        %2572 = vdwg.mxu0
        %2573 = vmatpush.msra.mxu0 0.0
        %2574 = vmatpush.msra.mxu0 0.0
        %2575 = vmatpush.msra.mxu0 0.0
        %2576 = vmatpush.msra.mxu0 0.0
        %2577 = vmatpush.msra.mxu0 0.0
        %2578 = vmatpush.msra.mxu0 0.0
        %2579 = vmatpush.msra.mxu0 0.0
        %2580 = vmatpush.msra.mxu0 0.0
        %2581 = vmatpush.msra.mxu0 0.0
        %2582 = vmatpush.msra.mxu0 0.0
        %2583 = vmatpush.msra.mxu0 0.0
        %2584 = vmatpush.msra.mxu0 0.0
        %2585 = vmatpush.msra.mxu0 0.0
        %2586 = vmatpush.msra.mxu0 0.0
        %2587 = vmatpush.msra.mxu0 0.0
        %2588 = vmatpush.msra.mxu0 %v2411
        %2589 = vmatmul.f32.gmra.mxu0 %v2393
        %v2590 = vpop.f32.mrf.mxu0
        %v2591 = vadd.f32 0.0, %v2590
        %2592 = vdwg.mxu0
        %v2593 = vadd.f32 %v2350, %v2431
        %v2594 = vadd.f32 %v2351, %v2451
        %v2595 = vadd.f32 %v2352, %v2471
        %v2596 = vadd.f32 %v2353, %v2491
        %v2597 = vadd.f32 %v2354, %v2511
        %v2598 = vadd.f32 %v2355, %v2531
        %v2599 = vadd.f32 %v2356, %v2551
        %v2600 = vadd.f32 %v2357, %v2571
        %v2601 = vadd.f32 %v2358, %v2591
        %s2602 = scalar_lea.vmem %s2, 56
        %v2603 = vld [vmem:[%s2602] sm:$0xff]
        %2604 = vrot.lane.b32.xlu0 %v598, 59
        %v2605 = vpop.permute.xlu0 %2604
        %2606 = vrot.lane.b32.xlu0 %v638, 59
        %v2607 = vpop.permute.xlu0 %2606
        %2608 = vrot.lane.b32.xlu0 %v678, 59
        %v2609 = vpop.permute.xlu0 %2608
        %2610 = vrot.lane.b32.xlu0 %v718, 59
        %v2611 = vpop.permute.xlu0 %2610
        %2612 = vrot.lane.b32.xlu0 %v758, 59
        %v2613 = vpop.permute.xlu0 %2612
        %2614 = vrot.lane.b32.xlu0 %v798, 59
        %v2615 = vpop.permute.xlu0 %2614
        %2616 = vrot.lane.b32.xlu0 %v838, 59
        %v2617 = vpop.permute.xlu0 %2616
        %2618 = vrot.lane.b32.xlu0 %v878, 59
        %v2619 = vpop.permute.xlu0 %2618
        %2620 = vrot.lane.b32.xlu0 %v918, 59
        %v2621 = vpop.permute.xlu0 %2620
        %2622 = vrot.lane.b32.xlu0 %v958, 59
        %v2623 = vpop.permute.xlu0 %2622
        %vm2624 = vcmask 482304
        %v2625 = vsel %vm2624, %v2605, %v2607
        %v2626 = vsel %vm2624, %v2607, %v2609
        %v2627 = vsel %vm2624, %v2609, %v2611
        %v2628 = vsel %vm2624, %v2611, %v2613
        %v2629 = vsel %vm2624, %v2613, %v2615
        %v2630 = vsel %vm2624, %v2615, %v2617
        %v2631 = vsel %vm2624, %v2617, %v2619
        %v2632 = vsel %vm2624, %v2619, %v2621
        %v2633 = vsel %vm2624, %v2621, %v2623
        %v2635 = vsel %vm999, %v2603, 0
        %v2637 = vsel %vm1003, %v2625, 0
        %v2639 = vsel %vm1003, %v2626, 0
        %v2641 = vsel %vm1003, %v2627, 0
        %v2643 = vsel %vm1003, %v2628, 0
        %v2645 = vsel %vm1003, %v2629, 0
        %v2647 = vsel %vm1003, %v2630, 0
        %v2649 = vsel %vm1003, %v2631, 0
        %v2651 = vsel %vm1003, %v2632, 0
        %v2653 = vsel %vm1003, %v2633, 0
        %2655 = vmatpush.msra.mxu0 0.0
        %2656 = vmatpush.msra.mxu0 0.0
        %2657 = vmatpush.msra.mxu0 0.0
        %2658 = vmatpush.msra.mxu0 0.0
        %2659 = vmatpush.msra.mxu0 0.0
        %2660 = vmatpush.msra.mxu0 0.0
        %2661 = vmatpush.msra.mxu0 0.0
        %2662 = vmatpush.msra.mxu0 0.0
        %2663 = vmatpush.msra.mxu0 0.0
        %2664 = vmatpush.msra.mxu0 0.0
        %2665 = vmatpush.msra.mxu0 0.0
        %2666 = vmatpush.msra.mxu0 0.0
        %2667 = vmatpush.msra.mxu0 0.0
        %2668 = vmatpush.msra.mxu0 0.0
        %2669 = vmatpush.msra.mxu0 0.0
        %2670 = vmatpush.msra.mxu0 %v2637
        %2671 = vmatmul.f32.gmra.mxu0 %v2635
        %v2672 = vpop.f32.mrf.mxu0
        %v2673 = vadd.f32 0.0, %v2672
        %2674 = vdwg.mxu0
        %2675 = vmatpush.msra.mxu0 0.0
        %2676 = vmatpush.msra.mxu0 0.0
        %2677 = vmatpush.msra.mxu0 0.0
        %2678 = vmatpush.msra.mxu0 0.0
        %2679 = vmatpush.msra.mxu0 0.0
        %2680 = vmatpush.msra.mxu0 0.0
        %2681 = vmatpush.msra.mxu0 0.0
        %2682 = vmatpush.msra.mxu0 0.0
        %2683 = vmatpush.msra.mxu0 0.0
        %2684 = vmatpush.msra.mxu0 0.0
        %2685 = vmatpush.msra.mxu0 0.0
        %2686 = vmatpush.msra.mxu0 0.0
        %2687 = vmatpush.msra.mxu0 0.0
        %2688 = vmatpush.msra.mxu0 0.0
        %2689 = vmatpush.msra.mxu0 0.0
        %2690 = vmatpush.msra.mxu0 %v2639
        %2691 = vmatmul.f32.gmra.mxu0 %v2635
        %v2692 = vpop.f32.mrf.mxu0
        %v2693 = vadd.f32 0.0, %v2692
        %2694 = vdwg.mxu0
        %2695 = vmatpush.msra.mxu0 0.0
        %2696 = vmatpush.msra.mxu0 0.0
        %2697 = vmatpush.msra.mxu0 0.0
        %2698 = vmatpush.msra.mxu0 0.0
        %2699 = vmatpush.msra.mxu0 0.0
        %2700 = vmatpush.msra.mxu0 0.0
        %2701 = vmatpush.msra.mxu0 0.0
        %2702 = vmatpush.msra.mxu0 0.0
        %2703 = vmatpush.msra.mxu0 0.0
        %2704 = vmatpush.msra.mxu0 0.0
        %2705 = vmatpush.msra.mxu0 0.0
        %2706 = vmatpush.msra.mxu0 0.0
        %2707 = vmatpush.msra.mxu0 0.0
        %2708 = vmatpush.msra.mxu0 0.0
        %2709 = vmatpush.msra.mxu0 0.0
        %2710 = vmatpush.msra.mxu0 %v2641
        %2711 = vmatmul.f32.gmra.mxu0 %v2635
        %v2712 = vpop.f32.mrf.mxu0
        %v2713 = vadd.f32 0.0, %v2712
        %2714 = vdwg.mxu0
        %2715 = vmatpush.msra.mxu0 0.0
        %2716 = vmatpush.msra.mxu0 0.0
        %2717 = vmatpush.msra.mxu0 0.0
        %2718 = vmatpush.msra.mxu0 0.0
        %2719 = vmatpush.msra.mxu0 0.0
        %2720 = vmatpush.msra.mxu0 0.0
        %2721 = vmatpush.msra.mxu0 0.0
        %2722 = vmatpush.msra.mxu0 0.0
        %2723 = vmatpush.msra.mxu0 0.0
        %2724 = vmatpush.msra.mxu0 0.0
        %2725 = vmatpush.msra.mxu0 0.0
        %2726 = vmatpush.msra.mxu0 0.0
        %2727 = vmatpush.msra.mxu0 0.0
        %2728 = vmatpush.msra.mxu0 0.0
        %2729 = vmatpush.msra.mxu0 0.0
        %2730 = vmatpush.msra.mxu0 %v2643
        %2731 = vmatmul.f32.gmra.mxu0 %v2635
        %v2732 = vpop.f32.mrf.mxu0
        %v2733 = vadd.f32 0.0, %v2732
        %2734 = vdwg.mxu0
        %2735 = vmatpush.msra.mxu0 0.0
        %2736 = vmatpush.msra.mxu0 0.0
        %2737 = vmatpush.msra.mxu0 0.0
        %2738 = vmatpush.msra.mxu0 0.0
        %2739 = vmatpush.msra.mxu0 0.0
        %2740 = vmatpush.msra.mxu0 0.0
        %2741 = vmatpush.msra.mxu0 0.0
        %2742 = vmatpush.msra.mxu0 0.0
        %2743 = vmatpush.msra.mxu0 0.0
        %2744 = vmatpush.msra.mxu0 0.0
        %2745 = vmatpush.msra.mxu0 0.0
        %2746 = vmatpush.msra.mxu0 0.0
        %2747 = vmatpush.msra.mxu0 0.0
        %2748 = vmatpush.msra.mxu0 0.0
        %2749 = vmatpush.msra.mxu0 0.0
        %2750 = vmatpush.msra.mxu0 %v2645
        %2751 = vmatmul.f32.gmra.mxu0 %v2635
        %v2752 = vpop.f32.mrf.mxu0
        %v2753 = vadd.f32 0.0, %v2752
        %2754 = vdwg.mxu0
        %2755 = vmatpush.msra.mxu0 0.0
        %2756 = vmatpush.msra.mxu0 0.0
        %2757 = vmatpush.msra.mxu0 0.0
        %2758 = vmatpush.msra.mxu0 0.0
        %2759 = vmatpush.msra.mxu0 0.0
        %2760 = vmatpush.msra.mxu0 0.0
        %2761 = vmatpush.msra.mxu0 0.0
        %2762 = vmatpush.msra.mxu0 0.0
        %2763 = vmatpush.msra.mxu0 0.0
        %2764 = vmatpush.msra.mxu0 0.0
        %2765 = vmatpush.msra.mxu0 0.0
        %2766 = vmatpush.msra.mxu0 0.0
        %2767 = vmatpush.msra.mxu0 0.0
        %2768 = vmatpush.msra.mxu0 0.0
        %2769 = vmatpush.msra.mxu0 0.0
        %2770 = vmatpush.msra.mxu0 %v2647
        %2771 = vmatmul.f32.gmra.mxu0 %v2635
        %v2772 = vpop.f32.mrf.mxu0
        %v2773 = vadd.f32 0.0, %v2772
        %2774 = vdwg.mxu0
        %2775 = vmatpush.msra.mxu0 0.0
        %2776 = vmatpush.msra.mxu0 0.0
        %2777 = vmatpush.msra.mxu0 0.0
        %2778 = vmatpush.msra.mxu0 0.0
        %2779 = vmatpush.msra.mxu0 0.0
        %2780 = vmatpush.msra.mxu0 0.0
        %2781 = vmatpush.msra.mxu0 0.0
        %2782 = vmatpush.msra.mxu0 0.0
        %2783 = vmatpush.msra.mxu0 0.0
        %2784 = vmatpush.msra.mxu0 0.0
        %2785 = vmatpush.msra.mxu0 0.0
        %2786 = vmatpush.msra.mxu0 0.0
        %2787 = vmatpush.msra.mxu0 0.0
        %2788 = vmatpush.msra.mxu0 0.0
        %2789 = vmatpush.msra.mxu0 0.0
        %2790 = vmatpush.msra.mxu0 %v2649
        %2791 = vmatmul.f32.gmra.mxu0 %v2635
        %v2792 = vpop.f32.mrf.mxu0
        %v2793 = vadd.f32 0.0, %v2792
        %2794 = vdwg.mxu0
        %2795 = vmatpush.msra.mxu0 0.0
        %2796 = vmatpush.msra.mxu0 0.0
        %2797 = vmatpush.msra.mxu0 0.0
        %2798 = vmatpush.msra.mxu0 0.0
        %2799 = vmatpush.msra.mxu0 0.0
        %2800 = vmatpush.msra.mxu0 0.0
        %2801 = vmatpush.msra.mxu0 0.0
        %2802 = vmatpush.msra.mxu0 0.0
        %2803 = vmatpush.msra.mxu0 0.0
        %2804 = vmatpush.msra.mxu0 0.0
        %2805 = vmatpush.msra.mxu0 0.0
        %2806 = vmatpush.msra.mxu0 0.0
        %2807 = vmatpush.msra.mxu0 0.0
        %2808 = vmatpush.msra.mxu0 0.0
        %2809 = vmatpush.msra.mxu0 0.0
        %2810 = vmatpush.msra.mxu0 %v2651
        %2811 = vmatmul.f32.gmra.mxu0 %v2635
        %v2812 = vpop.f32.mrf.mxu0
        %v2813 = vadd.f32 0.0, %v2812
        %2814 = vdwg.mxu0
        %2815 = vmatpush.msra.mxu0 0.0
        %2816 = vmatpush.msra.mxu0 0.0
        %2817 = vmatpush.msra.mxu0 0.0
        %2818 = vmatpush.msra.mxu0 0.0
        %2819 = vmatpush.msra.mxu0 0.0
        %2820 = vmatpush.msra.mxu0 0.0
        %2821 = vmatpush.msra.mxu0 0.0
        %2822 = vmatpush.msra.mxu0 0.0
        %2823 = vmatpush.msra.mxu0 0.0
        %2824 = vmatpush.msra.mxu0 0.0
        %2825 = vmatpush.msra.mxu0 0.0
        %2826 = vmatpush.msra.mxu0 0.0
        %2827 = vmatpush.msra.mxu0 0.0
        %2828 = vmatpush.msra.mxu0 0.0
        %2829 = vmatpush.msra.mxu0 0.0
        %2830 = vmatpush.msra.mxu0 %v2653
        %2831 = vmatmul.f32.gmra.mxu0 %v2635
        %v2832 = vpop.f32.mrf.mxu0
        %v2833 = vadd.f32 0.0, %v2832
        %2834 = vdwg.mxu0
        %v2835 = vadd.f32 %v2593, %v2673
        %v2836 = vadd.f32 %v2594, %v2693
        %v2837 = vadd.f32 %v2595, %v2713
        %v2838 = vadd.f32 %v2596, %v2733
        %v2839 = vadd.f32 %v2597, %v2753
        %v2840 = vadd.f32 %v2598, %v2773
        %v2841 = vadd.f32 %v2599, %v2793
        %v2842 = vadd.f32 %v2600, %v2813
        %v2843 = vadd.f32 %v2601, %v2833
        %s2844 = scalar_lea.vmem %s2, 64
        %v2845 = vld [vmem:[%s2844] sm:$0xff]
        %2846 = vrot.lane.b32.xlu0 %v598, 58
        %v2847 = vpop.permute.xlu0 %2846
        %2848 = vrot.lane.b32.xlu0 %v638, 58
        %v2849 = vpop.permute.xlu0 %2848
        %2850 = vrot.lane.b32.xlu0 %v678, 58
        %v2851 = vpop.permute.xlu0 %2850
        %2852 = vrot.lane.b32.xlu0 %v718, 58
        %v2853 = vpop.permute.xlu0 %2852
        %2854 = vrot.lane.b32.xlu0 %v758, 58
        %v2855 = vpop.permute.xlu0 %2854
        %2856 = vrot.lane.b32.xlu0 %v798, 58
        %v2857 = vpop.permute.xlu0 %2856
        %2858 = vrot.lane.b32.xlu0 %v838, 58
        %v2859 = vpop.permute.xlu0 %2858
        %2860 = vrot.lane.b32.xlu0 %v878, 58
        %v2861 = vpop.permute.xlu0 %2860
        %2862 = vrot.lane.b32.xlu0 %v918, 58
        %v2863 = vpop.permute.xlu0 %2862
        %2864 = vrot.lane.b32.xlu0 %v958, 58
        %v2865 = vpop.permute.xlu0 %2864
        %vm2866 = vcmask 474112
        %v2867 = vsel %vm2866, %v2847, %v2849
        %v2868 = vsel %vm2866, %v2849, %v2851
        %v2869 = vsel %vm2866, %v2851, %v2853
        %v2870 = vsel %vm2866, %v2853, %v2855
        %v2871 = vsel %vm2866, %v2855, %v2857
        %v2872 = vsel %vm2866, %v2857, %v2859
        %v2873 = vsel %vm2866, %v2859, %v2861
        %v2874 = vsel %vm2866, %v2861, %v2863
        %v2875 = vsel %vm2866, %v2863, %v2865
        %v2877 = vsel %vm999, %v2845, 0
        %v2879 = vsel %vm1003, %v2867, 0
        %v2881 = vsel %vm1003, %v2868, 0
        %v2883 = vsel %vm1003, %v2869, 0
        %v2885 = vsel %vm1003, %v2870, 0
        %v2887 = vsel %vm1003, %v2871, 0
        %v2889 = vsel %vm1003, %v2872, 0
        %v2891 = vsel %vm1003, %v2873, 0
        %v2893 = vsel %vm1003, %v2874, 0
        %v2895 = vsel %vm1003, %v2875, 0
        %2897 = vmatpush.msra.mxu0 0.0
        %2898 = vmatpush.msra.mxu0 0.0
        %2899 = vmatpush.msra.mxu0 0.0
        %2900 = vmatpush.msra.mxu0 0.0
        %2901 = vmatpush.msra.mxu0 0.0
        %2902 = vmatpush.msra.mxu0 0.0
        %2903 = vmatpush.msra.mxu0 0.0
        %2904 = vmatpush.msra.mxu0 0.0
        %2905 = vmatpush.msra.mxu0 0.0
        %2906 = vmatpush.msra.mxu0 0.0
        %2907 = vmatpush.msra.mxu0 0.0
        %2908 = vmatpush.msra.mxu0 0.0
        %2909 = vmatpush.msra.mxu0 0.0
        %2910 = vmatpush.msra.mxu0 0.0
        %2911 = vmatpush.msra.mxu0 0.0
        %2912 = vmatpush.msra.mxu0 %v2879
        %2913 = vmatmul.f32.gmra.mxu0 %v2877
        %v2914 = vpop.f32.mrf.mxu0
        %v2915 = vadd.f32 0.0, %v2914
        %2916 = vdwg.mxu0
        %2917 = vmatpush.msra.mxu0 0.0
        %2918 = vmatpush.msra.mxu0 0.0
        %2919 = vmatpush.msra.mxu0 0.0
        %2920 = vmatpush.msra.mxu0 0.0
        %2921 = vmatpush.msra.mxu0 0.0
        %2922 = vmatpush.msra.mxu0 0.0
        %2923 = vmatpush.msra.mxu0 0.0
        %2924 = vmatpush.msra.mxu0 0.0
        %2925 = vmatpush.msra.mxu0 0.0
        %2926 = vmatpush.msra.mxu0 0.0
        %2927 = vmatpush.msra.mxu0 0.0
        %2928 = vmatpush.msra.mxu0 0.0
        %2929 = vmatpush.msra.mxu0 0.0
        %2930 = vmatpush.msra.mxu0 0.0
        %2931 = vmatpush.msra.mxu0 0.0
        %2932 = vmatpush.msra.mxu0 %v2881
        %2933 = vmatmul.f32.gmra.mxu0 %v2877
        %v2934 = vpop.f32.mrf.mxu0
        %v2935 = vadd.f32 0.0, %v2934
        %2936 = vdwg.mxu0
        %2937 = vmatpush.msra.mxu0 0.0
        %2938 = vmatpush.msra.mxu0 0.0
        %2939 = vmatpush.msra.mxu0 0.0
        %2940 = vmatpush.msra.mxu0 0.0
        %2941 = vmatpush.msra.mxu0 0.0
        %2942 = vmatpush.msra.mxu0 0.0
        %2943 = vmatpush.msra.mxu0 0.0
        %2944 = vmatpush.msra.mxu0 0.0
        %2945 = vmatpush.msra.mxu0 0.0
        %2946 = vmatpush.msra.mxu0 0.0
        %2947 = vmatpush.msra.mxu0 0.0
        %2948 = vmatpush.msra.mxu0 0.0
        %2949 = vmatpush.msra.mxu0 0.0
        %2950 = vmatpush.msra.mxu0 0.0
        %2951 = vmatpush.msra.mxu0 0.0
        %2952 = vmatpush.msra.mxu0 %v2883
        %2953 = vmatmul.f32.gmra.mxu0 %v2877
        %v2954 = vpop.f32.mrf.mxu0
        %v2955 = vadd.f32 0.0, %v2954
        %2956 = vdwg.mxu0
        %2957 = vmatpush.msra.mxu0 0.0
        %2958 = vmatpush.msra.mxu0 0.0
        %2959 = vmatpush.msra.mxu0 0.0
        %2960 = vmatpush.msra.mxu0 0.0
        %2961 = vmatpush.msra.mxu0 0.0
        %2962 = vmatpush.msra.mxu0 0.0
        %2963 = vmatpush.msra.mxu0 0.0
        %2964 = vmatpush.msra.mxu0 0.0
        %2965 = vmatpush.msra.mxu0 0.0
        %2966 = vmatpush.msra.mxu0 0.0
        %2967 = vmatpush.msra.mxu0 0.0
        %2968 = vmatpush.msra.mxu0 0.0
        %2969 = vmatpush.msra.mxu0 0.0
        %2970 = vmatpush.msra.mxu0 0.0
        %2971 = vmatpush.msra.mxu0 0.0
        %2972 = vmatpush.msra.mxu0 %v2885
        %2973 = vmatmul.f32.gmra.mxu0 %v2877
        %v2974 = vpop.f32.mrf.mxu0
        %v2975 = vadd.f32 0.0, %v2974
        %2976 = vdwg.mxu0
        %2977 = vmatpush.msra.mxu0 0.0
        %2978 = vmatpush.msra.mxu0 0.0
        %2979 = vmatpush.msra.mxu0 0.0
        %2980 = vmatpush.msra.mxu0 0.0
        %2981 = vmatpush.msra.mxu0 0.0
        %2982 = vmatpush.msra.mxu0 0.0
        %2983 = vmatpush.msra.mxu0 0.0
        %2984 = vmatpush.msra.mxu0 0.0
        %2985 = vmatpush.msra.mxu0 0.0
        %2986 = vmatpush.msra.mxu0 0.0
        %2987 = vmatpush.msra.mxu0 0.0
        %2988 = vmatpush.msra.mxu0 0.0
        %2989 = vmatpush.msra.mxu0 0.0
        %2990 = vmatpush.msra.mxu0 0.0
        %2991 = vmatpush.msra.mxu0 0.0
        %2992 = vmatpush.msra.mxu0 %v2887
        %2993 = vmatmul.f32.gmra.mxu0 %v2877
        %v2994 = vpop.f32.mrf.mxu0
        %v2995 = vadd.f32 0.0, %v2994
        %2996 = vdwg.mxu0
        %2997 = vmatpush.msra.mxu0 0.0
        %2998 = vmatpush.msra.mxu0 0.0
        %2999 = vmatpush.msra.mxu0 0.0
        %3000 = vmatpush.msra.mxu0 0.0
        %3001 = vmatpush.msra.mxu0 0.0
        %3002 = vmatpush.msra.mxu0 0.0
        %3003 = vmatpush.msra.mxu0 0.0
        %3004 = vmatpush.msra.mxu0 0.0
        %3005 = vmatpush.msra.mxu0 0.0
        %3006 = vmatpush.msra.mxu0 0.0
        %3007 = vmatpush.msra.mxu0 0.0
        %3008 = vmatpush.msra.mxu0 0.0
        %3009 = vmatpush.msra.mxu0 0.0
        %3010 = vmatpush.msra.mxu0 0.0
        %3011 = vmatpush.msra.mxu0 0.0
        %3012 = vmatpush.msra.mxu0 %v2889
        %3013 = vmatmul.f32.gmra.mxu0 %v2877
        %v3014 = vpop.f32.mrf.mxu0
        %v3015 = vadd.f32 0.0, %v3014
        %3016 = vdwg.mxu0
        %3017 = vmatpush.msra.mxu0 0.0
        %3018 = vmatpush.msra.mxu0 0.0
        %3019 = vmatpush.msra.mxu0 0.0
        %3020 = vmatpush.msra.mxu0 0.0
        %3021 = vmatpush.msra.mxu0 0.0
        %3022 = vmatpush.msra.mxu0 0.0
        %3023 = vmatpush.msra.mxu0 0.0
        %3024 = vmatpush.msra.mxu0 0.0
        %3025 = vmatpush.msra.mxu0 0.0
        %3026 = vmatpush.msra.mxu0 0.0
        %3027 = vmatpush.msra.mxu0 0.0
        %3028 = vmatpush.msra.mxu0 0.0
        %3029 = vmatpush.msra.mxu0 0.0
        %3030 = vmatpush.msra.mxu0 0.0
        %3031 = vmatpush.msra.mxu0 0.0
        %3032 = vmatpush.msra.mxu0 %v2891
        %3033 = vmatmul.f32.gmra.mxu0 %v2877
        %v3034 = vpop.f32.mrf.mxu0
        %v3035 = vadd.f32 0.0, %v3034
        %3036 = vdwg.mxu0
        %3037 = vmatpush.msra.mxu0 0.0
        %3038 = vmatpush.msra.mxu0 0.0
        %3039 = vmatpush.msra.mxu0 0.0
        %3040 = vmatpush.msra.mxu0 0.0
        %3041 = vmatpush.msra.mxu0 0.0
        %3042 = vmatpush.msra.mxu0 0.0
        %3043 = vmatpush.msra.mxu0 0.0
        %3044 = vmatpush.msra.mxu0 0.0
        %3045 = vmatpush.msra.mxu0 0.0
        %3046 = vmatpush.msra.mxu0 0.0
        %3047 = vmatpush.msra.mxu0 0.0
        %3048 = vmatpush.msra.mxu0 0.0
        %3049 = vmatpush.msra.mxu0 0.0
        %3050 = vmatpush.msra.mxu0 0.0
        %3051 = vmatpush.msra.mxu0 0.0
        %3052 = vmatpush.msra.mxu0 %v2893
        %3053 = vmatmul.f32.gmra.mxu0 %v2877
        %v3054 = vpop.f32.mrf.mxu0
        %v3055 = vadd.f32 0.0, %v3054
        %3056 = vdwg.mxu0
        %3057 = vmatpush.msra.mxu0 0.0
        %3058 = vmatpush.msra.mxu0 0.0
        %3059 = vmatpush.msra.mxu0 0.0
        %3060 = vmatpush.msra.mxu0 0.0
        %3061 = vmatpush.msra.mxu0 0.0
        %3062 = vmatpush.msra.mxu0 0.0
        %3063 = vmatpush.msra.mxu0 0.0
        %3064 = vmatpush.msra.mxu0 0.0
        %3065 = vmatpush.msra.mxu0 0.0
        %3066 = vmatpush.msra.mxu0 0.0
        %3067 = vmatpush.msra.mxu0 0.0
        %3068 = vmatpush.msra.mxu0 0.0
        %3069 = vmatpush.msra.mxu0 0.0
        %3070 = vmatpush.msra.mxu0 0.0
        %3071 = vmatpush.msra.mxu0 0.0
        %3072 = vmatpush.msra.mxu0 %v2895
        %3073 = vmatmul.f32.gmra.mxu0 %v2877
        %v3074 = vpop.f32.mrf.mxu0
        %v3075 = vadd.f32 0.0, %v3074
        %3076 = vdwg.mxu0
        %v3077 = vadd.f32 %v2835, %v2915
        %v3078 = vadd.f32 %v2836, %v2935
        %v3079 = vadd.f32 %v2837, %v2955
        %v3080 = vadd.f32 %v2838, %v2975
        %v3081 = vadd.f32 %v2839, %v2995
        %v3082 = vadd.f32 %v2840, %v3015
        %v3083 = vadd.f32 %v2841, %v3035
        %v3084 = vadd.f32 %v2842, %v3055
        %v3085 = vadd.f32 %v2843, %v3075
        %v3086 = vld [vmem:[%s3] sm:$0xff]
        %3088 = vset.pattern.permute.xlu0 0
        %3089 = vperm.xlu0 %3088, %v3086
        %v3090 = vpop.permute.xlu0 %3089
        %v3092 = vadd.f32 %v3077, %v3090
        %v3093 = vadd.f32 %v3078, %v3090
        %v3094 = vadd.f32 %v3079, %v3090
        %v3095 = vadd.f32 %v3080, %v3090
        %v3096 = vadd.f32 %v3081, %v3090
        %v3097 = vadd.f32 %v3082, %v3090
        %v3098 = vadd.f32 %v3083, %v3090
        %v3099 = vadd.f32 %v3084, %v3090
        %v3100 = vadd.f32 %v3085, %v3090
        %v3101 = vmax.f32 %v3092, 0.0
        %v3102 = vmax.f32 %v3093, 0.0
        %v3103 = vmax.f32 %v3094, 0.0
        %v3104 = vmax.f32 %v3095, 0.0
        %v3105 = vmax.f32 %v3096, 0.0
        %v3106 = vmax.f32 %v3097, 0.0
        %v3107 = vmax.f32 %v3098, 0.0
        %v3108 = vmax.f32 %v3099, 0.0
        %v3109 = vmax.f32 %v3100, 0.0
        %3110 = vst [vmem:[%s232] sm:$0xff] %v3101
        %3111 = vst [vmem:[%s232 + $0x8] sm:$0xff] %v3102
        %3112 = vst [vmem:[%s232 + $0x10] sm:$0xff] %v3103
        %3113 = vst [vmem:[%s232 + $0x18] sm:$0xff] %v3104
        %3114 = vst [vmem:[%s232 + $0x20] sm:$0xff] %v3105
        %3115 = vst [vmem:[%s232 + $0x28] sm:$0xff] %v3106
        %3116 = vst [vmem:[%s232 + $0x30] sm:$0xff] %v3107
        %3117 = vst [vmem:[%s232 + $0x38] sm:$0xff] %v3108
        %vm3118 = vcmask 523264
        %3119 = vst.msk [vmem:[%s232 + $0x40] sm:$0xff] %vm3118, %v3109
        %s3120 = sand.u32 %s119, 1
        %s3121 = scalar_lea.sflag [#allocation4], %s3120
        %s3122 = sand.u32 %s119, 1
        %s3123 = smul.addr %s3122, 72
        %s3124 = scalar_lea.vmem [#allocation7], %s3123
        // Predicated region
        $region45: #{tpu_custom_call.1} parent=35 // pred_check
          %p3125 = pneg %p129
        $region46: #{tpu_custom_call.1} parent=35 // pred_check_branch
          %3127 = sbr.rel (%p3125) target = $region48
        $region47: #{tpu_custom_call.1} parent=35 // pred_region
          %3129 = vsyncadd %s3121, 0
          %s3130 = smul.addr %s22, 9
          %s3131 = smul.addr %s3130, 8
          %s3132 = scalar_lea.hbm %s4, %s3131
          %s3134 = sshll.u32 %s3124, 4
          %s3135 = int_to_ptr.vmem [resolvable:$true] %s3134
          %s3136 = sshll.u32 %s3132, 4
          %s3137 = int_to_ptr.hbm [resolvable:$true] %s3136
          %3139 = dma.vmem_to_hbm [thread:$0]  %s3135, 1152, %s3137, %s3121
        $region48: #{tpu_custom_call.1} parent=35 // pred_fallthru
          _
      $region36: #{tpu_custom_call.1} parent=5 // pred_fallthru
        _
      %p3140 = scmp.le.s32.totalorder 2, %s17
      // Predicated region
      $region49: #{tpu_custom_call.1} parent=5 // pred_check
        %p3141 = pneg %p3140
      $region50: #{tpu_custom_call.1} parent=5 // pred_check_branch
        %3143 = sbr.rel (%p3141) target = $region52
      $region51: #{tpu_custom_call.1} parent=5 // pred_region
        %s3144 = ssub.s32 %s17, 2
        // Predicated region
        $region53: #{tpu_custom_call.1} parent=51 // pred_check
          %p3145 = pneg %p135
        $region54: #{tpu_custom_call.1} parent=51 // pred_check_branch
          %3147 = sbr.rel (%p3145) target = $region56
        $region55: #{tpu_custom_call.1} parent=51 // pred_region
          %s3148 = sand.u32 %s120, 1
          %s3149 = scalar_lea.sflag [#allocation4], %s3148
          %s3150 = sand.u32 %s120, 1
          %s3151 = smul.addr %s3150, 72
          %s3152 = scalar_lea.vmem [#allocation7], %s3151
          %3154 = dma.done %s3149, 1152
        $region56: #{tpu_custom_call.1} parent=51 // pred_fallthru
          _
      $region52: #{tpu_custom_call.1} parent=5 // pred_fallthru
        _
    $region6: #{tpu_custom_call.1} parent=1 // loop_footer
      %s21 = sadd.s32 1, %s17
    $region7: #{tpu_custom_call.1} parent=1 // loop_footer_branch
      %16 = sbr.rel target = $region3
    $region8: #{tpu_custom_call.1} parent=1 // loop_exit
      _
    %3155 = vsyncpa [#allocation3], 1
    %s3156 = scalar_lea.sflag [#allocation3], 1
    %3157 = vsyncpa %s3156, 1
    %3158 = vsyncpa [#allocation6], 1
    %3159 = vsyncpa [#allocation4], 1
    %s3160 = scalar_lea.sflag [#allocation4], 1
    %3161 = vsyncpa %s3160, 1

</llo_original>
